<compile_context>
chip_gen: v7x
topology: tpu7x:2x2x1
jax: 0.10.0
libtpu: 0.0.40
codegen_flags: <defaults>
</compile_context>

<pallas_src>
import jax
import jax.numpy as jnp
from jax.experimental import pallas as pl
from jax.experimental.pallas import tpu as pltpu

INPUT_SIZE = 40
GRU1_H = 64
GRU2_H = 64
FC1_N = 128
FC2_N = 128
N_CLASS = 3


# ---------------------------------------------------------------------------
# Fused kernel: GRU1 + GRU2 + MLP head + softmax
# ---------------------------------------------------------------------------
def fused_rnn_kernel(
    x_ref,                        # (T*B, D)      time-major rows: row = t*B + b
    g1_wih_ref, g1_bih_ref,       # (3, D,  H1),  (3, 1, H1)
    g1_whh_ref, g1_bhh_ref,       # (3, H1, H1),  (3, 1, H1)
    g2_wih_ref, g2_bih_ref,       # (3, H1, H2),  (3, 1, H2)
    g2_whh_ref, g2_bhh_ref,       # (3, H2, H2),  (3, 1, H2)
    fc1_w_ref, fc1_b_ref,         # (H2, F1), (1, F1)
    fc2_w_ref, fc2_b_ref,         # (F1, F2), (1, F2)
    out_w_ref, out_b_ref,         # (F2, C),  (1, C)
    o_ref,                        # (B, C)  softmax probabilities
    y1_ref,                       # VMEM scratch (T*B, H1): layer-1 outputs
):
    f32 = jnp.float32
    B = o_ref.shape[0]
    TB = x_ref.shape[0]
    T = TB // B
    H1 = g1_whh_ref.shape[-1]
    H2 = g2_whh_ref.shape[-1]

    def gru(inp_flat, wih_ref, bih_ref, whh_ref, bhh_ref, H, y_out_ref):
        # -- input projection for ALL timesteps at once (b_ih folded in) -----
        gi_r = jnp.dot(inp_flat, wih_ref[0], preferred_element_type=f32) + bih_ref[0]
        gi_z = jnp.dot(inp_flat, wih_ref[1], preferred_element_type=f32) + bih_ref[1]
        gi_n = jnp.dot(inp_flat, wih_ref[2], preferred_element_type=f32) + bih_ref[2]

        # -- hidden-path weights / biases loaded once (hoisted) --------------
        w_r, w_z, w_n = whh_ref[0], whh_ref[1], whh_ref[2]
        b_r, b_z, b_n = bhh_ref[0], bhh_ref[1], bhh_ref[2]

        h = jnp.zeros((B, H), f32)
        for t in range(T):                       # fully unrolled, static slices
            r0 = t * B
            i_r = gi_r[r0:r0 + B]
            i_z = gi_z[r0:r0 + B]
            i_n = gi_n[r0:r0 + B]
            h_r = jnp.dot(h, w_r, preferred_element_type=f32) + b_r
            h_z = jnp.dot(h, w_z, preferred_element_type=f32) + b_z
            h_n = jnp.dot(h, w_n, preferred_element_type=f32) + b_n
            r = jax.nn.sigmoid(i_r + h_r)
            z = jax.nn.sigmoid(i_z + h_z)
            n = jnp.tanh(i_n + r * h_n)
            h = (1.0 - z) * n + z * h
            if y_out_ref is not None:
                y_out_ref[pl.ds(r0, B), :] = h   # store all steps (layer 1 only)
        return h

    # GRU layer 1: keep every timestep (needed as GRU2 input), in VMEM scratch.
    gru(x_ref[...], g1_wih_ref, g1_bih_ref, g1_whh_ref, g1_bhh_ref, H1, y1_ref)

    # GRU layer 2: only the final hidden state is needed.
    h2 = gru(y1_ref[...], g2_wih_ref, g2_bih_ref, g2_whh_ref, g2_bhh_ref, H2, None)

    # MLP head + softmax over the class axis (dim=1).
    a1 = jnp.maximum(
        jnp.dot(h2, fc1_w_ref[...], preferred_element_type=f32) + fc1_b_ref[...], 0.0)
    a2 = jnp.maximum(
        jnp.dot(a1, fc2_w_ref[...], preferred_element_type=f32) + fc2_b_ref[...], 0.0)
    logits = jnp.dot(a2, out_w_ref[...], preferred_element_type=f32) + out_b_ref[...]
    m = jnp.max(logits, axis=-1, keepdims=True)
    e = jnp.exp(logits - m)
    # NOTE: pl.reciprocal(..., approx=True) would use the EUP slot, but exact
    # division is kept for tight numerical parity (zero perf impact at (2,3)).
    o_ref[...] = e / jnp.sum(e, axis=-1, keepdims=True)


@jax.jit
def my_rnn_forward(x, params):
    """x: (B, T, input_size) batch-first, like the PyTorch module."""
    B, T, D = x.shape
    # Time-major flatten (row = t*B + b): one tiny XLA transform (~2.5 KB) off
    # the serial path; keeps every in-kernel timestep access a contiguous
    # static sublane slice.
    x_tm = jnp.transpose(x, (1, 0, 2)).reshape(T * B, D).astype(jnp.float32)

    args = (
        x_tm,
        params["g1_wih"], params["g1_bih"], params["g1_whh"], params["g1_bhh"],
        params["g2_wih"], params["g2_bih"], params["g2_whh"], params["g2_bhh"],
        params["fc1_w"], params["fc1_b"],
        params["fc2_w"], params["fc2_b"],
        params["out_w"], params["out_b"],
    )
    return pl.pallas_call(
        fused_rnn_kernel,
        out_shape=jax.ShapeDtypeStruct((B, N_CLASS), jnp.float32),
        in_specs=[pl.BlockSpec(memory_space=pltpu.MemorySpace.VMEM) for _ in args],
        out_specs=pl.BlockSpec(memory_space=pltpu.MemorySpace.VMEM),
        scratch_shapes=[pltpu.VMEM((T * B, GRU1_H), jnp.float32)],
    )(*args)


# ---------------------------------------------------------------------------
# Parameter init (deterministic, PyTorch-like uniform(-1/sqrt(fan), 1/sqrt(fan)))
# Weights are stored per-gate and pre-transposed: (3, in_features, H).
# ---------------------------------------------------------------------------
def _uniform(key, shape, bound):
    return jax.random.uniform(key, shape, jnp.float32, -bound, bound)


def init_params(key):
    ks = jax.random.split(key, 14)
    p = {}
    b1 = 1.0 / jnp.sqrt(GRU1_H)
    p["g1_wih"] = _uniform(ks[0], (3, INPUT_SIZE, GRU1_H), b1)
    p["g1_whh"] = _uniform(ks[1], (3, GRU1_H, GRU1_H), b1)
    p["g1_bih"] = _uniform(ks[2], (3, 1, GRU1_H), b1)
    p["g1_bhh"] = _uniform(ks[3], (3, 1, GRU1_H), b1)
    b2 = 1.0 / jnp.sqrt(GRU2_H)
    p["g2_wih"] = _uniform(ks[4], (3, GRU1_H, GRU2_H), b2)
    p["g2_whh"] = _uniform(ks[5], (3, GRU2_H, GRU2_H), b2)
    p["g2_bih"] = _uniform(ks[6], (3, 1, GRU2_H), b2)
    p["g2_bhh"] = _uniform(ks[7], (3, 1, GRU2_H), b2)
    bf1 = 1.0 / jnp.sqrt(GRU2_H)
    p["fc1_w"] = _uniform(ks[8], (GRU2_H, FC1_N), bf1)
    p["fc1_b"] = _uniform(ks[9], (1, FC1_N), bf1)
    bf2 = 1.0 / jnp.sqrt(FC1_N)
    p["fc2_w"] = _uniform(ks[10], (FC1_N, FC2_N), bf2)
    p["fc2_b"] = _uniform(ks[11], (1, FC2_N), bf2)
    bfo = 1.0 / jnp.sqrt(FC2_N)
    p["out_w"] = _uniform(ks[12], (FC2_N, N_CLASS), bfo)
    p["out_b"] = _uniform(ks[13], (1, N_CLASS), bfo)
    return p


# ---------------------------------------------------------------------------
# Pure-JAX reference (same math, PyTorch GRU semantics) for a sanity check.
# ---------------------------------------------------------------------------
def _reference_forward(x, params):
    hp = jax.lax.Precision.HIGHEST
    B, T, _ = x.shape

    def gru(inp, wih, bih, whh, bhh, H):
        h = jnp.zeros((B, H), jnp.float32)
        ys = []
        for t in range(T):
            xt = inp[:, t, :]
            i_r = jnp.dot(xt, wih[0], precision=hp) + bih[0]
            i_z = jnp.dot(xt, wih[1], precision=hp) + bih[1]
            i_n = jnp.dot(xt, wih[2], precision=hp) + bih[2]
            h_r = jnp.dot(h, whh[0], precision=hp) + bhh[0]
            h_z = jnp.dot(h, whh[1], precision=hp) + bhh[1]
            h_n = jnp.dot(h, whh[2], precision=hp) + bhh[2]
            r = jax.nn.sigmoid(i_r + h_r)
            z = jax.nn.sigmoid(i_z + h_z)
            n = jnp.tanh(i_n + r * h_n)
            h = (1.0 - z) * n + z * h
            ys.append(h)
        return jnp.stack(ys, axis=1)  # (B, T, H)

    y1 = gru(x, params["g1_wih"], params["g1_bih"], params["g1_whh"], params["g1_bhh"], GRU1_H)
    y2 = gru(y1, params["g2_wih"], params["g2_bih"], params["g2_whh"], params["g2_bhh"], GRU2_H)
    h = y2[:, -1, :]
    a1 = jax.nn.relu(jnp.dot(h, params["fc1_w"], precision=hp) + params["fc1_b"])
    a2 = jax.nn.relu(jnp.dot(a1, params["fc2_w"], precision=hp) + params["fc2_b"])
    logits = jnp.dot(a2, params["out_w"], precision=hp) + params["out_b"]
    return jax.nn.softmax(logits, axis=1)


if __name__ == "__main__":
    key = jax.random.PRNGKey(0)
    k_x, k_p = jax.random.split(key)
    B, T = 2, 8
    x = jax.random.normal(k_x, (B, T, INPUT_SIZE), jnp.float32)
    params = init_params(k_p)

    probs = jax.block_until_ready(my_rnn_forward(x, params))

    assert probs.shape == (B, N_CLASS)
    assert bool(jnp.all(jnp.isfinite(probs)))
    assert bool(jnp.allclose(jnp.sum(probs, axis=1), 1.0, atol=1e-5))

    ref = jax.block_until_ready(_reference_forward(x, params))
    # Loose tolerance: MXU f32 matmul pass structure inside the kernel differs
    # slightly from the XLA reference; structural bugs would be >> 1e-2.
    assert bool(jnp.allclose(probs, ref, atol=1e-2, rtol=1e-2))

    print("KERNEL_OK")
</pallas_src>

<mosaic_0001>
module attributes {stable_mosaic.version = 11 : i64} {
  func.func @fused_rnn_kernel(%arg0: memref<16x40xf32, #tpu.memory_space<vmem>>, %arg1: memref<3x40x64xf32, #tpu.memory_space<vmem>>, %arg2: memref<3x1x64xf32, #tpu.memory_space<vmem>>, %arg3: memref<3x64x64xf32, #tpu.memory_space<vmem>>, %arg4: memref<3x1x64xf32, #tpu.memory_space<vmem>>, %arg5: memref<3x64x64xf32, #tpu.memory_space<vmem>>, %arg6: memref<3x1x64xf32, #tpu.memory_space<vmem>>, %arg7: memref<3x64x64xf32, #tpu.memory_space<vmem>>, %arg8: memref<3x1x64xf32, #tpu.memory_space<vmem>>, %arg9: memref<64x128xf32, #tpu.memory_space<vmem>>, %arg10: memref<1x128xf32, #tpu.memory_space<vmem>>, %arg11: memref<128x128xf32, #tpu.memory_space<vmem>>, %arg12: memref<1x128xf32, #tpu.memory_space<vmem>>, %arg13: memref<128x3xf32, #tpu.memory_space<vmem>>, %arg14: memref<1x3xf32, #tpu.memory_space<vmem>>, %arg15: memref<2x3xf32, #tpu.memory_space<vmem>>, %arg16: memref<16x64xf32, #tpu.memory_space<vmem>>) attributes {dimension_semantics = [], scalar_prefetch = 0 : i64, scratch_operands = 1 : i64, tpu.core_type = #tpu.core_type<tc>} {
    %c0 = arith.constant 0 : index
    %c0_0 = arith.constant 0 : index
    %0 = vector.load %arg0[%c0, %c0_0] : memref<16x40xf32, #tpu.memory_space<vmem>>, vector<16x40xf32>
    %c0_1 = arith.constant 0 : index
    %c0_2 = arith.constant 0 : index
    %c0_3 = arith.constant 0 : index
    %1 = vector.load %arg1[%c0_1, %c0_2, %c0_3] : memref<3x40x64xf32, #tpu.memory_space<vmem>>, vector<1x40x64xf32>
    %2 = vector.shape_cast %1 : vector<1x40x64xf32> to vector<40x64xf32>
    %cst = arith.constant dense<0.000000e+00> : vector<16x64xf32>
    %3 = tpu.matmul %0, %2, %cst {dimension_numbers = #tpu.dot_dimension_numbers<[1], [0], [0], [1], [0, 0, 1, 1], [], []>} : vector<16x40xf32>, vector<40x64xf32>, vector<16x64xf32> -> vector<16x64xf32>
    %c0_4 = arith.constant 0 : index
    %c0_5 = arith.constant 0 : index
    %c0_6 = arith.constant 0 : index
    %4 = vector.load %arg2[%c0_4, %c0_5, %c0_6] : memref<3x1x64xf32, #tpu.memory_space<vmem>>, vector<1x1x64xf32>
    %5 = vector.shape_cast %4 : vector<1x1x64xf32> to vector<1x64xf32>
    %6 = vector.broadcast %5 : vector<1x64xf32> to vector<16x64xf32>
    %7 = arith.addf %3, %6 : vector<16x64xf32>
    %c1 = arith.constant 1 : index
    %c0_7 = arith.constant 0 : index
    %c0_8 = arith.constant 0 : index
    %8 = vector.load %arg1[%c1, %c0_7, %c0_8] : memref<3x40x64xf32, #tpu.memory_space<vmem>>, vector<1x40x64xf32>
    %9 = vector.shape_cast %8 : vector<1x40x64xf32> to vector<40x64xf32>
    %cst_9 = arith.constant dense<0.000000e+00> : vector<16x64xf32>
    %10 = tpu.matmul %0, %9, %cst_9 {dimension_numbers = #tpu.dot_dimension_numbers<[1], [0], [0], [1], [0, 0, 1, 1], [], []>} : vector<16x40xf32>, vector<40x64xf32>, vector<16x64xf32> -> vector<16x64xf32>
    %c1_10 = arith.constant 1 : index
    %c0_11 = arith.constant 0 : index
    %c0_12 = arith.constant 0 : index
    %11 = vector.load %arg2[%c1_10, %c0_11, %c0_12] : memref<3x1x64xf32, #tpu.memory_space<vmem>>, vector<1x1x64xf32>
    %12 = vector.shape_cast %11 : vector<1x1x64xf32> to vector<1x64xf32>
    %13 = vector.broadcast %12 : vector<1x64xf32> to vector<16x64xf32>
    %14 = arith.addf %10, %13 : vector<16x64xf32>
    %c2 = arith.constant 2 : index
    %c0_13 = arith.constant 0 : index
    %c0_14 = arith.constant 0 : index
    %15 = vector.load %arg1[%c2, %c0_13, %c0_14] : memref<3x40x64xf32, #tpu.memory_space<vmem>>, vector<1x40x64xf32>
    %16 = vector.shape_cast %15 : vector<1x40x64xf32> to vector<40x64xf32>
    %cst_15 = arith.constant dense<0.000000e+00> : vector<16x64xf32>
    %17 = tpu.matmul %0, %16, %cst_15 {dimension_numbers = #tpu.dot_dimension_numbers<[1], [0], [0], [1], [0, 0, 1, 1], [], []>} : vector<16x40xf32>, vector<40x64xf32>, vector<16x64xf32> -> vector<16x64xf32>
    %c2_16 = arith.constant 2 : index
    %c0_17 = arith.constant 0 : index
    %c0_18 = arith.constant 0 : index
    %18 = vector.load %arg2[%c2_16, %c0_17, %c0_18] : memref<3x1x64xf32, #tpu.memory_space<vmem>>, vector<1x1x64xf32>
    %19 = vector.shape_cast %18 : vector<1x1x64xf32> to vector<1x64xf32>
    %20 = vector.broadcast %19 : vector<1x64xf32> to vector<16x64xf32>
    %21 = arith.addf %17, %20 : vector<16x64xf32>
    %c0_19 = arith.constant 0 : index
    %c0_20 = arith.constant 0 : index
    %c0_21 = arith.constant 0 : index
    %22 = vector.load %arg3[%c0_19, %c0_20, %c0_21] : memref<3x64x64xf32, #tpu.memory_space<vmem>>, vector<1x64x64xf32>
    %23 = vector.shape_cast %22 : vector<1x64x64xf32> to vector<64x64xf32>
    %c1_22 = arith.constant 1 : index
    %c0_23 = arith.constant 0 : index
    %c0_24 = arith.constant 0 : index
    %24 = vector.load %arg3[%c1_22, %c0_23, %c0_24] : memref<3x64x64xf32, #tpu.memory_space<vmem>>, vector<1x64x64xf32>
    %25 = vector.shape_cast %24 : vector<1x64x64xf32> to vector<64x64xf32>
    %c2_25 = arith.constant 2 : index
    %c0_26 = arith.constant 0 : index
    %c0_27 = arith.constant 0 : index
    %26 = vector.load %arg3[%c2_25, %c0_26, %c0_27] : memref<3x64x64xf32, #tpu.memory_space<vmem>>, vector<1x64x64xf32>
    %27 = vector.shape_cast %26 : vector<1x64x64xf32> to vector<64x64xf32>
    %c0_28 = arith.constant 0 : index
    %c0_29 = arith.constant 0 : index
    %c0_30 = arith.constant 0 : index
    %28 = vector.load %arg4[%c0_28, %c0_29, %c0_30] : memref<3x1x64xf32, #tpu.memory_space<vmem>>, vector<1x1x64xf32>
    %29 = vector.shape_cast %28 : vector<1x1x64xf32> to vector<1x64xf32>
    %c1_31 = arith.constant 1 : index
    %c0_32 = arith.constant 0 : index
    %c0_33 = arith.constant 0 : index
    %30 = vector.load %arg4[%c1_31, %c0_32, %c0_33] : memref<3x1x64xf32, #tpu.memory_space<vmem>>, vector<1x1x64xf32>
    %31 = vector.shape_cast %30 : vector<1x1x64xf32> to vector<1x64xf32>
    %c2_34 = arith.constant 2 : index
    %c0_35 = arith.constant 0 : index
    %c0_36 = arith.constant 0 : index
    %32 = vector.load %arg4[%c2_34, %c0_35, %c0_36] : memref<3x1x64xf32, #tpu.memory_space<vmem>>, vector<1x1x64xf32>
    %33 = vector.shape_cast %32 : vector<1x1x64xf32> to vector<1x64xf32>
    %cst_37 = arith.constant 0.000000e+00 : f32
    %34 = vector.broadcast %cst_37 : f32 to vector<2x64xf32>
    %35 = vector.extract_strided_slice %7 {offsets = [0, 0], sizes = [2, 64], strides = [1, 1]} : vector<16x64xf32> to vector<2x64xf32>
    %36 = vector.extract_strided_slice %14 {offsets = [0, 0], sizes = [2, 64], strides = [1, 1]} : vector<16x64xf32> to vector<2x64xf32>
    %37 = vector.extract_strided_slice %21 {offsets = [0, 0], sizes = [2, 64], strides = [1, 1]} : vector<16x64xf32> to vector<2x64xf32>
    %cst_38 = arith.constant dense<0.000000e+00> : vector<2x64xf32>
    %38 = tpu.matmul %34, %23, %cst_38 {dimension_numbers = #tpu.dot_dimension_numbers<[1], [0], [0], [1], [0, 0, 1, 1], [], []>} : vector<2x64xf32>, vector<64x64xf32>, vector<2x64xf32> -> vector<2x64xf32>
    %39 = vector.broadcast %29 : vector<1x64xf32> to vector<2x64xf32>
    %40 = arith.addf %38, %39 : vector<2x64xf32>
    %cst_39 = arith.constant dense<0.000000e+00> : vector<2x64xf32>
    %41 = tpu.matmul %34, %25, %cst_39 {dimension_numbers = #tpu.dot_dimension_numbers<[1], [0], [0], [1], [0, 0, 1, 1], [], []>} : vector<2x64xf32>, vector<64x64xf32>, vector<2x64xf32> -> vector<2x64xf32>
    %42 = vector.broadcast %31 : vector<1x64xf32> to vector<2x64xf32>
    %43 = arith.addf %41, %42 : vector<2x64xf32>
    %cst_40 = arith.constant dense<0.000000e+00> : vector<2x64xf32>
    %44 = tpu.matmul %34, %27, %cst_40 {dimension_numbers = #tpu.dot_dimension_numbers<[1], [0], [0], [1], [0, 0, 1, 1], [], []>} : vector<2x64xf32>, vector<64x64xf32>, vector<2x64xf32> -> vector<2x64xf32>
    %45 = vector.broadcast %33 : vector<1x64xf32> to vector<2x64xf32>
    %46 = arith.addf %44, %45 : vector<2x64xf32>
    %47 = arith.addf %35, %40 : vector<2x64xf32>
    %48 = arith.negf %47 : vector<2x64xf32>
    %49 = math.exp %48 : vector<2x64xf32>
    %cst_41 = arith.constant 1.000000e+00 : f32
    %50 = vector.broadcast %cst_41 : f32 to vector<2x64xf32>
    %51 = arith.addf %50, %49 : vector<2x64xf32>
    %52 = arith.divf %50, %51 : vector<2x64xf32>
    %53 = arith.addf %36, %43 : vector<2x64xf32>
    %54 = arith.negf %53 : vector<2x64xf32>
    %55 = math.exp %54 : vector<2x64xf32>
    %cst_42 = arith.constant 1.000000e+00 : f32
    %56 = vector.broadcast %cst_42 : f32 to vector<2x64xf32>
    %57 = arith.addf %56, %55 : vector<2x64xf32>
    %58 = arith.divf %56, %57 : vector<2x64xf32>
    %59 = arith.mulf %52, %46 : vector<2x64xf32>
    %60 = arith.addf %37, %59 : vector<2x64xf32>
    %61 = math.tanh %60 : vector<2x64xf32>
    %cst_43 = arith.constant 1.000000e+00 : f32
    %62 = vector.broadcast %cst_43 : f32 to vector<2x64xf32>
    %63 = arith.subf %62, %58 : vector<2x64xf32>
    %64 = arith.mulf %63, %61 : vector<2x64xf32>
    %65 = arith.mulf %58, %34 : vector<2x64xf32>
    %66 = arith.addf %64, %65 : vector<2x64xf32>
    %c0_44 = arith.constant 0 : index
    %c0_45 = arith.constant 0 : index
    %67 = vector.load %arg16[%c0_44, %c0_45] : memref<16x64xf32, #tpu.memory_space<vmem>>, vector<2x64xf32>
    tpu.vector_store %arg16[%c0_44, %c0_45], %66 {strides = array<i32>} : memref<16x64xf32, #tpu.memory_space<vmem>>, vector<2x64xf32>,
    %68 = vector.extract_strided_slice %7 {offsets = [2, 0], sizes = [2, 64], strides = [1, 1]} : vector<16x64xf32> to vector<2x64xf32>
    %69 = vector.extract_strided_slice %14 {offsets = [2, 0], sizes = [2, 64], strides = [1, 1]} : vector<16x64xf32> to vector<2x64xf32>
    %70 = vector.extract_strided_slice %21 {offsets = [2, 0], sizes = [2, 64], strides = [1, 1]} : vector<16x64xf32> to vector<2x64xf32>
    %cst_46 = arith.constant dense<0.000000e+00> : vector<2x64xf32>
    %71 = tpu.matmul %66, %23, %cst_46 {dimension_numbers = #tpu.dot_dimension_numbers<[1], [0], [0], [1], [0, 0, 1, 1], [], []>} : vector<2x64xf32>, vector<64x64xf32>, vector<2x64xf32> -> vector<2x64xf32>
    %72 = vector.broadcast %29 : vector<1x64xf32> to vector<2x64xf32>
    %73 = arith.addf %71, %72 : vector<2x64xf32>
    %cst_47 = arith.constant dense<0.000000e+00> : vector<2x64xf32>
    %74 = tpu.matmul %66, %25, %cst_47 {dimension_numbers = #tpu.dot_dimension_numbers<[1], [0], [0], [1], [0, 0, 1, 1], [], []>} : vector<2x64xf32>, vector<64x64xf32>, vector<2x64xf32> -> vector<2x64xf32>
    %75 = vector.broadcast %31 : vector<1x64xf32> to vector<2x64xf32>
    %76 = arith.addf %74, %75 : vector<2x64xf32>
    %cst_48 = arith.constant dense<0.000000e+00> : vector<2x64xf32>
    %77 = tpu.matmul %66, %27, %cst_48 {dimension_numbers = #tpu.dot_dimension_numbers<[1], [0], [0], [1], [0, 0, 1, 1], [], []>} : vector<2x64xf32>, vector<64x64xf32>, vector<2x64xf32> -> vector<2x64xf32>
    %78 = vector.broadcast %33 : vector<1x64xf32> to vector<2x64xf32>
    %79 = arith.addf %77, %78 : vector<2x64xf32>
    %80 = arith.addf %68, %73 : vector<2x64xf32>
    %81 = arith.negf %80 : vector<2x64xf32>
    %82 = math.exp %81 : vector<2x64xf32>
    %cst_49 = arith.constant 1.000000e+00 : f32
    %83 = vector.broadcast %cst_49 : f32 to vector<2x64xf32>
    %84 = arith.addf %83, %82 : vector<2x64xf32>
    %85 = arith.divf %83, %84 : vector<2x64xf32>
    %86 = arith.addf %69, %76 : vector<2x64xf32>
    %87 = arith.negf %86 : vector<2x64xf32>
    %88 = math.exp %87 : vector<2x64xf32>
    %cst_50 = arith.constant 1.000000e+00 : f32
    %89 = vector.broadcast %cst_50 : f32 to vector<2x64xf32>
    %90 = arith.addf %89, %88 : vector<2x64xf32>
    %91 = arith.divf %89, %90 : vector<2x64xf32>
    %92 = arith.mulf %85, %79 : vector<2x64xf32>
    %93 = arith.addf %70, %92 : vector<2x64xf32>
    %94 = math.tanh %93 : vector<2x64xf32>
    %cst_51 = arith.constant 1.000000e+00 : f32
    %95 = vector.broadcast %cst_51 : f32 to vector<2x64xf32>
    %96 = arith.subf %95, %91 : vector<2x64xf32>
    %97 = arith.mulf %96, %94 : vector<2x64xf32>
    %98 = arith.mulf %91, %66 : vector<2x64xf32>
    %99 = arith.addf %97, %98 : vector<2x64xf32>
    %c2_52 = arith.constant 2 : index
    %c0_53 = arith.constant 0 : index
    %100 = vector.load %arg16[%c2_52, %c0_53] : memref<16x64xf32, #tpu.memory_space<vmem>>, vector<2x64xf32>
    tpu.vector_store %arg16[%c2_52, %c0_53], %99 {strides = array<i32>} : memref<16x64xf32, #tpu.memory_space<vmem>>, vector<2x64xf32>,
    %101 = vector.extract_strided_slice %7 {offsets = [4, 0], sizes = [2, 64], strides = [1, 1]} : vector<16x64xf32> to vector<2x64xf32>
    %102 = vector.extract_strided_slice %14 {offsets = [4, 0], sizes = [2, 64], strides = [1, 1]} : vector<16x64xf32> to vector<2x64xf32>
    %103 = vector.extract_strided_slice %21 {offsets = [4, 0], sizes = [2, 64], strides = [1, 1]} : vector<16x64xf32> to vector<2x64xf32>
    %cst_54 = arith.constant dense<0.000000e+00> : vector<2x64xf32>
    %104 = tpu.matmul %99, %23, %cst_54 {dimension_numbers = #tpu.dot_dimension_numbers<[1], [0], [0], [1], [0, 0, 1, 1], [], []>} : vector<2x64xf32>, vector<64x64xf32>, vector<2x64xf32> -> vector<2x64xf32>
    %105 = vector.broadcast %29 : vector<1x64xf32> to vector<2x64xf32>
    %106 = arith.addf %104, %105 : vector<2x64xf32>
    %cst_55 = arith.constant dense<0.000000e+00> : vector<2x64xf32>
    %107 = tpu.matmul %99, %25, %cst_55 {dimension_numbers = #tpu.dot_dimension_numbers<[1], [0], [0], [1], [0, 0, 1, 1], [], []>} : vector<2x64xf32>, vector<64x64xf32>, vector<2x64xf32> -> vector<2x64xf32>
    %108 = vector.broadcast %31 : vector<1x64xf32> to vector<2x64xf32>
    %109 = arith.addf %107, %108 : vector<2x64xf32>
    %cst_56 = arith.constant dense<0.000000e+00> : vector<2x64xf32>
    %110 = tpu.matmul %99, %27, %cst_56 {dimension_numbers = #tpu.dot_dimension_numbers<[1], [0], [0], [1], [0, 0, 1, 1], [], []>} : vector<2x64xf32>, vector<64x64xf32>, vector<2x64xf32> -> vector<2x64xf32>
    %111 = vector.broadcast %33 : vector<1x64xf32> to vector<2x64xf32>
    %112 = arith.addf %110, %111 : vector<2x64xf32>
    %113 = arith.addf %101, %106 : vector<2x64xf32>
    %114 = arith.negf %113 : vector<2x64xf32>
    %115 = math.exp %114 : vector<2x64xf32>
    %cst_57 = arith.constant 1.000000e+00 : f32
    %116 = vector.broadcast %cst_57 : f32 to vector<2x64xf32>
    %117 = arith.addf %116, %115 : vector<2x64xf32>
    %118 = arith.divf %116, %117 : vector<2x64xf32>
    %119 = arith.addf %102, %109 : vector<2x64xf32>
    %120 = arith.negf %119 : vector<2x64xf32>
    %121 = math.exp %120 : vector<2x64xf32>
    %cst_58 = arith.constant 1.000000e+00 : f32
    %122 = vector.broadcast %cst_58 : f32 to vector<2x64xf32>
    %123 = arith.addf %122, %121 : vector<2x64xf32>
    %124 = arith.divf %122, %123 : vector<2x64xf32>
    %125 = arith.mulf %118, %112 : vector<2x64xf32>
    %126 = arith.addf %103, %125 : vector<2x64xf32>
    %127 = math.tanh %126 : vector<2x64xf32>
    %cst_59 = arith.constant 1.000000e+00 : f32
    %128 = vector.broadcast %cst_59 : f32 to vector<2x64xf32>
    %129 = arith.subf %128, %124 : vector<2x64xf32>
    %130 = arith.mulf %129, %127 : vector<2x64xf32>
    %131 = arith.mulf %124, %99 : vector<2x64xf32>
    %132 = arith.addf %130, %131 : vector<2x64xf32>
    %c4 = arith.constant 4 : index
    %c0_60 = arith.constant 0 : index
    %133 = vector.load %arg16[%c4, %c0_60] : memref<16x64xf32, #tpu.memory_space<vmem>>, vector<2x64xf32>
    tpu.vector_store %arg16[%c4, %c0_60], %132 {strides = array<i32>} : memref<16x64xf32, #tpu.memory_space<vmem>>, vector<2x64xf32>,
    %134 = vector.extract_strided_slice %7 {offsets = [6, 0], sizes = [2, 64], strides = [1, 1]} : vector<16x64xf32> to vector<2x64xf32>
    %135 = vector.extract_strided_slice %14 {offsets = [6, 0], sizes = [2, 64], strides = [1, 1]} : vector<16x64xf32> to vector<2x64xf32>
    %136 = vector.extract_strided_slice %21 {offsets = [6, 0], sizes = [2, 64], strides = [1, 1]} : vector<16x64xf32> to vector<2x64xf32>
    %cst_61 = arith.constant dense<0.000000e+00> : vector<2x64xf32>
    %137 = tpu.matmul %132, %23, %cst_61 {dimension_numbers = #tpu.dot_dimension_numbers<[1], [0], [0], [1], [0, 0, 1, 1], [], []>} : vector<2x64xf32>, vector<64x64xf32>, vector<2x64xf32> -> vector<2x64xf32>
    %138 = vector.broadcast %29 : vector<1x64xf32> to vector<2x64xf32>
    %139 = arith.addf %137, %138 : vector<2x64xf32>
    %cst_62 = arith.constant dense<0.000000e+00> : vector<2x64xf32>
    %140 = tpu.matmul %132, %25, %cst_62 {dimension_numbers = #tpu.dot_dimension_numbers<[1], [0], [0], [1], [0, 0, 1, 1], [], []>} : vector<2x64xf32>, vector<64x64xf32>, vector<2x64xf32> -> vector<2x64xf32>
    %141 = vector.broadcast %31 : vector<1x64xf32> to vector<2x64xf32>
    %142 = arith.addf %140, %141 : vector<2x64xf32>
    %cst_63 = arith.constant dense<0.000000e+00> : vector<2x64xf32>
    %143 = tpu.matmul %132, %27, %cst_63 {dimension_numbers = #tpu.dot_dimension_numbers<[1], [0], [0], [1], [0, 0, 1, 1], [], []>} : vector<2x64xf32>, vector<64x64xf32>, vector<2x64xf32> -> vector<2x64xf32>
    %144 = vector.broadcast %33 : vector<1x64xf32> to vector<2x64xf32>
    %145 = arith.addf %143, %144 : vector<2x64xf32>
    %146 = arith.addf %134, %139 : vector<2x64xf32>
    %147 = arith.negf %146 : vector<2x64xf32>
    %148 = math.exp %147 : vector<2x64xf32>
    %cst_64 = arith.constant 1.000000e+00 : f32
    %149 = vector.broadcast %cst_64 : f32 to vector<2x64xf32>
    %150 = arith.addf %149, %148 : vector<2x64xf32>
    %151 = arith.divf %149, %150 : vector<2x64xf32>
    %152 = arith.addf %135, %142 : vector<2x64xf32>
    %153 = arith.negf %152 : vector<2x64xf32>
    %154 = math.exp %153 : vector<2x64xf32>
    %cst_65 = arith.constant 1.000000e+00 : f32
    %155 = vector.broadcast %cst_65 : f32 to vector<2x64xf32>
    %156 = arith.addf %155, %154 : vector<2x64xf32>
    %157 = arith.divf %155, %156 : vector<2x64xf32>
    %158 = arith.mulf %151, %145 : vector<2x64xf32>
    %159 = arith.addf %136, %158 : vector<2x64xf32>
    %160 = math.tanh %159 : vector<2x64xf32>
    %cst_66 = arith.constant 1.000000e+00 : f32
    %161 = vector.broadcast %cst_66 : f32 to vector<2x64xf32>
    %162 = arith.subf %161, %157 : vector<2x64xf32>
    %163 = arith.mulf %162, %160 : vector<2x64xf32>
    %164 = arith.mulf %157, %132 : vector<2x64xf32>
    %165 = arith.addf %163, %164 : vector<2x64xf32>
    %c6 = arith.constant 6 : index
    %c0_67 = arith.constant 0 : index
    %166 = vector.load %arg16[%c6, %c0_67] : memref<16x64xf32, #tpu.memory_space<vmem>>, vector<2x64xf32>
    tpu.vector_store %arg16[%c6, %c0_67], %165 {strides = array<i32>} : memref<16x64xf32, #tpu.memory_space<vmem>>, vector<2x64xf32>,
    %167 = vector.extract_strided_slice %7 {offsets = [8, 0], sizes = [2, 64], strides = [1, 1]} : vector<16x64xf32> to vector<2x64xf32>
    %168 = vector.extract_strided_slice %14 {offsets = [8, 0], sizes = [2, 64], strides = [1, 1]} : vector<16x64xf32> to vector<2x64xf32>
    %169 = vector.extract_strided_slice %21 {offsets = [8, 0], sizes = [2, 64], strides = [1, 1]} : vector<16x64xf32> to vector<2x64xf32>
    %cst_68 = arith.constant dense<0.000000e+00> : vector<2x64xf32>
    %170 = tpu.matmul %165, %23, %cst_68 {dimension_numbers = #tpu.dot_dimension_numbers<[1], [0], [0], [1], [0, 0, 1, 1], [], []>} : vector<2x64xf32>, vector<64x64xf32>, vector<2x64xf32> -> vector<2x64xf32>
    %171 = vector.broadcast %29 : vector<1x64xf32> to vector<2x64xf32>
    %172 = arith.addf %170, %171 : vector<2x64xf32>
    %cst_69 = arith.constant dense<0.000000e+00> : vector<2x64xf32>
    %173 = tpu.matmul %165, %25, %cst_69 {dimension_numbers = #tpu.dot_dimension_numbers<[1], [0], [0], [1], [0, 0, 1, 1], [], []>} : vector<2x64xf32>, vector<64x64xf32>, vector<2x64xf32> -> vector<2x64xf32>
    %174 = vector.broadcast %31 : vector<1x64xf32> to vector<2x64xf32>
    %175 = arith.addf %173, %174 : vector<2x64xf32>
    %cst_70 = arith.constant dense<0.000000e+00> : vector<2x64xf32>
    %176 = tpu.matmul %165, %27, %cst_70 {dimension_numbers = #tpu.dot_dimension_numbers<[1], [0], [0], [1], [0, 0, 1, 1], [], []>} : vector<2x64xf32>, vector<64x64xf32>, vector<2x64xf32> -> vector<2x64xf32>
    %177 = vector.broadcast %33 : vector<1x64xf32> to vector<2x64xf32>
    %178 = arith.addf %176, %177 : vector<2x64xf32>
    %179 = arith.addf %167, %172 : vector<2x64xf32>
    %180 = arith.negf %179 : vector<2x64xf32>
    %181 = math.exp %180 : vector<2x64xf32>
    %cst_71 = arith.constant 1.000000e+00 : f32
    %182 = vector.broadcast %cst_71 : f32 to vector<2x64xf32>
    %183 = arith.addf %182, %181 : vector<2x64xf32>
    %184 = arith.divf %182, %183 : vector<2x64xf32>
    %185 = arith.addf %168, %175 : vector<2x64xf32>
    %186 = arith.negf %185 : vector<2x64xf32>
    %187 = math.exp %186 : vector<2x64xf32>
    %cst_72 = arith.constant 1.000000e+00 : f32
    %188 = vector.broadcast %cst_72 : f32 to vector<2x64xf32>
    %189 = arith.addf %188, %187 : vector<2x64xf32>
    %190 = arith.divf %188, %189 : vector<2x64xf32>
    %191 = arith.mulf %184, %178 : vector<2x64xf32>
    %192 = arith.addf %169, %191 : vector<2x64xf32>
    %193 = math.tanh %192 : vector<2x64xf32>
    %cst_73 = arith.constant 1.000000e+00 : f32
    %194 = vector.broadcast %cst_73 : f32 to vector<2x64xf32>
    %195 = arith.subf %194, %190 : vector<2x64xf32>
    %196 = arith.mulf %195, %193 : vector<2x64xf32>
    %197 = arith.mulf %190, %165 : vector<2x64xf32>
    %198 = arith.addf %196, %197 : vector<2x64xf32>
    %c8 = arith.constant 8 : index
    %c0_74 = arith.constant 0 : index
    %199 = vector.load %arg16[%c8, %c0_74] : memref<16x64xf32, #tpu.memory_space<vmem>>, vector<2x64xf32>
    tpu.vector_store %arg16[%c8, %c0_74], %198 {strides = array<i32>} : memref<16x64xf32, #tpu.memory_space<vmem>>, vector<2x64xf32>,
    %200 = vector.extract_strided_slice %7 {offsets = [10, 0], sizes = [2, 64], strides = [1, 1]} : vector<16x64xf32> to vector<2x64xf32>
    %201 = vector.extract_strided_slice %14 {offsets = [10, 0], sizes = [2, 64], strides = [1, 1]} : vector<16x64xf32> to vector<2x64xf32>
    %202 = vector.extract_strided_slice %21 {offsets = [10, 0], sizes = [2, 64], strides = [1, 1]} : vector<16x64xf32> to vector<2x64xf32>
    %cst_75 = arith.constant dense<0.000000e+00> : vector<2x64xf32>
    %203 = tpu.matmul %198, %23, %cst_75 {dimension_numbers = #tpu.dot_dimension_numbers<[1], [0], [0], [1], [0, 0, 1, 1], [], []>} : vector<2x64xf32>, vector<64x64xf32>, vector<2x64xf32> -> vector<2x64xf32>
    %204 = vector.broadcast %29 : vector<1x64xf32> to vector<2x64xf32>
    %205 = arith.addf %203, %204 : vector<2x64xf32>
    %cst_76 = arith.constant dense<0.000000e+00> : vector<2x64xf32>
    %206 = tpu.matmul %198, %25, %cst_76 {dimension_numbers = #tpu.dot_dimension_numbers<[1], [0], [0], [1], [0, 0, 1, 1], [], []>} : vector<2x64xf32>, vector<64x64xf32>, vector<2x64xf32> -> vector<2x64xf32>
    %207 = vector.broadcast %31 : vector<1x64xf32> to vector<2x64xf32>
    %208 = arith.addf %206, %207 : vector<2x64xf32>
    %cst_77 = arith.constant dense<0.000000e+00> : vector<2x64xf32>
    %209 = tpu.matmul %198, %27, %cst_77 {dimension_numbers = #tpu.dot_dimension_numbers<[1], [0], [0], [1], [0, 0, 1, 1], [], []>} : vector<2x64xf32>, vector<64x64xf32>, vector<2x64xf32> -> vector<2x64xf32>
    %210 = vector.broadcast %33 : vector<1x64xf32> to vector<2x64xf32>
    %211 = arith.addf %209, %210 : vector<2x64xf32>
    %212 = arith.addf %200, %205 : vector<2x64xf32>
    %213 = arith.negf %212 : vector<2x64xf32>
    %214 = math.exp %213 : vector<2x64xf32>
    %cst_78 = arith.constant 1.000000e+00 : f32
    %215 = vector.broadcast %cst_78 : f32 to vector<2x64xf32>
    %216 = arith.addf %215, %214 : vector<2x64xf32>
    %217 = arith.divf %215, %216 : vector<2x64xf32>
    %218 = arith.addf %201, %208 : vector<2x64xf32>
    %219 = arith.negf %218 : vector<2x64xf32>
    %220 = math.exp %219 : vector<2x64xf32>
    %cst_79 = arith.constant 1.000000e+00 : f32
    %221 = vector.broadcast %cst_79 : f32 to vector<2x64xf32>
    %222 = arith.addf %221, %220 : vector<2x64xf32>
    %223 = arith.divf %221, %222 : vector<2x64xf32>
    %224 = arith.mulf %217, %211 : vector<2x64xf32>
    %225 = arith.addf %202, %224 : vector<2x64xf32>
    %226 = math.tanh %225 : vector<2x64xf32>
    %cst_80 = arith.constant 1.000000e+00 : f32
    %227 = vector.broadcast %cst_80 : f32 to vector<2x64xf32>
    %228 = arith.subf %227, %223 : vector<2x64xf32>
    %229 = arith.mulf %228, %226 : vector<2x64xf32>
    %230 = arith.mulf %223, %198 : vector<2x64xf32>
    %231 = arith.addf %229, %230 : vector<2x64xf32>
    %c10 = arith.constant 10 : index
    %c0_81 = arith.constant 0 : index
    %232 = vector.load %arg16[%c10, %c0_81] : memref<16x64xf32, #tpu.memory_space<vmem>>, vector<2x64xf32>
    tpu.vector_store %arg16[%c10, %c0_81], %231 {strides = array<i32>} : memref<16x64xf32, #tpu.memory_space<vmem>>, vector<2x64xf32>,
    %233 = vector.extract_strided_slice %7 {offsets = [12, 0], sizes = [2, 64], strides = [1, 1]} : vector<16x64xf32> to vector<2x64xf32>
    %234 = vector.extract_strided_slice %14 {offsets = [12, 0], sizes = [2, 64], strides = [1, 1]} : vector<16x64xf32> to vector<2x64xf32>
    %235 = vector.extract_strided_slice %21 {offsets = [12, 0], sizes = [2, 64], strides = [1, 1]} : vector<16x64xf32> to vector<2x64xf32>
    %cst_82 = arith.constant dense<0.000000e+00> : vector<2x64xf32>
    %236 = tpu.matmul %231, %23, %cst_82 {dimension_numbers = #tpu.dot_dimension_numbers<[1], [0], [0], [1], [0, 0, 1, 1], [], []>} : vector<2x64xf32>, vector<64x64xf32>, vector<2x64xf32> -> vector<2x64xf32>
    %237 = vector.broadcast %29 : vector<1x64xf32> to vector<2x64xf32>
    %238 = arith.addf %236, %237 : vector<2x64xf32>
    %cst_83 = arith.constant dense<0.000000e+00> : vector<2x64xf32>
    %239 = tpu.matmul %231, %25, %cst_83 {dimension_numbers = #tpu.dot_dimension_numbers<[1], [0], [0], [1], [0, 0, 1, 1], [], []>} : vector<2x64xf32>, vector<64x64xf32>, vector<2x64xf32> -> vector<2x64xf32>
    %240 = vector.broadcast %31 : vector<1x64xf32> to vector<2x64xf32>
    %241 = arith.addf %239, %240 : vector<2x64xf32>
    %cst_84 = arith.constant dense<0.000000e+00> : vector<2x64xf32>
    %242 = tpu.matmul %231, %27, %cst_84 {dimension_numbers = #tpu.dot_dimension_numbers<[1], [0], [0], [1], [0, 0, 1, 1], [], []>} : vector<2x64xf32>, vector<64x64xf32>, vector<2x64xf32> -> vector<2x64xf32>
    %243 = vector.broadcast %33 : vector<1x64xf32> to vector<2x64xf32>
    %244 = arith.addf %242, %243 : vector<2x64xf32>
    %245 = arith.addf %233, %238 : vector<2x64xf32>
    %246 = arith.negf %245 : vector<2x64xf32>
    %247 = math.exp %246 : vector<2x64xf32>
    %cst_85 = arith.constant 1.000000e+00 : f32
    %248 = vector.broadcast %cst_85 : f32 to vector<2x64xf32>
    %249 = arith.addf %248, %247 : vector<2x64xf32>
    %250 = arith.divf %248, %249 : vector<2x64xf32>
    %251 = arith.addf %234, %241 : vector<2x64xf32>
    %252 = arith.negf %251 : vector<2x64xf32>
    %253 = math.exp %252 : vector<2x64xf32>
    %cst_86 = arith.constant 1.000000e+00 : f32
    %254 = vector.broadcast %cst_86 : f32 to vector<2x64xf32>
    %255 = arith.addf %254, %253 : vector<2x64xf32>
    %256 = arith.divf %254, %255 : vector<2x64xf32>
    %257 = arith.mulf %250, %244 : vector<2x64xf32>
    %258 = arith.addf %235, %257 : vector<2x64xf32>
    %259 = math.tanh %258 : vector<2x64xf32>
    %cst_87 = arith.constant 1.000000e+00 : f32
    %260 = vector.broadcast %cst_87 : f32 to vector<2x64xf32>
    %261 = arith.subf %260, %256 : vector<2x64xf32>
    %262 = arith.mulf %261, %259 : vector<2x64xf32>
    %263 = arith.mulf %256, %231 : vector<2x64xf32>
    %264 = arith.addf %262, %263 : vector<2x64xf32>
    %c12 = arith.constant 12 : index
    %c0_88 = arith.constant 0 : index
    %265 = vector.load %arg16[%c12, %c0_88] : memref<16x64xf32, #tpu.memory_space<vmem>>, vector<2x64xf32>
    tpu.vector_store %arg16[%c12, %c0_88], %264 {strides = array<i32>} : memref<16x64xf32, #tpu.memory_space<vmem>>, vector<2x64xf32>,
    %266 = vector.extract_strided_slice %7 {offsets = [14, 0], sizes = [2, 64], strides = [1, 1]} : vector<16x64xf32> to vector<2x64xf32>
    %267 = vector.extract_strided_slice %14 {offsets = [14, 0], sizes = [2, 64], strides = [1, 1]} : vector<16x64xf32> to vector<2x64xf32>
    %268 = vector.extract_strided_slice %21 {offsets = [14, 0], sizes = [2, 64], strides = [1, 1]} : vector<16x64xf32> to vector<2x64xf32>
    %cst_89 = arith.constant dense<0.000000e+00> : vector<2x64xf32>
    %269 = tpu.matmul %264, %23, %cst_89 {dimension_numbers = #tpu.dot_dimension_numbers<[1], [0], [0], [1], [0, 0, 1, 1], [], []>} : vector<2x64xf32>, vector<64x64xf32>, vector<2x64xf32> -> vector<2x64xf32>
    %270 = vector.broadcast %29 : vector<1x64xf32> to vector<2x64xf32>
    %271 = arith.addf %269, %270 : vector<2x64xf32>
    %cst_90 = arith.constant dense<0.000000e+00> : vector<2x64xf32>
    %272 = tpu.matmul %264, %25, %cst_90 {dimension_numbers = #tpu.dot_dimension_numbers<[1], [0], [0], [1], [0, 0, 1, 1], [], []>} : vector<2x64xf32>, vector<64x64xf32>, vector<2x64xf32> -> vector<2x64xf32>
    %273 = vector.broadcast %31 : vector<1x64xf32> to vector<2x64xf32>
    %274 = arith.addf %272, %273 : vector<2x64xf32>
    %cst_91 = arith.constant dense<0.000000e+00> : vector<2x64xf32>
    %275 = tpu.matmul %264, %27, %cst_91 {dimension_numbers = #tpu.dot_dimension_numbers<[1], [0], [0], [1], [0, 0, 1, 1], [], []>} : vector<2x64xf32>, vector<64x64xf32>, vector<2x64xf32> -> vector<2x64xf32>
    %276 = vector.broadcast %33 : vector<1x64xf32> to vector<2x64xf32>
    %277 = arith.addf %275, %276 : vector<2x64xf32>
    %278 = arith.addf %266, %271 : vector<2x64xf32>
    %279 = arith.negf %278 : vector<2x64xf32>
    %280 = math.exp %279 : vector<2x64xf32>
    %cst_92 = arith.constant 1.000000e+00 : f32
    %281 = vector.broadcast %cst_92 : f32 to vector<2x64xf32>
    %282 = arith.addf %281, %280 : vector<2x64xf32>
    %283 = arith.divf %281, %282 : vector<2x64xf32>
    %284 = arith.addf %267, %274 : vector<2x64xf32>
    %285 = arith.negf %284 : vector<2x64xf32>
    %286 = math.exp %285 : vector<2x64xf32>
    %cst_93 = arith.constant 1.000000e+00 : f32
    %287 = vector.broadcast %cst_93 : f32 to vector<2x64xf32>
    %288 = arith.addf %287, %286 : vector<2x64xf32>
    %289 = arith.divf %287, %288 : vector<2x64xf32>
    %290 = arith.mulf %283, %277 : vector<2x64xf32>
    %291 = arith.addf %268, %290 : vector<2x64xf32>
    %292 = math.tanh %291 : vector<2x64xf32>
    %cst_94 = arith.constant 1.000000e+00 : f32
    %293 = vector.broadcast %cst_94 : f32 to vector<2x64xf32>
    %294 = arith.subf %293, %289 : vector<2x64xf32>
    %295 = arith.mulf %294, %292 : vector<2x64xf32>
    %296 = arith.mulf %289, %264 : vector<2x64xf32>
    %297 = arith.addf %295, %296 : vector<2x64xf32>
    %c14 = arith.constant 14 : index
    %c0_95 = arith.constant 0 : index
    %298 = vector.load %arg16[%c14, %c0_95] : memref<16x64xf32, #tpu.memory_space<vmem>>, vector<2x64xf32>
    tpu.vector_store %arg16[%c14, %c0_95], %297 {strides = array<i32>} : memref<16x64xf32, #tpu.memory_space<vmem>>, vector<2x64xf32>,
    %c0_96 = arith.constant 0 : index
    %c0_97 = arith.constant 0 : index
    %299 = vector.load %arg16[%c0_96, %c0_97] : memref<16x64xf32, #tpu.memory_space<vmem>>, vector<16x64xf32>
    %c0_98 = arith.constant 0 : index
    %c0_99 = arith.constant 0 : index
    %c0_100 = arith.constant 0 : index
    %300 = vector.load %arg5[%c0_98, %c0_99, %c0_100] : memref<3x64x64xf32, #tpu.memory_space<vmem>>, vector<1x64x64xf32>
    %301 = vector.shape_cast %300 : vector<1x64x64xf32> to vector<64x64xf32>
    %cst_101 = arith.constant dense<0.000000e+00> : vector<16x64xf32>
    %302 = tpu.matmul %299, %301, %cst_101 {dimension_numbers = #tpu.dot_dimension_numbers<[1], [0], [0], [1], [0, 0, 1, 1], [], []>} : vector<16x64xf32>, vector<64x64xf32>, vector<16x64xf32> -> vector<16x64xf32>
    %c0_102 = arith.constant 0 : index
    %c0_103 = arith.constant 0 : index
    %c0_104 = arith.constant 0 : index
    %303 = vector.load %arg6[%c0_102, %c0_103, %c0_104] : memref<3x1x64xf32, #tpu.memory_space<vmem>>, vector<1x1x64xf32>
    %304 = vector.shape_cast %303 : vector<1x1x64xf32> to vector<1x64xf32>
    %305 = vector.broadcast %304 : vector<1x64xf32> to vector<16x64xf32>
    %306 = arith.addf %302, %305 : vector<16x64xf32>
    %c1_105 = arith.constant 1 : index
    %c0_106 = arith.constant 0 : index
    %c0_107 = arith.constant 0 : index
    %307 = vector.load %arg5[%c1_105, %c0_106, %c0_107] : memref<3x64x64xf32, #tpu.memory_space<vmem>>, vector<1x64x64xf32>
    %308 = vector.shape_cast %307 : vector<1x64x64xf32> to vector<64x64xf32>
    %cst_108 = arith.constant dense<0.000000e+00> : vector<16x64xf32>
    %309 = tpu.matmul %299, %308, %cst_108 {dimension_numbers = #tpu.dot_dimension_numbers<[1], [0], [0], [1], [0, 0, 1, 1], [], []>} : vector<16x64xf32>, vector<64x64xf32>, vector<16x64xf32> -> vector<16x64xf32>
    %c1_109 = arith.constant 1 : index
    %c0_110 = arith.constant 0 : index
    %c0_111 = arith.constant 0 : index
    %310 = vector.load %arg6[%c1_109, %c0_110, %c0_111] : memref<3x1x64xf32, #tpu.memory_space<vmem>>, vector<1x1x64xf32>
    %311 = vector.shape_cast %310 : vector<1x1x64xf32> to vector<1x64xf32>
    %312 = vector.broadcast %311 : vector<1x64xf32> to vector<16x64xf32>
    %313 = arith.addf %309, %312 : vector<16x64xf32>
    %c2_112 = arith.constant 2 : index
    %c0_113 = arith.constant 0 : index
    %c0_114 = arith.constant 0 : index
    %314 = vector.load %arg5[%c2_112, %c0_113, %c0_114] : memref<3x64x64xf32, #tpu.memory_space<vmem>>, vector<1x64x64xf32>
    %315 = vector.shape_cast %314 : vector<1x64x64xf32> to vector<64x64xf32>
    %cst_115 = arith.constant dense<0.000000e+00> : vector<16x64xf32>
    %316 = tpu.matmul %299, %315, %cst_115 {dimension_numbers = #tpu.dot_dimension_numbers<[1], [0], [0], [1], [0, 0, 1, 1], [], []>} : vector<16x64xf32>, vector<64x64xf32>, vector<16x64xf32> -> vector<16x64xf32>
    %c2_116 = arith.constant 2 : index
    %c0_117 = arith.constant 0 : index
    %c0_118 = arith.constant 0 : index
    %317 = vector.load %arg6[%c2_116, %c0_117, %c0_118] : memref<3x1x64xf32, #tpu.memory_space<vmem>>, vector<1x1x64xf32>
    %318 = vector.shape_cast %317 : vector<1x1x64xf32> to vector<1x64xf32>
    %319 = vector.broadcast %318 : vector<1x64xf32> to vector<16x64xf32>
    %320 = arith.addf %316, %319 : vector<16x64xf32>
    %c0_119 = arith.constant 0 : index
    %c0_120 = arith.constant 0 : index
    %c0_121 = arith.constant 0 : index
    %321 = vector.load %arg7[%c0_119, %c0_120, %c0_121] : memref<3x64x64xf32, #tpu.memory_space<vmem>>, vector<1x64x64xf32>
    %322 = vector.shape_cast %321 : vector<1x64x64xf32> to vector<64x64xf32>
    %c1_122 = arith.constant 1 : index
    %c0_123 = arith.constant 0 : index
    %c0_124 = arith.constant 0 : index
    %323 = vector.load %arg7[%c1_122, %c0_123, %c0_124] : memref<3x64x64xf32, #tpu.memory_space<vmem>>, vector<1x64x64xf32>
    %324 = vector.shape_cast %323 : vector<1x64x64xf32> to vector<64x64xf32>
    %c2_125 = arith.constant 2 : index
    %c0_126 = arith.constant 0 : index
    %c0_127 = arith.constant 0 : index
    %325 = vector.load %arg7[%c2_125, %c0_126, %c0_127] : memref<3x64x64xf32, #tpu.memory_space<vmem>>, vector<1x64x64xf32>
    %326 = vector.shape_cast %325 : vector<1x64x64xf32> to vector<64x64xf32>
    %c0_128 = arith.constant 0 : index
    %c0_129 = arith.constant 0 : index
    %c0_130 = arith.constant 0 : index
    %327 = vector.load %arg8[%c0_128, %c0_129, %c0_130] : memref<3x1x64xf32, #tpu.memory_space<vmem>>, vector<1x1x64xf32>
    %328 = vector.shape_cast %327 : vector<1x1x64xf32> to vector<1x64xf32>
    %c1_131 = arith.constant 1 : index
    %c0_132 = arith.constant 0 : index
    %c0_133 = arith.constant 0 : index
    %329 = vector.load %arg8[%c1_131, %c0_132, %c0_133] : memref<3x1x64xf32, #tpu.memory_space<vmem>>, vector<1x1x64xf32>
    %330 = vector.shape_cast %329 : vector<1x1x64xf32> to vector<1x64xf32>
    %c2_134 = arith.constant 2 : index
    %c0_135 = arith.constant 0 : index
    %c0_136 = arith.constant 0 : index
    %331 = vector.load %arg8[%c2_134, %c0_135, %c0_136] : memref<3x1x64xf32, #tpu.memory_space<vmem>>, vector<1x1x64xf32>
    %332 = vector.shape_cast %331 : vector<1x1x64xf32> to vector<1x64xf32>
    %cst_137 = arith.constant 0.000000e+00 : f32
    %333 = vector.broadcast %cst_137 : f32 to vector<2x64xf32>
    %334 = vector.extract_strided_slice %306 {offsets = [0, 0], sizes = [2, 64], strides = [1, 1]} : vector<16x64xf32> to vector<2x64xf32>
    %335 = vector.extract_strided_slice %313 {offsets = [0, 0], sizes = [2, 64], strides = [1, 1]} : vector<16x64xf32> to vector<2x64xf32>
    %336 = vector.extract_strided_slice %320 {offsets = [0, 0], sizes = [2, 64], strides = [1, 1]} : vector<16x64xf32> to vector<2x64xf32>
    %cst_138 = arith.constant dense<0.000000e+00> : vector<2x64xf32>
    %337 = tpu.matmul %333, %322, %cst_138 {dimension_numbers = #tpu.dot_dimension_numbers<[1], [0], [0], [1], [0, 0, 1, 1], [], []>} : vector<2x64xf32>, vector<64x64xf32>, vector<2x64xf32> -> vector<2x64xf32>
    %338 = vector.broadcast %328 : vector<1x64xf32> to vector<2x64xf32>
    %339 = arith.addf %337, %338 : vector<2x64xf32>
    %cst_139 = arith.constant dense<0.000000e+00> : vector<2x64xf32>
    %340 = tpu.matmul %333, %324, %cst_139 {dimension_numbers = #tpu.dot_dimension_numbers<[1], [0], [0], [1], [0, 0, 1, 1], [], []>} : vector<2x64xf32>, vector<64x64xf32>, vector<2x64xf32> -> vector<2x64xf32>
    %341 = vector.broadcast %330 : vector<1x64xf32> to vector<2x64xf32>
    %342 = arith.addf %340, %341 : vector<2x64xf32>
    %cst_140 = arith.constant dense<0.000000e+00> : vector<2x64xf32>
    %343 = tpu.matmul %333, %326, %cst_140 {dimension_numbers = #tpu.dot_dimension_numbers<[1], [0], [0], [1], [0, 0, 1, 1], [], []>} : vector<2x64xf32>, vector<64x64xf32>, vector<2x64xf32> -> vector<2x64xf32>
    %344 = vector.broadcast %332 : vector<1x64xf32> to vector<2x64xf32>
    %345 = arith.addf %343, %344 : vector<2x64xf32>
    %346 = arith.addf %334, %339 : vector<2x64xf32>
    %347 = arith.negf %346 : vector<2x64xf32>
    %348 = math.exp %347 : vector<2x64xf32>
    %cst_141 = arith.constant 1.000000e+00 : f32
    %349 = vector.broadcast %cst_141 : f32 to vector<2x64xf32>
    %350 = arith.addf %349, %348 : vector<2x64xf32>
    %351 = arith.divf %349, %350 : vector<2x64xf32>
    %352 = arith.addf %335, %342 : vector<2x64xf32>
    %353 = arith.negf %352 : vector<2x64xf32>
    %354 = math.exp %353 : vector<2x64xf32>
    %cst_142 = arith.constant 1.000000e+00 : f32
    %355 = vector.broadcast %cst_142 : f32 to vector<2x64xf32>
    %356 = arith.addf %355, %354 : vector<2x64xf32>
    %357 = arith.divf %355, %356 : vector<2x64xf32>
    %358 = arith.mulf %351, %345 : vector<2x64xf32>
    %359 = arith.addf %336, %358 : vector<2x64xf32>
    %360 = math.tanh %359 : vector<2x64xf32>
    %cst_143 = arith.constant 1.000000e+00 : f32
    %361 = vector.broadcast %cst_143 : f32 to vector<2x64xf32>
    %362 = arith.subf %361, %357 : vector<2x64xf32>
    %363 = arith.mulf %362, %360 : vector<2x64xf32>
    %364 = arith.mulf %357, %333 : vector<2x64xf32>
    %365 = arith.addf %363, %364 : vector<2x64xf32>
    %366 = vector.extract_strided_slice %306 {offsets = [2, 0], sizes = [2, 64], strides = [1, 1]} : vector<16x64xf32> to vector<2x64xf32>
    %367 = vector.extract_strided_slice %313 {offsets = [2, 0], sizes = [2, 64], strides = [1, 1]} : vector<16x64xf32> to vector<2x64xf32>
    %368 = vector.extract_strided_slice %320 {offsets = [2, 0], sizes = [2, 64], strides = [1, 1]} : vector<16x64xf32> to vector<2x64xf32>
    %cst_144 = arith.constant dense<0.000000e+00> : vector<2x64xf32>
    %369 = tpu.matmul %365, %322, %cst_144 {dimension_numbers = #tpu.dot_dimension_numbers<[1], [0], [0], [1], [0, 0, 1, 1], [], []>} : vector<2x64xf32>, vector<64x64xf32>, vector<2x64xf32> -> vector<2x64xf32>
    %370 = vector.broadcast %328 : vector<1x64xf32> to vector<2x64xf32>
    %371 = arith.addf %369, %370 : vector<2x64xf32>
    %cst_145 = arith.constant dense<0.000000e+00> : vector<2x64xf32>
    %372 = tpu.matmul %365, %324, %cst_145 {dimension_numbers = #tpu.dot_dimension_numbers<[1], [0], [0], [1], [0, 0, 1, 1], [], []>} : vector<2x64xf32>, vector<64x64xf32>, vector<2x64xf32> -> vector<2x64xf32>
    %373 = vector.broadcast %330 : vector<1x64xf32> to vector<2x64xf32>
    %374 = arith.addf %372, %373 : vector<2x64xf32>
    %cst_146 = arith.constant dense<0.000000e+00> : vector<2x64xf32>
    %375 = tpu.matmul %365, %326, %cst_146 {dimension_numbers = #tpu.dot_dimension_numbers<[1], [0], [0], [1], [0, 0, 1, 1], [], []>} : vector<2x64xf32>, vector<64x64xf32>, vector<2x64xf32> -> vector<2x64xf32>
    %376 = vector.broadcast %332 : vector<1x64xf32> to vector<2x64xf32>
    %377 = arith.addf %375, %376 : vector<2x64xf32>
    %378 = arith.addf %366, %371 : vector<2x64xf32>
    %379 = arith.negf %378 : vector<2x64xf32>
    %380 = math.exp %379 : vector<2x64xf32>
    %cst_147 = arith.constant 1.000000e+00 : f32
    %381 = vector.broadcast %cst_147 : f32 to vector<2x64xf32>
    %382 = arith.addf %381, %380 : vector<2x64xf32>
    %383 = arith.divf %381, %382 : vector<2x64xf32>
    %384 = arith.addf %367, %374 : vector<2x64xf32>
    %385 = arith.negf %384 : vector<2x64xf32>
    %386 = math.exp %385 : vector<2x64xf32>
    %cst_148 = arith.constant 1.000000e+00 : f32
    %387 = vector.broadcast %cst_148 : f32 to vector<2x64xf32>
    %388 = arith.addf %387, %386 : vector<2x64xf32>
    %389 = arith.divf %387, %388 : vector<2x64xf32>
    %390 = arith.mulf %383, %377 : vector<2x64xf32>
    %391 = arith.addf %368, %390 : vector<2x64xf32>
    %392 = math.tanh %391 : vector<2x64xf32>
    %cst_149 = arith.constant 1.000000e+00 : f32
    %393 = vector.broadcast %cst_149 : f32 to vector<2x64xf32>
    %394 = arith.subf %393, %389 : vector<2x64xf32>
    %395 = arith.mulf %394, %392 : vector<2x64xf32>
    %396 = arith.mulf %389, %365 : vector<2x64xf32>
    %397 = arith.addf %395, %396 : vector<2x64xf32>
    %398 = vector.extract_strided_slice %306 {offsets = [4, 0], sizes = [2, 64], strides = [1, 1]} : vector<16x64xf32> to vector<2x64xf32>
    %399 = vector.extract_strided_slice %313 {offsets = [4, 0], sizes = [2, 64], strides = [1, 1]} : vector<16x64xf32> to vector<2x64xf32>
    %400 = vector.extract_strided_slice %320 {offsets = [4, 0], sizes = [2, 64], strides = [1, 1]} : vector<16x64xf32> to vector<2x64xf32>
    %cst_150 = arith.constant dense<0.000000e+00> : vector<2x64xf32>
    %401 = tpu.matmul %397, %322, %cst_150 {dimension_numbers = #tpu.dot_dimension_numbers<[1], [0], [0], [1], [0, 0, 1, 1], [], []>} : vector<2x64xf32>, vector<64x64xf32>, vector<2x64xf32> -> vector<2x64xf32>
    %402 = vector.broadcast %328 : vector<1x64xf32> to vector<2x64xf32>
    %403 = arith.addf %401, %402 : vector<2x64xf32>
    %cst_151 = arith.constant dense<0.000000e+00> : vector<2x64xf32>
    %404 = tpu.matmul %397, %324, %cst_151 {dimension_numbers = #tpu.dot_dimension_numbers<[1], [0], [0], [1], [0, 0, 1, 1], [], []>} : vector<2x64xf32>, vector<64x64xf32>, vector<2x64xf32> -> vector<2x64xf32>
    %405 = vector.broadcast %330 : vector<1x64xf32> to vector<2x64xf32>
    %406 = arith.addf %404, %405 : vector<2x64xf32>
    %cst_152 = arith.constant dense<0.000000e+00> : vector<2x64xf32>
    %407 = tpu.matmul %397, %326, %cst_152 {dimension_numbers = #tpu.dot_dimension_numbers<[1], [0], [0], [1], [0, 0, 1, 1], [], []>} : vector<2x64xf32>, vector<64x64xf32>, vector<2x64xf32> -> vector<2x64xf32>
    %408 = vector.broadcast %332 : vector<1x64xf32> to vector<2x64xf32>
    %409 = arith.addf %407, %408 : vector<2x64xf32>
    %410 = arith.addf %398, %403 : vector<2x64xf32>
    %411 = arith.negf %410 : vector<2x64xf32>
    %412 = math.exp %411 : vector<2x64xf32>
    %cst_153 = arith.constant 1.000000e+00 : f32
    %413 = vector.broadcast %cst_153 : f32 to vector<2x64xf32>
    %414 = arith.addf %413, %412 : vector<2x64xf32>
    %415 = arith.divf %413, %414 : vector<2x64xf32>
    %416 = arith.addf %399, %406 : vector<2x64xf32>
    %417 = arith.negf %416 : vector<2x64xf32>
    %418 = math.exp %417 : vector<2x64xf32>
    %cst_154 = arith.constant 1.000000e+00 : f32
    %419 = vector.broadcast %cst_154 : f32 to vector<2x64xf32>
    %420 = arith.addf %419, %418 : vector<2x64xf32>
    %421 = arith.divf %419, %420 : vector<2x64xf32>
    %422 = arith.mulf %415, %409 : vector<2x64xf32>
    %423 = arith.addf %400, %422 : vector<2x64xf32>
    %424 = math.tanh %423 : vector<2x64xf32>
    %cst_155 = arith.constant 1.000000e+00 : f32
    %425 = vector.broadcast %cst_155 : f32 to vector<2x64xf32>
    %426 = arith.subf %425, %421 : vector<2x64xf32>
    %427 = arith.mulf %426, %424 : vector<2x64xf32>
    %428 = arith.mulf %421, %397 : vector<2x64xf32>
    %429 = arith.addf %427, %428 : vector<2x64xf32>
    %430 = vector.extract_strided_slice %306 {offsets = [6, 0], sizes = [2, 64], strides = [1, 1]} : vector<16x64xf32> to vector<2x64xf32>
    %431 = vector.extract_strided_slice %313 {offsets = [6, 0], sizes = [2, 64], strides = [1, 1]} : vector<16x64xf32> to vector<2x64xf32>
    %432 = vector.extract_strided_slice %320 {offsets = [6, 0], sizes = [2, 64], strides = [1, 1]} : vector<16x64xf32> to vector<2x64xf32>
    %cst_156 = arith.constant dense<0.000000e+00> : vector<2x64xf32>
    %433 = tpu.matmul %429, %322, %cst_156 {dimension_numbers = #tpu.dot_dimension_numbers<[1], [0], [0], [1], [0, 0, 1, 1], [], []>} : vector<2x64xf32>, vector<64x64xf32>, vector<2x64xf32> -> vector<2x64xf32>
    %434 = vector.broadcast %328 : vector<1x64xf32> to vector<2x64xf32>
    %435 = arith.addf %433, %434 : vector<2x64xf32>
    %cst_157 = arith.constant dense<0.000000e+00> : vector<2x64xf32>
    %436 = tpu.matmul %429, %324, %cst_157 {dimension_numbers = #tpu.dot_dimension_numbers<[1], [0], [0], [1], [0, 0, 1, 1], [], []>} : vector<2x64xf32>, vector<64x64xf32>, vector<2x64xf32> -> vector<2x64xf32>
    %437 = vector.broadcast %330 : vector<1x64xf32> to vector<2x64xf32>
    %438 = arith.addf %436, %437 : vector<2x64xf32>
    %cst_158 = arith.constant dense<0.000000e+00> : vector<2x64xf32>
    %439 = tpu.matmul %429, %326, %cst_158 {dimension_numbers = #tpu.dot_dimension_numbers<[1], [0], [0], [1], [0, 0, 1, 1], [], []>} : vector<2x64xf32>, vector<64x64xf32>, vector<2x64xf32> -> vector<2x64xf32>
    %440 = vector.broadcast %332 : vector<1x64xf32> to vector<2x64xf32>
    %441 = arith.addf %439, %440 : vector<2x64xf32>
    %442 = arith.addf %430, %435 : vector<2x64xf32>
    %443 = arith.negf %442 : vector<2x64xf32>
    %444 = math.exp %443 : vector<2x64xf32>
    %cst_159 = arith.constant 1.000000e+00 : f32
    %445 = vector.broadcast %cst_159 : f32 to vector<2x64xf32>
    %446 = arith.addf %445, %444 : vector<2x64xf32>
    %447 = arith.divf %445, %446 : vector<2x64xf32>
    %448 = arith.addf %431, %438 : vector<2x64xf32>
    %449 = arith.negf %448 : vector<2x64xf32>
    %450 = math.exp %449 : vector<2x64xf32>
    %cst_160 = arith.constant 1.000000e+00 : f32
    %451 = vector.broadcast %cst_160 : f32 to vector<2x64xf32>
    %452 = arith.addf %451, %450 : vector<2x64xf32>
    %453 = arith.divf %451, %452 : vector<2x64xf32>
    %454 = arith.mulf %447, %441 : vector<2x64xf32>
    %455 = arith.addf %432, %454 : vector<2x64xf32>
    %456 = math.tanh %455 : vector<2x64xf32>
    %cst_161 = arith.constant 1.000000e+00 : f32
    %457 = vector.broadcast %cst_161 : f32 to vector<2x64xf32>
    %458 = arith.subf %457, %453 : vector<2x64xf32>
    %459 = arith.mulf %458, %456 : vector<2x64xf32>
    %460 = arith.mulf %453, %429 : vector<2x64xf32>
    %461 = arith.addf %459, %460 : vector<2x64xf32>
    %462 = vector.extract_strided_slice %306 {offsets = [8, 0], sizes = [2, 64], strides = [1, 1]} : vector<16x64xf32> to vector<2x64xf32>
    %463 = vector.extract_strided_slice %313 {offsets = [8, 0], sizes = [2, 64], strides = [1, 1]} : vector<16x64xf32> to vector<2x64xf32>
    %464 = vector.extract_strided_slice %320 {offsets = [8, 0], sizes = [2, 64], strides = [1, 1]} : vector<16x64xf32> to vector<2x64xf32>
    %cst_162 = arith.constant dense<0.000000e+00> : vector<2x64xf32>
    %465 = tpu.matmul %461, %322, %cst_162 {dimension_numbers = #tpu.dot_dimension_numbers<[1], [0], [0], [1], [0, 0, 1, 1], [], []>} : vector<2x64xf32>, vector<64x64xf32>, vector<2x64xf32> -> vector<2x64xf32>
    %466 = vector.broadcast %328 : vector<1x64xf32> to vector<2x64xf32>
    %467 = arith.addf %465, %466 : vector<2x64xf32>
    %cst_163 = arith.constant dense<0.000000e+00> : vector<2x64xf32>
    %468 = tpu.matmul %461, %324, %cst_163 {dimension_numbers = #tpu.dot_dimension_numbers<[1], [0], [0], [1], [0, 0, 1, 1], [], []>} : vector<2x64xf32>, vector<64x64xf32>, vector<2x64xf32> -> vector<2x64xf32>
    %469 = vector.broadcast %330 : vector<1x64xf32> to vector<2x64xf32>
    %470 = arith.addf %468, %469 : vector<2x64xf32>
    %cst_164 = arith.constant dense<0.000000e+00> : vector<2x64xf32>
    %471 = tpu.matmul %461, %326, %cst_164 {dimension_numbers = #tpu.dot_dimension_numbers<[1], [0], [0], [1], [0, 0, 1, 1], [], []>} : vector<2x64xf32>, vector<64x64xf32>, vector<2x64xf32> -> vector<2x64xf32>
    %472 = vector.broadcast %332 : vector<1x64xf32> to vector<2x64xf32>
    %473 = arith.addf %471, %472 : vector<2x64xf32>
    %474 = arith.addf %462, %467 : vector<2x64xf32>
    %475 = arith.negf %474 : vector<2x64xf32>
    %476 = math.exp %475 : vector<2x64xf32>
    %cst_165 = arith.constant 1.000000e+00 : f32
    %477 = vector.broadcast %cst_165 : f32 to vector<2x64xf32>
    %478 = arith.addf %477, %476 : vector<2x64xf32>
    %479 = arith.divf %477, %478 : vector<2x64xf32>
    %480 = arith.addf %463, %470 : vector<2x64xf32>
    %481 = arith.negf %480 : vector<2x64xf32>
    %482 = math.exp %481 : vector<2x64xf32>
    %cst_166 = arith.constant 1.000000e+00 : f32
    %483 = vector.broadcast %cst_166 : f32 to vector<2x64xf32>
    %484 = arith.addf %483, %482 : vector<2x64xf32>
    %485 = arith.divf %483, %484 : vector<2x64xf32>
    %486 = arith.mulf %479, %473 : vector<2x64xf32>
    %487 = arith.addf %464, %486 : vector<2x64xf32>
    %488 = math.tanh %487 : vector<2x64xf32>
    %cst_167 = arith.constant 1.000000e+00 : f32
    %489 = vector.broadcast %cst_167 : f32 to vector<2x64xf32>
    %490 = arith.subf %489, %485 : vector<2x64xf32>
    %491 = arith.mulf %490, %488 : vector<2x64xf32>
    %492 = arith.mulf %485, %461 : vector<2x64xf32>
    %493 = arith.addf %491, %492 : vector<2x64xf32>
    %494 = vector.extract_strided_slice %306 {offsets = [10, 0], sizes = [2, 64], strides = [1, 1]} : vector<16x64xf32> to vector<2x64xf32>
    %495 = vector.extract_strided_slice %313 {offsets = [10, 0], sizes = [2, 64], strides = [1, 1]} : vector<16x64xf32> to vector<2x64xf32>
    %496 = vector.extract_strided_slice %320 {offsets = [10, 0], sizes = [2, 64], strides = [1, 1]} : vector<16x64xf32> to vector<2x64xf32>
    %cst_168 = arith.constant dense<0.000000e+00> : vector<2x64xf32>
    %497 = tpu.matmul %493, %322, %cst_168 {dimension_numbers = #tpu.dot_dimension_numbers<[1], [0], [0], [1], [0, 0, 1, 1], [], []>} : vector<2x64xf32>, vector<64x64xf32>, vector<2x64xf32> -> vector<2x64xf32>
    %498 = vector.broadcast %328 : vector<1x64xf32> to vector<2x64xf32>
    %499 = arith.addf %497, %498 : vector<2x64xf32>
    %cst_169 = arith.constant dense<0.000000e+00> : vector<2x64xf32>
    %500 = tpu.matmul %493, %324, %cst_169 {dimension_numbers = #tpu.dot_dimension_numbers<[1], [0], [0], [1], [0, 0, 1, 1], [], []>} : vector<2x64xf32>, vector<64x64xf32>, vector<2x64xf32> -> vector<2x64xf32>
    %501 = vector.broadcast %330 : vector<1x64xf32> to vector<2x64xf32>
    %502 = arith.addf %500, %501 : vector<2x64xf32>
    %cst_170 = arith.constant dense<0.000000e+00> : vector<2x64xf32>
    %503 = tpu.matmul %493, %326, %cst_170 {dimension_numbers = #tpu.dot_dimension_numbers<[1], [0], [0], [1], [0, 0, 1, 1], [], []>} : vector<2x64xf32>, vector<64x64xf32>, vector<2x64xf32> -> vector<2x64xf32>
    %504 = vector.broadcast %332 : vector<1x64xf32> to vector<2x64xf32>
    %505 = arith.addf %503, %504 : vector<2x64xf32>
    %506 = arith.addf %494, %499 : vector<2x64xf32>
    %507 = arith.negf %506 : vector<2x64xf32>
    %508 = math.exp %507 : vector<2x64xf32>
    %cst_171 = arith.constant 1.000000e+00 : f32
    %509 = vector.broadcast %cst_171 : f32 to vector<2x64xf32>
    %510 = arith.addf %509, %508 : vector<2x64xf32>
    %511 = arith.divf %509, %510 : vector<2x64xf32>
    %512 = arith.addf %495, %502 : vector<2x64xf32>
    %513 = arith.negf %512 : vector<2x64xf32>
    %514 = math.exp %513 : vector<2x64xf32>
    %cst_172 = arith.constant 1.000000e+00 : f32
    %515 = vector.broadcast %cst_172 : f32 to vector<2x64xf32>
    %516 = arith.addf %515, %514 : vector<2x64xf32>
    %517 = arith.divf %515, %516 : vector<2x64xf32>
    %518 = arith.mulf %511, %505 : vector<2x64xf32>
    %519 = arith.addf %496, %518 : vector<2x64xf32>
    %520 = math.tanh %519 : vector<2x64xf32>
    %cst_173 = arith.constant 1.000000e+00 : f32
    %521 = vector.broadcast %cst_173 : f32 to vector<2x64xf32>
    %522 = arith.subf %521, %517 : vector<2x64xf32>
    %523 = arith.mulf %522, %520 : vector<2x64xf32>
    %524 = arith.mulf %517, %493 : vector<2x64xf32>
    %525 = arith.addf %523, %524 : vector<2x64xf32>
    %526 = vector.extract_strided_slice %306 {offsets = [12, 0], sizes = [2, 64], strides = [1, 1]} : vector<16x64xf32> to vector<2x64xf32>
    %527 = vector.extract_strided_slice %313 {offsets = [12, 0], sizes = [2, 64], strides = [1, 1]} : vector<16x64xf32> to vector<2x64xf32>
    %528 = vector.extract_strided_slice %320 {offsets = [12, 0], sizes = [2, 64], strides = [1, 1]} : vector<16x64xf32> to vector<2x64xf32>
    %cst_174 = arith.constant dense<0.000000e+00> : vector<2x64xf32>
    %529 = tpu.matmul %525, %322, %cst_174 {dimension_numbers = #tpu.dot_dimension_numbers<[1], [0], [0], [1], [0, 0, 1, 1], [], []>} : vector<2x64xf32>, vector<64x64xf32>, vector<2x64xf32> -> vector<2x64xf32>
    %530 = vector.broadcast %328 : vector<1x64xf32> to vector<2x64xf32>
    %531 = arith.addf %529, %530 : vector<2x64xf32>
    %cst_175 = arith.constant dense<0.000000e+00> : vector<2x64xf32>
    %532 = tpu.matmul %525, %324, %cst_175 {dimension_numbers = #tpu.dot_dimension_numbers<[1], [0], [0], [1], [0, 0, 1, 1], [], []>} : vector<2x64xf32>, vector<64x64xf32>, vector<2x64xf32> -> vector<2x64xf32>
    %533 = vector.broadcast %330 : vector<1x64xf32> to vector<2x64xf32>
    %534 = arith.addf %532, %533 : vector<2x64xf32>
    %cst_176 = arith.constant dense<0.000000e+00> : vector<2x64xf32>
    %535 = tpu.matmul %525, %326, %cst_176 {dimension_numbers = #tpu.dot_dimension_numbers<[1], [0], [0], [1], [0, 0, 1, 1], [], []>} : vector<2x64xf32>, vector<64x64xf32>, vector<2x64xf32> -> vector<2x64xf32>
    %536 = vector.broadcast %332 : vector<1x64xf32> to vector<2x64xf32>
    %537 = arith.addf %535, %536 : vector<2x64xf32>
    %538 = arith.addf %526, %531 : vector<2x64xf32>
    %539 = arith.negf %538 : vector<2x64xf32>
    %540 = math.exp %539 : vector<2x64xf32>
    %cst_177 = arith.constant 1.000000e+00 : f32
    %541 = vector.broadcast %cst_177 : f32 to vector<2x64xf32>
    %542 = arith.addf %541, %540 : vector<2x64xf32>
    %543 = arith.divf %541, %542 : vector<2x64xf32>
    %544 = arith.addf %527, %534 : vector<2x64xf32>
    %545 = arith.negf %544 : vector<2x64xf32>
    %546 = math.exp %545 : vector<2x64xf32>
    %cst_178 = arith.constant 1.000000e+00 : f32
    %547 = vector.broadcast %cst_178 : f32 to vector<2x64xf32>
    %548 = arith.addf %547, %546 : vector<2x64xf32>
    %549 = arith.divf %547, %548 : vector<2x64xf32>
    %550 = arith.mulf %543, %537 : vector<2x64xf32>
    %551 = arith.addf %528, %550 : vector<2x64xf32>
    %552 = math.tanh %551 : vector<2x64xf32>
    %cst_179 = arith.constant 1.000000e+00 : f32
    %553 = vector.broadcast %cst_179 : f32 to vector<2x64xf32>
    %554 = arith.subf %553, %549 : vector<2x64xf32>
    %555 = arith.mulf %554, %552 : vector<2x64xf32>
    %556 = arith.mulf %549, %525 : vector<2x64xf32>
    %557 = arith.addf %555, %556 : vector<2x64xf32>
    %558 = vector.extract_strided_slice %306 {offsets = [14, 0], sizes = [2, 64], strides = [1, 1]} : vector<16x64xf32> to vector<2x64xf32>
    %559 = vector.extract_strided_slice %313 {offsets = [14, 0], sizes = [2, 64], strides = [1, 1]} : vector<16x64xf32> to vector<2x64xf32>
    %560 = vector.extract_strided_slice %320 {offsets = [14, 0], sizes = [2, 64], strides = [1, 1]} : vector<16x64xf32> to vector<2x64xf32>
    %cst_180 = arith.constant dense<0.000000e+00> : vector<2x64xf32>
    %561 = tpu.matmul %557, %322, %cst_180 {dimension_numbers = #tpu.dot_dimension_numbers<[1], [0], [0], [1], [0, 0, 1, 1], [], []>} : vector<2x64xf32>, vector<64x64xf32>, vector<2x64xf32> -> vector<2x64xf32>
    %562 = vector.broadcast %328 : vector<1x64xf32> to vector<2x64xf32>
    %563 = arith.addf %561, %562 : vector<2x64xf32>
    %cst_181 = arith.constant dense<0.000000e+00> : vector<2x64xf32>
    %564 = tpu.matmul %557, %324, %cst_181 {dimension_numbers = #tpu.dot_dimension_numbers<[1], [0], [0], [1], [0, 0, 1, 1], [], []>} : vector<2x64xf32>, vector<64x64xf32>, vector<2x64xf32> -> vector<2x64xf32>
    %565 = vector.broadcast %330 : vector<1x64xf32> to vector<2x64xf32>
    %566 = arith.addf %564, %565 : vector<2x64xf32>
    %cst_182 = arith.constant dense<0.000000e+00> : vector<2x64xf32>
    %567 = tpu.matmul %557, %326, %cst_182 {dimension_numbers = #tpu.dot_dimension_numbers<[1], [0], [0], [1], [0, 0, 1, 1], [], []>} : vector<2x64xf32>, vector<64x64xf32>, vector<2x64xf32> -> vector<2x64xf32>
    %568 = vector.broadcast %332 : vector<1x64xf32> to vector<2x64xf32>
    %569 = arith.addf %567, %568 : vector<2x64xf32>
    %570 = arith.addf %558, %563 : vector<2x64xf32>
    %571 = arith.negf %570 : vector<2x64xf32>
    %572 = math.exp %571 : vector<2x64xf32>
    %cst_183 = arith.constant 1.000000e+00 : f32
    %573 = vector.broadcast %cst_183 : f32 to vector<2x64xf32>
    %574 = arith.addf %573, %572 : vector<2x64xf32>
    %575 = arith.divf %573, %574 : vector<2x64xf32>
    %576 = arith.addf %559, %566 : vector<2x64xf32>
    %577 = arith.negf %576 : vector<2x64xf32>
    %578 = math.exp %577 : vector<2x64xf32>
    %cst_184 = arith.constant 1.000000e+00 : f32
    %579 = vector.broadcast %cst_184 : f32 to vector<2x64xf32>
    %580 = arith.addf %579, %578 : vector<2x64xf32>
    %581 = arith.divf %579, %580 : vector<2x64xf32>
    %582 = arith.mulf %575, %569 : vector<2x64xf32>
    %583 = arith.addf %560, %582 : vector<2x64xf32>
    %584 = math.tanh %583 : vector<2x64xf32>
    %cst_185 = arith.constant 1.000000e+00 : f32
    %585 = vector.broadcast %cst_185 : f32 to vector<2x64xf32>
    %586 = arith.subf %585, %581 : vector<2x64xf32>
    %587 = arith.mulf %586, %584 : vector<2x64xf32>
    %588 = arith.mulf %581, %557 : vector<2x64xf32>
    %589 = arith.addf %587, %588 : vector<2x64xf32>
    %c0_186 = arith.constant 0 : index
    %c0_187 = arith.constant 0 : index
    %590 = vector.load %arg9[%c0_186, %c0_187] : memref<64x128xf32, #tpu.memory_space<vmem>>, vector<64x128xf32>
    %cst_188 = arith.constant dense<0.000000e+00> : vector<2x128xf32>
    %591 = tpu.matmul %589, %590, %cst_188 {dimension_numbers = #tpu.dot_dimension_numbers<[1], [0], [0], [1], [0, 0, 1, 1], [], []>} : vector<2x64xf32>, vector<64x128xf32>, vector<2x128xf32> -> vector<2x128xf32>
    %c0_189 = arith.constant 0 : index
    %c0_190 = arith.constant 0 : index
    %592 = vector.load %arg10[%c0_189, %c0_190] : memref<1x128xf32, #tpu.memory_space<vmem>>, vector<1x128xf32>
    %593 = vector.broadcast %592 : vector<1x128xf32> to vector<2x128xf32>
    %594 = arith.addf %591, %593 : vector<2x128xf32>
    %cst_191 = arith.constant 0.000000e+00 : f32
    %595 = vector.broadcast %cst_191 : f32 to vector<2x128xf32>
    %596 = arith.maximumf %594, %595 : vector<2x128xf32>
    %c0_192 = arith.constant 0 : index
    %c0_193 = arith.constant 0 : index
    %597 = vector.load %arg11[%c0_192, %c0_193] : memref<128x128xf32, #tpu.memory_space<vmem>>, vector<128x128xf32>
    %cst_194 = arith.constant dense<0.000000e+00> : vector<2x128xf32>
    %598 = tpu.matmul %596, %597, %cst_194 {dimension_numbers = #tpu.dot_dimension_numbers<[1], [0], [0], [1], [0, 0, 1, 1], [], []>} : vector<2x128xf32>, vector<128x128xf32>, vector<2x128xf32> -> vector<2x128xf32>
    %c0_195 = arith.constant 0 : index
    %c0_196 = arith.constant 0 : index
    %599 = vector.load %arg12[%c0_195, %c0_196] : memref<1x128xf32, #tpu.memory_space<vmem>>, vector<1x128xf32>
    %600 = vector.broadcast %599 : vector<1x128xf32> to vector<2x128xf32>
    %601 = arith.addf %598, %600 : vector<2x128xf32>
    %cst_197 = arith.constant 0.000000e+00 : f32
    %602 = vector.broadcast %cst_197 : f32 to vector<2x128xf32>
    %603 = arith.maximumf %601, %602 : vector<2x128xf32>
    %c0_198 = arith.constant 0 : index
    %c0_199 = arith.constant 0 : index
    %604 = vector.load %arg13[%c0_198, %c0_199] : memref<128x3xf32, #tpu.memory_space<vmem>>, vector<128x3xf32>
    %cst_200 = arith.constant dense<0.000000e+00> : vector<2x3xf32>
    %605 = tpu.matmul %603, %604, %cst_200 {dimension_numbers = #tpu.dot_dimension_numbers<[1], [0], [0], [1], [0, 0, 1, 1], [], []>} : vector<2x128xf32>, vector<128x3xf32>, vector<2x3xf32> -> vector<2x3xf32>
    %c0_201 = arith.constant 0 : index
    %c0_202 = arith.constant 0 : index
    %606 = vector.load %arg14[%c0_201, %c0_202] : memref<1x3xf32, #tpu.memory_space<vmem>>, vector<1x3xf32>
    %607 = vector.broadcast %606 : vector<1x3xf32> to vector<2x3xf32>
    %608 = arith.addf %605, %607 : vector<2x3xf32>
    %cst_203 = arith.constant dense<0xFF800000> : vector<2xf32>
    %609 = vector.multi_reduction <maximumf>, %608, %cst_203 [1] : vector<2x3xf32> to vector<2xf32>
    %610 = vector.shape_cast %609 : vector<2xf32> to vector<2x1xf32>
    %611 = vector.broadcast %610 : vector<2x1xf32> to vector<2x3xf32>
    %612 = arith.subf %608, %611 : vector<2x3xf32>
    %613 = math.exp %612 : vector<2x3xf32>
    %cst_204 = arith.constant dense<0.000000e+00> : vector<2xf32>
    %614 = vector.multi_reduction <add>, %613, %cst_204 [1] : vector<2x3xf32> to vector<2xf32>
    %615 = vector.shape_cast %614 : vector<2xf32> to vector<2x1xf32>
    %616 = vector.broadcast %615 : vector<2x1xf32> to vector<2x3xf32>
    %617 = arith.divf %613, %616 : vector<2x3xf32>
    %c0_205 = arith.constant 0 : index
    %c0_206 = arith.constant 0 : index
    %618 = vector.load %arg15[%c0_205, %c0_206] : memref<2x3xf32, #tpu.memory_space<vmem>>, vector<2x3xf32>
    tpu.vector_store %arg15[%c0_205, %c0_206], %617 {strides = array<i32>} : memref<2x3xf32, #tpu.memory_space<vmem>>, vector<2x3xf32>,
    return
  }
}

</mosaic_0001>

<llo_original>
// kernel: my_rnn_forward.1
$region0: #{my_rnn_forward.1}
  #allocation0 [shape = 'u32[]', space=smem, size = 0x4, offset = 0x4, fixed_abs, tag = 'smem constant byte address 0x4 - core index']
  #allocation1 [shape = 'u32[144,128]{1,0:T(1,128)}', space=vmem, size = 0x12000, scoped, tag = 'internal scratch']
  #allocation2 [shape = 'f32[16,64]{1,0:T(8,128)}', space=vmem, size = 0x2000, scoped, tag = 'scratch operand']
  %s0 = inlined_call_operand.vmem [shape: f32[16,40], index: 0, kind: input, shape index: {}]
  %s1 = inlined_call_operand.hbm [shape: f32[3,40,64], index: 1, kind: input, shape index: {}]
  %s2 = inlined_call_operand.vmem [shape: f32[3,1,64], index: 2, kind: input, shape index: {}]
  %s3 = inlined_call_operand.vmem [shape: f32[3,64,64], index: 3, kind: input, shape index: {}]
  %s4 = inlined_call_operand.hbm [shape: f32[3,1,64], index: 4, kind: input, shape index: {}]
  %s5 = inlined_call_operand.hbm [shape: f32[3,64,64], index: 5, kind: input, shape index: {}]
  %s6 = inlined_call_operand.vmem [shape: f32[3,1,64], index: 6, kind: input, shape index: {}]
  %s7 = inlined_call_operand.hbm [shape: f32[3,64,64], index: 7, kind: input, shape index: {}]
  %s8 = inlined_call_operand.vmem [shape: f32[3,1,64], index: 8, kind: input, shape index: {}]
  %s9 = inlined_call_operand.hbm [shape: f32[64,128], index: 9, kind: input, shape index: {}]
  %s10 = inlined_call_operand.hbm [shape: f32[1,128], index: 10, kind: input, shape index: {}]
  %s11 = inlined_call_operand.hbm [shape: f32[128,128], index: 11, kind: input, shape index: {}]
  %s12 = inlined_call_operand.hbm [shape: f32[1,128], index: 12, kind: input, shape index: {}]
  %s13 = inlined_call_operand.vmem [shape: f32[128,3], index: 13, kind: input, shape index: {}]
  %s14 = inlined_call_operand.vmem [shape: f32[1,3], index: 14, kind: input, shape index: {}]
  %s15 = inlined_call_operand.hbm [shape: f32[2,3], index: 15, kind: output, shape index: {}]
  %s16 = sld [smem:[#allocation0]]
  $region102: #{my_rnn_forward.1} parent=0
    _
  %s18 = ssub.s32 1, %s16
  %s19 = scalar_select 0, %s18, %s16
  $region1: #{my_rnn_forward.1} parent=0
    #allocation3 [shape = 'u8[61440]{0}', space=vmem, size = 0xf000, scoped, tag = 'input window, operand 1, single buffered']
    #allocation4 [shape = 's32[1]{0}', space=sflag, size = 0x4, scoped, tag = 'scoped memory for my_rnn_forward.1']
    #allocation5 [shape = 's32[1]{0}', space=sflag, size = 0x4, scoped, tag = 'scoped memory for my_rnn_forward.1']
    #allocation6 [shape = 'u8[1536]{0}', space=vmem, size = 0x800, scoped, tag = 'input window, operand 4, single buffered']
    #allocation7 [shape = 's32[1]{0}', space=sflag, size = 0x4, scoped, tag = 'scoped memory for my_rnn_forward.1']
    #allocation8 [shape = 'u8[98304]{0}', space=vmem, size = 0x18000, scoped, tag = 'input window, operand 5, single buffered']
    #allocation9 [shape = 'u8[98304]{0}', space=vmem, size = 0x18000, scoped, tag = 'input window, operand 7, single buffered']
    #allocation10 [shape = 's32[1]{0}', space=sflag, size = 0x4, scoped, tag = 'scoped memory for my_rnn_forward.1']
    #allocation11 [shape = 'u8[32768]{0}', space=vmem, size = 0x8000, scoped, tag = 'input window, operand 9, single buffered']
    #allocation12 [shape = 'u8[512]{0}', space=vmem, size = 0x400, scoped, tag = 'input window, operand 10, single buffered']
    #allocation13 [shape = 's32[1]{0}', space=sflag, size = 0x4, scoped, tag = 'scoped memory for my_rnn_forward.1']
    #allocation14 [shape = 'u8[65536]{0}', space=vmem, size = 0x10000, scoped, tag = 'input window, operand 11, single buffered']
    #allocation15 [shape = 'u8[512]{0}', space=vmem, size = 0x400, scoped, tag = 'input window, operand 12, single buffered']
    #allocation16 [shape = 's32[1]{0}', space=sflag, size = 0x4, scoped, tag = 'scoped memory for my_rnn_forward.1']
    #allocation17 [shape = 'u8[1024]{0}', space=vmem, size = 0x400, scoped, tag = 'output window, operand 0, single buffered']
    %20 = vsyncpa [#allocation4], 0
    %21 = vsyncpa [#allocation7], 0
    %22 = vsyncpa [#allocation10], 0
    %23 = vsyncpa [#allocation13], 0
    %24 = vsyncpa [#allocation16], 0
    %25 = vsyncpa [#allocation5], 0
    // Predicated region
    $region2: #{my_rnn_forward.1} parent=1 // pred_check
      _
    $region3: #{my_rnn_forward.1} parent=1 // pred_check_branch
      %27 = sbr.rel (0) target = $region5
    $region4: #{my_rnn_forward.1} parent=1 // pred_region
      _
    $region5: #{my_rnn_forward.1} parent=1 // pred_fallthru
      _
    // Predicated region
    $region6: #{my_rnn_forward.1} parent=1 // pred_check
      _
    $region7: #{my_rnn_forward.1} parent=1 // pred_check_branch
      %29 = sbr.rel (0) target = $region9
    $region8: #{my_rnn_forward.1} parent=1 // pred_region
      %s31 = ssub.s32 1920, 1920
      %32 = vsyncadd [#allocation4], %s31
      %s33 = sshll.u32 [#allocation3], 4
      %s34 = int_to_ptr.vmem [resolvable:$true] %s33
      %39 = dma.hbm_to_vmem [thread:$0]  %s1, 1920, %s34, [#allocation4], 128, 128, 8
    $region9: #{my_rnn_forward.1} parent=1 // pred_fallthru
      _
    // Predicated region
    $region10: #{my_rnn_forward.1} parent=1 // pred_check
      _
    $region11: #{my_rnn_forward.1} parent=1 // pred_check_branch
      %41 = sbr.rel (0) target = $region13
    $region12: #{my_rnn_forward.1} parent=1 // pred_region
      _
    $region13: #{my_rnn_forward.1} parent=1 // pred_fallthru
      _
    // Predicated region
    $region14: #{my_rnn_forward.1} parent=1 // pred_check
      _
    $region15: #{my_rnn_forward.1} parent=1 // pred_check_branch
      %43 = sbr.rel (0) target = $region17
    $region16: #{my_rnn_forward.1} parent=1 // pred_region
      _
    $region17: #{my_rnn_forward.1} parent=1 // pred_fallthru
      _
    // Predicated region
    $region18: #{my_rnn_forward.1} parent=1 // pred_check
      _
    $region19: #{my_rnn_forward.1} parent=1 // pred_check_branch
      %45 = sbr.rel (0) target = $region21
    $region20: #{my_rnn_forward.1} parent=1 // pred_region
      %s47 = ssub.s32 48, 48
      %48 = vsyncadd [#allocation7], %s47
      %s49 = sshll.u32 [#allocation6], 4
      %s50 = int_to_ptr.vmem [resolvable:$true] %s49
      %55 = dma.hbm_to_vmem [thread:$0]  %s4, 48, %s50, [#allocation7], 16, 16, 1
    $region21: #{my_rnn_forward.1} parent=1 // pred_fallthru
      _
    // Predicated region
    $region22: #{my_rnn_forward.1} parent=1 // pred_check
      _
    $region23: #{my_rnn_forward.1} parent=1 // pred_check_branch
      %57 = sbr.rel (0) target = $region25
    $region24: #{my_rnn_forward.1} parent=1 // pred_region
      %s59 = ssub.s32 3072, 3072
      %60 = vsyncadd [#allocation7], %s59
      %s61 = sshll.u32 [#allocation8], 4
      %s62 = int_to_ptr.vmem [resolvable:$true] %s61
      %67 = dma.hbm_to_vmem [thread:$0]  %s5, 3072, %s62, [#allocation7], 128, 128, 8
    $region25: #{my_rnn_forward.1} parent=1 // pred_fallthru
      _
    // Predicated region
    $region26: #{my_rnn_forward.1} parent=1 // pred_check
      _
    $region27: #{my_rnn_forward.1} parent=1 // pred_check_branch
      %69 = sbr.rel (0) target = $region29
    $region28: #{my_rnn_forward.1} parent=1 // pred_region
      _
    $region29: #{my_rnn_forward.1} parent=1 // pred_fallthru
      _
    // Predicated region
    $region30: #{my_rnn_forward.1} parent=1 // pred_check
      _
    $region31: #{my_rnn_forward.1} parent=1 // pred_check_branch
      %71 = sbr.rel (0) target = $region33
    $region32: #{my_rnn_forward.1} parent=1 // pred_region
      %s73 = ssub.s32 3072, 3072
      %74 = vsyncadd [#allocation10], %s73
      %s75 = sshll.u32 [#allocation9], 4
      %s76 = int_to_ptr.vmem [resolvable:$true] %s75
      %81 = dma.hbm_to_vmem [thread:$0]  %s7, 3072, %s76, [#allocation10], 128, 128, 8
    $region33: #{my_rnn_forward.1} parent=1 // pred_fallthru
      _
    // Predicated region
    $region34: #{my_rnn_forward.1} parent=1 // pred_check
      _
    $region35: #{my_rnn_forward.1} parent=1 // pred_check_branch
      %83 = sbr.rel (0) target = $region37
    $region36: #{my_rnn_forward.1} parent=1 // pred_region
      _
    $region37: #{my_rnn_forward.1} parent=1 // pred_fallthru
      _
    // Predicated region
    $region38: #{my_rnn_forward.1} parent=1 // pred_check
      _
    $region39: #{my_rnn_forward.1} parent=1 // pred_check_branch
      %85 = sbr.rel (0) target = $region41
    $region40: #{my_rnn_forward.1} parent=1 // pred_region
      %s87 = ssub.s32 1024, 1024
      %88 = vsyncadd [#allocation10], %s87
      %s89 = sshll.u32 [#allocation11], 4
      %s90 = int_to_ptr.vmem [resolvable:$true] %s89
      %95 = dma.hbm_to_vmem [thread:$0]  %s9, 1024, %s90, [#allocation10], 128, 128, 8
    $region41: #{my_rnn_forward.1} parent=1 // pred_fallthru
      _
    // Predicated region
    $region42: #{my_rnn_forward.1} parent=1 // pred_check
      _
    $region43: #{my_rnn_forward.1} parent=1 // pred_check_branch
      %97 = sbr.rel (0) target = $region45
    $region44: #{my_rnn_forward.1} parent=1 // pred_region
      %s99 = ssub.s32 16, 16
      %100 = vsyncadd [#allocation13], %s99
      %s102 = sshll.u32 [#allocation12], 4
      %s103 = int_to_ptr.vmem [resolvable:$true] %s102
      %105 = dma.hbm_to_vmem [thread:$0]  %s10, 16, %s103, [#allocation13]
    $region45: #{my_rnn_forward.1} parent=1 // pred_fallthru
      _
    // Predicated region
    $region46: #{my_rnn_forward.1} parent=1 // pred_check
      _
    $region47: #{my_rnn_forward.1} parent=1 // pred_check_branch
      %107 = sbr.rel (0) target = $region49
    $region48: #{my_rnn_forward.1} parent=1 // pred_region
      %s109 = ssub.s32 2048, 2048
      %110 = vsyncadd [#allocation13], %s109
      %s111 = sshll.u32 [#allocation14], 4
      %s112 = int_to_ptr.vmem [resolvable:$true] %s111
      %117 = dma.hbm_to_vmem [thread:$0]  %s11, 2048, %s112, [#allocation13], 128, 128, 8
    $region49: #{my_rnn_forward.1} parent=1 // pred_fallthru
      _
    // Predicated region
    $region50: #{my_rnn_forward.1} parent=1 // pred_check
      _
    $region51: #{my_rnn_forward.1} parent=1 // pred_check_branch
      %119 = sbr.rel (0) target = $region53
    $region52: #{my_rnn_forward.1} parent=1 // pred_region
      %s121 = ssub.s32 16, 16
      %122 = vsyncadd [#allocation16], %s121
      %s124 = sshll.u32 [#allocation15], 4
      %s125 = int_to_ptr.vmem [resolvable:$true] %s124
      %127 = dma.hbm_to_vmem [thread:$0]  %s12, 16, %s125, [#allocation16]
    $region53: #{my_rnn_forward.1} parent=1 // pred_fallthru
      _
    // Predicated region
    $region54: #{my_rnn_forward.1} parent=1 // pred_check
      _
    $region55: #{my_rnn_forward.1} parent=1 // pred_check_branch
      %129 = sbr.rel (0) target = $region57
    $region56: #{my_rnn_forward.1} parent=1 // pred_region
      _
    $region57: #{my_rnn_forward.1} parent=1 // pred_fallthru
      _
    // Predicated region
    $region58: #{my_rnn_forward.1} parent=1 // pred_check
      _
    $region59: #{my_rnn_forward.1} parent=1 // pred_check_branch
      %131 = sbr.rel (0) target = $region61
    $region60: #{my_rnn_forward.1} parent=1 // pred_region
      _
    $region61: #{my_rnn_forward.1} parent=1 // pred_fallthru
      _
    // Predicated region
    $region62: #{my_rnn_forward.1} parent=1 // pred_check
      _
    $region63: #{my_rnn_forward.1} parent=1 // pred_check_branch
      %133 = sbr.rel (0) target = $region65
    $region64: #{my_rnn_forward.1} parent=1 // pred_region
      %134 = dma.done [#allocation4], 1920
    $region65: #{my_rnn_forward.1} parent=1 // pred_fallthru
      _
    // Predicated region
    $region66: #{my_rnn_forward.1} parent=1 // pred_check
      _
    $region67: #{my_rnn_forward.1} parent=1 // pred_check_branch
      %136 = sbr.rel (0) target = $region69
    $region68: #{my_rnn_forward.1} parent=1 // pred_region
      %137 = dma.done [#allocation7], 48
    $region69: #{my_rnn_forward.1} parent=1 // pred_fallthru
      _
    // Predicated region
    $region70: #{my_rnn_forward.1} parent=1 // pred_check
      _
    $region71: #{my_rnn_forward.1} parent=1 // pred_check_branch
      %139 = sbr.rel (0) target = $region73
    $region72: #{my_rnn_forward.1} parent=1 // pred_region
      %140 = dma.done [#allocation7], 3072
    $region73: #{my_rnn_forward.1} parent=1 // pred_fallthru
      _
    // Predicated region
    $region74: #{my_rnn_forward.1} parent=1 // pred_check
      _
    $region75: #{my_rnn_forward.1} parent=1 // pred_check_branch
      %142 = sbr.rel (0) target = $region77
    $region76: #{my_rnn_forward.1} parent=1 // pred_region
      %143 = dma.done [#allocation10], 3072
    $region77: #{my_rnn_forward.1} parent=1 // pred_fallthru
      _
    // Predicated region
    $region78: #{my_rnn_forward.1} parent=1 // pred_check
      _
    $region79: #{my_rnn_forward.1} parent=1 // pred_check_branch
      %145 = sbr.rel (0) target = $region81
    $region80: #{my_rnn_forward.1} parent=1 // pred_region
      %146 = dma.done [#allocation10], 1024
    $region81: #{my_rnn_forward.1} parent=1 // pred_fallthru
      _
    // Predicated region
    $region82: #{my_rnn_forward.1} parent=1 // pred_check
      _
    $region83: #{my_rnn_forward.1} parent=1 // pred_check_branch
      %148 = sbr.rel (0) target = $region85
    $region84: #{my_rnn_forward.1} parent=1 // pred_region
      %149 = dma.done [#allocation13], 16
    $region85: #{my_rnn_forward.1} parent=1 // pred_fallthru
      _
    // Predicated region
    $region86: #{my_rnn_forward.1} parent=1 // pred_check
      _
    $region87: #{my_rnn_forward.1} parent=1 // pred_check_branch
      %151 = sbr.rel (0) target = $region89
    $region88: #{my_rnn_forward.1} parent=1 // pred_region
      %152 = dma.done [#allocation13], 2048
    $region89: #{my_rnn_forward.1} parent=1 // pred_fallthru
      _
    // Predicated region
    $region90: #{my_rnn_forward.1} parent=1 // pred_check
      _
    $region91: #{my_rnn_forward.1} parent=1 // pred_check_branch
      %154 = sbr.rel (0) target = $region93
    $region92: #{my_rnn_forward.1} parent=1 // pred_region
      %155 = dma.done [#allocation16], 16
    $region93: #{my_rnn_forward.1} parent=1 // pred_fallthru
      _
    %v156 = vld [vmem:[%s0] sm:$0xff]
    %v157 = vld [vmem:[%s0 + $0x8] sm:$0xff]
    %v158 = vld [vmem:[#allocation3] sm:$0xff]
    %v159 = vld [vmem:[#allocation3 + $0x8] sm:$0xff]
    %v160 = vld [vmem:[#allocation3 + $0x10] sm:$0xff]
    %v161 = vld [vmem:[#allocation3 + $0x18] sm:$0xff]
    %v162 = vld [vmem:[#allocation3 + $0x20] sm:$0xff]
    %v163 = vld [vmem:[%s2] sm:$0x1]
    %v165 = vlaneseq
    %v166 = vshrl.u32 %v165, 7
    %v167 = vsub.s32 0, %v166
    %v168 = vrot.slane %v163, %v167
    %vm170 = vcmask 326656
    %v172 = vsel %vm170, %v156, 0
    %v175 = vsel %vm170, %v157, 0
    %177 = vmatprep.subr.mxu0 0.0
    %178 = vmatpush1.msra.mxu0 %v158
    %179 = vmatprep.subr.mxu0 0.0
    %180 = vmatpush1.msra.mxu0 %v159
    %181 = vmatprep.subr.mxu0 0.0
    %182 = vmatpush1.msra.mxu0 %v160
    %183 = vmatprep.subr.mxu0 0.0
    %184 = vmatpush1.msra.mxu0 %v161
    %185 = vmatprep.subr.mxu0 0.0
    %186 = vmatpush1.msra.mxu0 %v162
    %187 = vmatprep.subr.mxu0 0.0
    %188 = vmatpush1.msra.mxu0 0.0
    %189 = vmatprep.subr.mxu0 0.0
    %190 = vmatpush1.msra.mxu0 0.0
    %191 = vmatprep.subr.mxu0 0.0
    %192 = vmatpush1.msra.mxu0 0.0
    %193 = vmatprep.subr.mxu0 0.0
    %194 = vmatpush1.msra.mxu0 0.0
    %195 = vmatprep.subr.mxu0 0.0
    %196 = vmatpush1.msra.mxu0 0.0
    %197 = vmatprep.subr.mxu0 0.0
    %198 = vmatpush1.msra.mxu0 0.0
    %199 = vmatprep.subr.mxu0 0.0
    %200 = vmatpush1.msra.mxu0 0.0
    %201 = vmatprep.subr.mxu0 0.0
    %202 = vmatpush1.msra.mxu0 0.0
    %203 = vmatprep.subr.mxu0 0.0
    %204 = vmatpush1.msra.mxu0 0.0
    %205 = vmatprep.subr.mxu0 0.0
    %206 = vmatpush1.msra.mxu0 0.0
    %207 = vmatprep.subr.mxu0 0.0
    %208 = vmatpush1.msra.mxu0 0.0
    %209 = vmatprep.subr.mxu0 0.0
    %210 = vmatpush1.msra.mxu0 0.0
    %211 = vmatprep.subr.mxu0 0.0
    %212 = vmatpush1.msra.mxu0 0.0
    %213 = vmatprep.subr.mxu0 0.0
    %214 = vmatpush1.msra.mxu0 0.0
    %215 = vmatprep.subr.mxu0 0.0
    %216 = vmatpush1.msra.mxu0 0.0
    %217 = vmatprep.subr.mxu0 0.0
    %218 = vmatpush1.msra.mxu0 0.0
    %219 = vmatprep.subr.mxu0 0.0
    %220 = vmatpush1.msra.mxu0 0.0
    %221 = vmatprep.subr.mxu0 0.0
    %222 = vmatpush1.msra.mxu0 0.0
    %223 = vmatprep.subr.mxu0 0.0
    %224 = vmatpush1.msra.mxu0 0.0
    %225 = vmatprep.subr.mxu0 0.0
    %226 = vmatpush1.msra.mxu0 0.0
    %227 = vmatprep.subr.mxu0 0.0
    %228 = vmatpush1.msra.mxu0 0.0
    %229 = vmatprep.subr.mxu0 0.0
    %230 = vmatpush1.msra.mxu0 0.0
    %231 = vmatprep.subr.mxu0 0.0
    %232 = vmatpush1.msra.mxu0 0.0
    %233 = vmatprep.subr.mxu0 0.0
    %234 = vmatpush1.msra.mxu0 0.0
    %235 = vmatprep.subr.mxu0 0.0
    %236 = vmatpush1.msra.mxu0 0.0
    %237 = vmatprep.subr.mxu0 0.0
    %238 = vmatpush1.msra.mxu0 0.0
    %239 = vmatprep.subr.mxu0 0.0
    %240 = vmatpush1.msra.mxu0 0.0
    %241 = vmatprep.mubr.f32.mxu0 0.0
    %242 = vmatmul.mubr.f32.gmra.mrb[0].mxu0 %v172
    %v243 = vpop.f32.mrb[0].mxu0
    %v244 = vadd.f32 %v168, %v243
    %v245 = vpop.f32.mrb[0].mxu0
    %246 = vmatprep.mubr.f32.mxu0 0.0
    %247 = vmatmul.mubr.f32.gmra.mrb[0].mxu0 %v175
    %v248 = vpop.f32.mrb[0].mxu0
    %v249 = vadd.f32 %v168, %v248
    %v250 = vpop.f32.mrb[0].mxu0
    %251 = vdwg.mxu0
    %s252 = scalar_lea.vmem [#allocation3], 40
    %v253 = vld [vmem:[%s252] sm:$0xff]
    %v254 = vld [vmem:[%s252 + $0x8] sm:$0xff]
    %v255 = vld [vmem:[%s252 + $0x10] sm:$0xff]
    %v256 = vld [vmem:[%s252 + $0x18] sm:$0xff]
    %v257 = vld [vmem:[%s252 + $0x20] sm:$0xff]
    %s258 = scalar_lea.vmem %s2, 1
    %v259 = vld [vmem:[%s258] sm:$0x1]
    %v261 = vlaneseq
    %v262 = vshrl.u32 %v261, 7
    %v263 = vsub.s32 0, %v262
    %v264 = vrot.slane %v259, %v263
    %266 = vmatprep.subr.mxu0 0.0
    %267 = vmatpush1.msra.mxu0 %v253
    %268 = vmatprep.subr.mxu0 0.0
    %269 = vmatpush1.msra.mxu0 %v254
    %270 = vmatprep.subr.mxu0 0.0
    %271 = vmatpush1.msra.mxu0 %v255
    %272 = vmatprep.subr.mxu0 0.0
    %273 = vmatpush1.msra.mxu0 %v256
    %274 = vmatprep.subr.mxu0 0.0
    %275 = vmatpush1.msra.mxu0 %v257
    %276 = vmatprep.subr.mxu0 0.0
    %277 = vmatpush1.msra.mxu0 0.0
    %278 = vmatprep.subr.mxu0 0.0
    %279 = vmatpush1.msra.mxu0 0.0
    %280 = vmatprep.subr.mxu0 0.0
    %281 = vmatpush1.msra.mxu0 0.0
    %282 = vmatprep.subr.mxu0 0.0
    %283 = vmatpush1.msra.mxu0 0.0
    %284 = vmatprep.subr.mxu0 0.0
    %285 = vmatpush1.msra.mxu0 0.0
    %286 = vmatprep.subr.mxu0 0.0
    %287 = vmatpush1.msra.mxu0 0.0
    %288 = vmatprep.subr.mxu0 0.0
    %289 = vmatpush1.msra.mxu0 0.0
    %290 = vmatprep.subr.mxu0 0.0
    %291 = vmatpush1.msra.mxu0 0.0
    %292 = vmatprep.subr.mxu0 0.0
    %293 = vmatpush1.msra.mxu0 0.0
    %294 = vmatprep.subr.mxu0 0.0
    %295 = vmatpush1.msra.mxu0 0.0
    %296 = vmatprep.subr.mxu0 0.0
    %297 = vmatpush1.msra.mxu0 0.0
    %298 = vmatprep.subr.mxu0 0.0
    %299 = vmatpush1.msra.mxu0 0.0
    %300 = vmatprep.subr.mxu0 0.0
    %301 = vmatpush1.msra.mxu0 0.0
    %302 = vmatprep.subr.mxu0 0.0
    %303 = vmatpush1.msra.mxu0 0.0
    %304 = vmatprep.subr.mxu0 0.0
    %305 = vmatpush1.msra.mxu0 0.0
    %306 = vmatprep.subr.mxu0 0.0
    %307 = vmatpush1.msra.mxu0 0.0
    %308 = vmatprep.subr.mxu0 0.0
    %309 = vmatpush1.msra.mxu0 0.0
    %310 = vmatprep.subr.mxu0 0.0
    %311 = vmatpush1.msra.mxu0 0.0
    %312 = vmatprep.subr.mxu0 0.0
    %313 = vmatpush1.msra.mxu0 0.0
    %314 = vmatprep.subr.mxu0 0.0
    %315 = vmatpush1.msra.mxu0 0.0
    %316 = vmatprep.subr.mxu0 0.0
    %317 = vmatpush1.msra.mxu0 0.0
    %318 = vmatprep.subr.mxu0 0.0
    %319 = vmatpush1.msra.mxu0 0.0
    %320 = vmatprep.subr.mxu0 0.0
    %321 = vmatpush1.msra.mxu0 0.0
    %322 = vmatprep.subr.mxu0 0.0
    %323 = vmatpush1.msra.mxu0 0.0
    %324 = vmatprep.subr.mxu0 0.0
    %325 = vmatpush1.msra.mxu0 0.0
    %326 = vmatprep.subr.mxu0 0.0
    %327 = vmatpush1.msra.mxu0 0.0
    %328 = vmatprep.subr.mxu0 0.0
    %329 = vmatpush1.msra.mxu0 0.0
    %330 = vmatprep.mubr.f32.mxu0 0.0
    %331 = vmatmul.mubr.f32.gmra.mrb[0].mxu0 %v172
    %v332 = vpop.f32.mrb[0].mxu0
    %v333 = vadd.f32 %v264, %v332
    %v334 = vpop.f32.mrb[0].mxu0
    %335 = vmatprep.mubr.f32.mxu0 0.0
    %336 = vmatmul.mubr.f32.gmra.mrb[0].mxu0 %v175
    %v337 = vpop.f32.mrb[0].mxu0
    %v338 = vadd.f32 %v264, %v337
    %v339 = vpop.f32.mrb[0].mxu0
    %340 = vdwg.mxu0
    %s341 = scalar_lea.vmem [#allocation3], 80
    %v342 = vld [vmem:[%s341] sm:$0xff]
    %v343 = vld [vmem:[%s341 + $0x8] sm:$0xff]
    %v344 = vld [vmem:[%s341 + $0x10] sm:$0xff]
    %v345 = vld [vmem:[%s341 + $0x18] sm:$0xff]
    %v346 = vld [vmem:[%s341 + $0x20] sm:$0xff]
    %s347 = scalar_lea.vmem %s2, 2
    %v348 = vld [vmem:[%s347] sm:$0x1]
    %v350 = vlaneseq
    %v351 = vshrl.u32 %v350, 7
    %v352 = vsub.s32 0, %v351
    %v353 = vrot.slane %v348, %v352
    %355 = vmatprep.subr.mxu0 0.0
    %356 = vmatpush1.msra.mxu0 %v342
    %357 = vmatprep.subr.mxu0 0.0
    %358 = vmatpush1.msra.mxu0 %v343
    %359 = vmatprep.subr.mxu0 0.0
    %360 = vmatpush1.msra.mxu0 %v344
    %361 = vmatprep.subr.mxu0 0.0
    %362 = vmatpush1.msra.mxu0 %v345
    %363 = vmatprep.subr.mxu0 0.0
    %364 = vmatpush1.msra.mxu0 %v346
    %365 = vmatprep.subr.mxu0 0.0
    %366 = vmatpush1.msra.mxu0 0.0
    %367 = vmatprep.subr.mxu0 0.0
    %368 = vmatpush1.msra.mxu0 0.0
    %369 = vmatprep.subr.mxu0 0.0
    %370 = vmatpush1.msra.mxu0 0.0
    %371 = vmatprep.subr.mxu0 0.0
    %372 = vmatpush1.msra.mxu0 0.0
    %373 = vmatprep.subr.mxu0 0.0
    %374 = vmatpush1.msra.mxu0 0.0
    %375 = vmatprep.subr.mxu0 0.0
    %376 = vmatpush1.msra.mxu0 0.0
    %377 = vmatprep.subr.mxu0 0.0
    %378 = vmatpush1.msra.mxu0 0.0
    %379 = vmatprep.subr.mxu0 0.0
    %380 = vmatpush1.msra.mxu0 0.0
    %381 = vmatprep.subr.mxu0 0.0
    %382 = vmatpush1.msra.mxu0 0.0
    %383 = vmatprep.subr.mxu0 0.0
    %384 = vmatpush1.msra.mxu0 0.0
    %385 = vmatprep.subr.mxu0 0.0
    %386 = vmatpush1.msra.mxu0 0.0
    %387 = vmatprep.subr.mxu0 0.0
    %388 = vmatpush1.msra.mxu0 0.0
    %389 = vmatprep.subr.mxu0 0.0
    %390 = vmatpush1.msra.mxu0 0.0
    %391 = vmatprep.subr.mxu0 0.0
    %392 = vmatpush1.msra.mxu0 0.0
    %393 = vmatprep.subr.mxu0 0.0
    %394 = vmatpush1.msra.mxu0 0.0
    %395 = vmatprep.subr.mxu0 0.0
    %396 = vmatpush1.msra.mxu0 0.0
    %397 = vmatprep.subr.mxu0 0.0
    %398 = vmatpush1.msra.mxu0 0.0
    %399 = vmatprep.subr.mxu0 0.0
    %400 = vmatpush1.msra.mxu0 0.0
    %401 = vmatprep.subr.mxu0 0.0
    %402 = vmatpush1.msra.mxu0 0.0
    %403 = vmatprep.subr.mxu0 0.0
    %404 = vmatpush1.msra.mxu0 0.0
    %405 = vmatprep.subr.mxu0 0.0
    %406 = vmatpush1.msra.mxu0 0.0
    %407 = vmatprep.subr.mxu0 0.0
    %408 = vmatpush1.msra.mxu0 0.0
    %409 = vmatprep.subr.mxu0 0.0
    %410 = vmatpush1.msra.mxu0 0.0
    %411 = vmatprep.subr.mxu0 0.0
    %412 = vmatpush1.msra.mxu0 0.0
    %413 = vmatprep.subr.mxu0 0.0
    %414 = vmatpush1.msra.mxu0 0.0
    %415 = vmatprep.subr.mxu0 0.0
    %416 = vmatpush1.msra.mxu0 0.0
    %417 = vmatprep.subr.mxu0 0.0
    %418 = vmatpush1.msra.mxu0 0.0
    %419 = vmatprep.mubr.f32.mxu0 0.0
    %420 = vmatmul.mubr.f32.gmra.mrb[0].mxu0 %v172
    %v421 = vpop.f32.mrb[0].mxu0
    %v422 = vadd.f32 %v353, %v421
    %v423 = vpop.f32.mrb[0].mxu0
    %424 = vmatprep.mubr.f32.mxu0 0.0
    %425 = vmatmul.mubr.f32.gmra.mrb[0].mxu0 %v175
    %v426 = vpop.f32.mrb[0].mxu0
    %v427 = vadd.f32 %v353, %v426
    %v428 = vpop.f32.mrb[0].mxu0
    %429 = vdwg.mxu0
    %v430 = vld [vmem:[%s3] sm:$0xff]
    %v431 = vld [vmem:[%s3 + $0x8] sm:$0xff]
    %v432 = vld [vmem:[%s3 + $0x10] sm:$0xff]
    %v433 = vld [vmem:[%s3 + $0x18] sm:$0xff]
    %v434 = vld [vmem:[%s3 + $0x20] sm:$0xff]
    %v435 = vld [vmem:[%s3 + $0x28] sm:$0xff]
    %v436 = vld [vmem:[%s3 + $0x30] sm:$0xff]
    %v437 = vld [vmem:[%s3 + $0x38] sm:$0xff]
    %s438 = scalar_lea.vmem %s3, 64
    %v439 = vld [vmem:[%s438] sm:$0xff]
    %v440 = vld [vmem:[%s438 + $0x8] sm:$0xff]
    %v441 = vld [vmem:[%s438 + $0x10] sm:$0xff]
    %v442 = vld [vmem:[%s438 + $0x18] sm:$0xff]
    %v443 = vld [vmem:[%s438 + $0x20] sm:$0xff]
    %v444 = vld [vmem:[%s438 + $0x28] sm:$0xff]
    %v445 = vld [vmem:[%s438 + $0x30] sm:$0xff]
    %v446 = vld [vmem:[%s438 + $0x38] sm:$0xff]
    %s447 = scalar_lea.vmem %s3, 128
    %v448 = vld [vmem:[%s447] sm:$0xff]
    %v449 = vld [vmem:[%s447 + $0x8] sm:$0xff]
    %v450 = vld [vmem:[%s447 + $0x10] sm:$0xff]
    %v451 = vld [vmem:[%s447 + $0x18] sm:$0xff]
    %v452 = vld [vmem:[%s447 + $0x20] sm:$0xff]
    %v453 = vld [vmem:[%s447 + $0x28] sm:$0xff]
    %v454 = vld [vmem:[%s447 + $0x30] sm:$0xff]
    %v455 = vld [vmem:[%s447 + $0x38] sm:$0xff]
    %v456 = vld [vmem:[#allocation6] sm:$0x1]
    %s457 = scalar_lea.vmem [#allocation6], 1
    %v458 = vld [vmem:[%s457] sm:$0x1]
    %s459 = scalar_lea.vmem [#allocation6], 2
    %v460 = vld [vmem:[%s459] sm:$0x1]
    %v462 = vlaneseq
    %v463 = vshrl.u32 %v462, 7
    %v464 = vsub.s32 0, %v463
    %v465 = vrot.slane %v456, %v464
    %vm467 = vcmask 523264
    %v469 = vsel %vm467, 0.0, 0
    %471 = vmatprep.subr.mxu0 0.0
    %472 = vmatpush1.msra.mxu0 %v430
    %473 = vmatprep.subr.mxu0 0.0
    %474 = vmatpush1.msra.mxu0 %v431
    %475 = vmatprep.subr.mxu0 0.0
    %476 = vmatpush1.msra.mxu0 %v432
    %477 = vmatprep.subr.mxu0 0.0
    %478 = vmatpush1.msra.mxu0 %v433
    %479 = vmatprep.subr.mxu0 0.0
    %480 = vmatpush1.msra.mxu0 %v434
    %481 = vmatprep.subr.mxu0 0.0
    %482 = vmatpush1.msra.mxu0 %v435
    %483 = vmatprep.subr.mxu0 0.0
    %484 = vmatpush1.msra.mxu0 %v436
    %485 = vmatprep.subr.mxu0 0.0
    %486 = vmatpush1.msra.mxu0 %v437
    %487 = vmatprep.subr.mxu0 0.0
    %488 = vmatpush1.msra.mxu0 0.0
    %489 = vmatprep.subr.mxu0 0.0
    %490 = vmatpush1.msra.mxu0 0.0
    %491 = vmatprep.subr.mxu0 0.0
    %492 = vmatpush1.msra.mxu0 0.0
    %493 = vmatprep.subr.mxu0 0.0
    %494 = vmatpush1.msra.mxu0 0.0
    %495 = vmatprep.subr.mxu0 0.0
    %496 = vmatpush1.msra.mxu0 0.0
    %497 = vmatprep.subr.mxu0 0.0
    %498 = vmatpush1.msra.mxu0 0.0
    %499 = vmatprep.subr.mxu0 0.0
    %500 = vmatpush1.msra.mxu0 0.0
    %501 = vmatprep.subr.mxu0 0.0
    %502 = vmatpush1.msra.mxu0 0.0
    %503 = vmatprep.subr.mxu0 0.0
    %504 = vmatpush1.msra.mxu0 0.0
    %505 = vmatprep.subr.mxu0 0.0
    %506 = vmatpush1.msra.mxu0 0.0
    %507 = vmatprep.subr.mxu0 0.0
    %508 = vmatpush1.msra.mxu0 0.0
    %509 = vmatprep.subr.mxu0 0.0
    %510 = vmatpush1.msra.mxu0 0.0
    %511 = vmatprep.subr.mxu0 0.0
    %512 = vmatpush1.msra.mxu0 0.0
    %513 = vmatprep.subr.mxu0 0.0
    %514 = vmatpush1.msra.mxu0 0.0
    %515 = vmatprep.subr.mxu0 0.0
    %516 = vmatpush1.msra.mxu0 0.0
    %517 = vmatprep.subr.mxu0 0.0
    %518 = vmatpush1.msra.mxu0 0.0
    %519 = vmatprep.subr.mxu0 0.0
    %520 = vmatpush1.msra.mxu0 0.0
    %521 = vmatprep.subr.mxu0 0.0
    %522 = vmatpush1.msra.mxu0 0.0
    %523 = vmatprep.subr.mxu0 0.0
    %524 = vmatpush1.msra.mxu0 0.0
    %525 = vmatprep.subr.mxu0 0.0
    %526 = vmatpush1.msra.mxu0 0.0
    %527 = vmatprep.subr.mxu0 0.0
    %528 = vmatpush1.msra.mxu0 0.0
    %529 = vmatprep.subr.mxu0 0.0
    %530 = vmatpush1.msra.mxu0 0.0
    %531 = vmatprep.subr.mxu0 0.0
    %532 = vmatpush1.msra.mxu0 0.0
    %533 = vmatprep.subr.mxu0 0.0
    %534 = vmatpush1.msra.mxu0 0.0
    %535 = vmatprep.mubr.f32.mxu0 0.0
    %536 = vmatmul.mubr.f32.gmra.mrb[0].mxu0 %v469
    %v537 = vpop.f32.mrb[0].mxu0
    %v538 = vadd.f32 %v465, %v537
    %v539 = vpop.f32.mrb[0].mxu0
    %540 = vdwg.mxu0
    %v542 = vlaneseq
    %v543 = vshrl.u32 %v542, 7
    %v544 = vsub.s32 0, %v543
    %v545 = vrot.slane %v458, %v544
    %547 = vmatprep.subr.mxu0 0.0
    %548 = vmatpush1.msra.mxu0 %v439
    %549 = vmatprep.subr.mxu0 0.0
    %550 = vmatpush1.msra.mxu0 %v440
    %551 = vmatprep.subr.mxu0 0.0
    %552 = vmatpush1.msra.mxu0 %v441
    %553 = vmatprep.subr.mxu0 0.0
    %554 = vmatpush1.msra.mxu0 %v442
    %555 = vmatprep.subr.mxu0 0.0
    %556 = vmatpush1.msra.mxu0 %v443
    %557 = vmatprep.subr.mxu0 0.0
    %558 = vmatpush1.msra.mxu0 %v444
    %559 = vmatprep.subr.mxu0 0.0
    %560 = vmatpush1.msra.mxu0 %v445
    %561 = vmatprep.subr.mxu0 0.0
    %562 = vmatpush1.msra.mxu0 %v446
    %563 = vmatprep.subr.mxu0 0.0
    %564 = vmatpush1.msra.mxu0 0.0
    %565 = vmatprep.subr.mxu0 0.0
    %566 = vmatpush1.msra.mxu0 0.0
    %567 = vmatprep.subr.mxu0 0.0
    %568 = vmatpush1.msra.mxu0 0.0
    %569 = vmatprep.subr.mxu0 0.0
    %570 = vmatpush1.msra.mxu0 0.0
    %571 = vmatprep.subr.mxu0 0.0
    %572 = vmatpush1.msra.mxu0 0.0
    %573 = vmatprep.subr.mxu0 0.0
    %574 = vmatpush1.msra.mxu0 0.0
    %575 = vmatprep.subr.mxu0 0.0
    %576 = vmatpush1.msra.mxu0 0.0
    %577 = vmatprep.subr.mxu0 0.0
    %578 = vmatpush1.msra.mxu0 0.0
    %579 = vmatprep.subr.mxu0 0.0
    %580 = vmatpush1.msra.mxu0 0.0
    %581 = vmatprep.subr.mxu0 0.0
    %582 = vmatpush1.msra.mxu0 0.0
    %583 = vmatprep.subr.mxu0 0.0
    %584 = vmatpush1.msra.mxu0 0.0
    %585 = vmatprep.subr.mxu0 0.0
    %586 = vmatpush1.msra.mxu0 0.0
    %587 = vmatprep.subr.mxu0 0.0
    %588 = vmatpush1.msra.mxu0 0.0
    %589 = vmatprep.subr.mxu0 0.0
    %590 = vmatpush1.msra.mxu0 0.0
    %591 = vmatprep.subr.mxu0 0.0
    %592 = vmatpush1.msra.mxu0 0.0
    %593 = vmatprep.subr.mxu0 0.0
    %594 = vmatpush1.msra.mxu0 0.0
    %595 = vmatprep.subr.mxu0 0.0
    %596 = vmatpush1.msra.mxu0 0.0
    %597 = vmatprep.subr.mxu0 0.0
    %598 = vmatpush1.msra.mxu0 0.0
    %599 = vmatprep.subr.mxu0 0.0
    %600 = vmatpush1.msra.mxu0 0.0
    %601 = vmatprep.subr.mxu0 0.0
    %602 = vmatpush1.msra.mxu0 0.0
    %603 = vmatprep.subr.mxu0 0.0
    %604 = vmatpush1.msra.mxu0 0.0
    %605 = vmatprep.subr.mxu0 0.0
    %606 = vmatpush1.msra.mxu0 0.0
    %607 = vmatprep.subr.mxu0 0.0
    %608 = vmatpush1.msra.mxu0 0.0
    %609 = vmatprep.subr.mxu0 0.0
    %610 = vmatpush1.msra.mxu0 0.0
    %611 = vmatprep.mubr.f32.mxu0 0.0
    %612 = vmatmul.mubr.f32.gmra.mrb[0].mxu0 %v469
    %v613 = vpop.f32.mrb[0].mxu0
    %v614 = vadd.f32 %v545, %v613
    %v615 = vpop.f32.mrb[0].mxu0
    %616 = vdwg.mxu0
    %v618 = vlaneseq
    %v619 = vshrl.u32 %v618, 7
    %v620 = vsub.s32 0, %v619
    %v621 = vrot.slane %v460, %v620
    %623 = vmatprep.subr.mxu0 0.0
    %624 = vmatpush1.msra.mxu0 %v448
    %625 = vmatprep.subr.mxu0 0.0
    %626 = vmatpush1.msra.mxu0 %v449
    %627 = vmatprep.subr.mxu0 0.0
    %628 = vmatpush1.msra.mxu0 %v450
    %629 = vmatprep.subr.mxu0 0.0
    %630 = vmatpush1.msra.mxu0 %v451
    %631 = vmatprep.subr.mxu0 0.0
    %632 = vmatpush1.msra.mxu0 %v452
    %633 = vmatprep.subr.mxu0 0.0
    %634 = vmatpush1.msra.mxu0 %v453
    %635 = vmatprep.subr.mxu0 0.0
    %636 = vmatpush1.msra.mxu0 %v454
    %637 = vmatprep.subr.mxu0 0.0
    %638 = vmatpush1.msra.mxu0 %v455
    %639 = vmatprep.subr.mxu0 0.0
    %640 = vmatpush1.msra.mxu0 0.0
    %641 = vmatprep.subr.mxu0 0.0
    %642 = vmatpush1.msra.mxu0 0.0
    %643 = vmatprep.subr.mxu0 0.0
    %644 = vmatpush1.msra.mxu0 0.0
    %645 = vmatprep.subr.mxu0 0.0
    %646 = vmatpush1.msra.mxu0 0.0
    %647 = vmatprep.subr.mxu0 0.0
    %648 = vmatpush1.msra.mxu0 0.0
    %649 = vmatprep.subr.mxu0 0.0
    %650 = vmatpush1.msra.mxu0 0.0
    %651 = vmatprep.subr.mxu0 0.0
    %652 = vmatpush1.msra.mxu0 0.0
    %653 = vmatprep.subr.mxu0 0.0
    %654 = vmatpush1.msra.mxu0 0.0
    %655 = vmatprep.subr.mxu0 0.0
    %656 = vmatpush1.msra.mxu0 0.0
    %657 = vmatprep.subr.mxu0 0.0
    %658 = vmatpush1.msra.mxu0 0.0
    %659 = vmatprep.subr.mxu0 0.0
    %660 = vmatpush1.msra.mxu0 0.0
    %661 = vmatprep.subr.mxu0 0.0
    %662 = vmatpush1.msra.mxu0 0.0
    %663 = vmatprep.subr.mxu0 0.0
    %664 = vmatpush1.msra.mxu0 0.0
    %665 = vmatprep.subr.mxu0 0.0
    %666 = vmatpush1.msra.mxu0 0.0
    %667 = vmatprep.subr.mxu0 0.0
    %668 = vmatpush1.msra.mxu0 0.0
    %669 = vmatprep.subr.mxu0 0.0
    %670 = vmatpush1.msra.mxu0 0.0
    %671 = vmatprep.subr.mxu0 0.0
    %672 = vmatpush1.msra.mxu0 0.0
    %673 = vmatprep.subr.mxu0 0.0
    %674 = vmatpush1.msra.mxu0 0.0
    %675 = vmatprep.subr.mxu0 0.0
    %676 = vmatpush1.msra.mxu0 0.0
    %677 = vmatprep.subr.mxu0 0.0
    %678 = vmatpush1.msra.mxu0 0.0
    %679 = vmatprep.subr.mxu0 0.0
    %680 = vmatpush1.msra.mxu0 0.0
    %681 = vmatprep.subr.mxu0 0.0
    %682 = vmatpush1.msra.mxu0 0.0
    %683 = vmatprep.subr.mxu0 0.0
    %684 = vmatpush1.msra.mxu0 0.0
    %685 = vmatprep.subr.mxu0 0.0
    %686 = vmatpush1.msra.mxu0 0.0
    %687 = vmatprep.mubr.f32.mxu0 0.0
    %688 = vmatmul.mubr.f32.gmra.mrb[0].mxu0 %v469
    %v689 = vpop.f32.mrb[0].mxu0
    %v690 = vadd.f32 %v621, %v689
    %v691 = vpop.f32.mrb[0].mxu0
    %692 = vdwg.mxu0
    %v693 = vadd.f32 %v244, %v538
    %v694 = vxor.u32 %v693, 2147483648
    %v695 = vmul.f32 %v694, 1.442695
    %v696 = vpow.pop %v695
    %v697 = vadd.f32 %v696, 1.0
    %v698 = vrcp.pop %v697
    %v699 = vmul.f32 1.0, %v698
    %v700 = vadd.f32 %v333, %v614
    %v701 = vxor.u32 %v700, 2147483648
    %v702 = vmul.f32 %v701, 1.442695
    %v703 = vpow.pop %v702
    %v704 = vadd.f32 %v703, 1.0
    %v705 = vrcp.pop %v704
    %v706 = vmul.f32 1.0, %v705
    %v707 = vmul.f32 %v699, %v690
    %v708 = vadd.f32 %v422, %v707
    %v709 = vtanh.pop %v708
    %v710 = vsub.f32 1.0, %v706
    %v711 = vmul.f32 %v710, %v709
    %v712 = vmul.f32 %v706, 0.0
    %v713 = vadd.f32 %v711, %v712
    %vm714 = vcmask 517120
    %715 = vst.msk [vmem:[#allocation2] sm:$0x3] %vm714, %v713
    %v717 = vsel %vm467, %v713, 0
    %719 = vmatprep.subr.mxu0 0.0
    %720 = vmatpush1.msra.mxu0 %v430
    %721 = vmatprep.subr.mxu0 0.0
    %722 = vmatpush1.msra.mxu0 %v431
    %723 = vmatprep.subr.mxu0 0.0
    %724 = vmatpush1.msra.mxu0 %v432
    %725 = vmatprep.subr.mxu0 0.0
    %726 = vmatpush1.msra.mxu0 %v433
    %727 = vmatprep.subr.mxu0 0.0
    %728 = vmatpush1.msra.mxu0 %v434
    %729 = vmatprep.subr.mxu0 0.0
    %730 = vmatpush1.msra.mxu0 %v435
    %731 = vmatprep.subr.mxu0 0.0
    %732 = vmatpush1.msra.mxu0 %v436
    %733 = vmatprep.subr.mxu0 0.0
    %734 = vmatpush1.msra.mxu0 %v437
    %735 = vmatprep.subr.mxu0 0.0
    %736 = vmatpush1.msra.mxu0 0.0
    %737 = vmatprep.subr.mxu0 0.0
    %738 = vmatpush1.msra.mxu0 0.0
    %739 = vmatprep.subr.mxu0 0.0
    %740 = vmatpush1.msra.mxu0 0.0
    %741 = vmatprep.subr.mxu0 0.0
    %742 = vmatpush1.msra.mxu0 0.0
    %743 = vmatprep.subr.mxu0 0.0
    %744 = vmatpush1.msra.mxu0 0.0
    %745 = vmatprep.subr.mxu0 0.0
    %746 = vmatpush1.msra.mxu0 0.0
    %747 = vmatprep.subr.mxu0 0.0
    %748 = vmatpush1.msra.mxu0 0.0
    %749 = vmatprep.subr.mxu0 0.0
    %750 = vmatpush1.msra.mxu0 0.0
    %751 = vmatprep.subr.mxu0 0.0
    %752 = vmatpush1.msra.mxu0 0.0
    %753 = vmatprep.subr.mxu0 0.0
    %754 = vmatpush1.msra.mxu0 0.0
    %755 = vmatprep.subr.mxu0 0.0
    %756 = vmatpush1.msra.mxu0 0.0
    %757 = vmatprep.subr.mxu0 0.0
    %758 = vmatpush1.msra.mxu0 0.0
    %759 = vmatprep.subr.mxu0 0.0
    %760 = vmatpush1.msra.mxu0 0.0
    %761 = vmatprep.subr.mxu0 0.0
    %762 = vmatpush1.msra.mxu0 0.0
    %763 = vmatprep.subr.mxu0 0.0
    %764 = vmatpush1.msra.mxu0 0.0
    %765 = vmatprep.subr.mxu0 0.0
    %766 = vmatpush1.msra.mxu0 0.0
    %767 = vmatprep.subr.mxu0 0.0
    %768 = vmatpush1.msra.mxu0 0.0
    %769 = vmatprep.subr.mxu0 0.0
    %770 = vmatpush1.msra.mxu0 0.0
    %771 = vmatprep.subr.mxu0 0.0
    %772 = vmatpush1.msra.mxu0 0.0
    %773 = vmatprep.subr.mxu0 0.0
    %774 = vmatpush1.msra.mxu0 0.0
    %775 = vmatprep.subr.mxu0 0.0
    %776 = vmatpush1.msra.mxu0 0.0
    %777 = vmatprep.subr.mxu0 0.0
    %778 = vmatpush1.msra.mxu0 0.0
    %779 = vmatprep.subr.mxu0 0.0
    %780 = vmatpush1.msra.mxu0 0.0
    %781 = vmatprep.subr.mxu0 0.0
    %782 = vmatpush1.msra.mxu0 0.0
    %783 = vmatprep.mubr.f32.mxu0 0.0
    %784 = vmatmul.mubr.f32.gmra.mrb[0].mxu0 %v717
    %v785 = vpop.f32.mrb[0].mxu0
    %v786 = vadd.f32 %v465, %v785
    %v787 = vpop.f32.mrb[0].mxu0
    %788 = vdwg.mxu0
    %789 = vmatprep.subr.mxu0 0.0
    %790 = vmatpush1.msra.mxu0 %v439
    %791 = vmatprep.subr.mxu0 0.0
    %792 = vmatpush1.msra.mxu0 %v440
    %793 = vmatprep.subr.mxu0 0.0
    %794 = vmatpush1.msra.mxu0 %v441
    %795 = vmatprep.subr.mxu0 0.0
    %796 = vmatpush1.msra.mxu0 %v442
    %797 = vmatprep.subr.mxu0 0.0
    %798 = vmatpush1.msra.mxu0 %v443
    %799 = vmatprep.subr.mxu0 0.0
    %800 = vmatpush1.msra.mxu0 %v444
    %801 = vmatprep.subr.mxu0 0.0
    %802 = vmatpush1.msra.mxu0 %v445
    %803 = vmatprep.subr.mxu0 0.0
    %804 = vmatpush1.msra.mxu0 %v446
    %805 = vmatprep.subr.mxu0 0.0
    %806 = vmatpush1.msra.mxu0 0.0
    %807 = vmatprep.subr.mxu0 0.0
    %808 = vmatpush1.msra.mxu0 0.0
    %809 = vmatprep.subr.mxu0 0.0
    %810 = vmatpush1.msra.mxu0 0.0
    %811 = vmatprep.subr.mxu0 0.0
    %812 = vmatpush1.msra.mxu0 0.0
    %813 = vmatprep.subr.mxu0 0.0
    %814 = vmatpush1.msra.mxu0 0.0
    %815 = vmatprep.subr.mxu0 0.0
    %816 = vmatpush1.msra.mxu0 0.0
    %817 = vmatprep.subr.mxu0 0.0
    %818 = vmatpush1.msra.mxu0 0.0
    %819 = vmatprep.subr.mxu0 0.0
    %820 = vmatpush1.msra.mxu0 0.0
    %821 = vmatprep.subr.mxu0 0.0
    %822 = vmatpush1.msra.mxu0 0.0
    %823 = vmatprep.subr.mxu0 0.0
    %824 = vmatpush1.msra.mxu0 0.0
    %825 = vmatprep.subr.mxu0 0.0
    %826 = vmatpush1.msra.mxu0 0.0
    %827 = vmatprep.subr.mxu0 0.0
    %828 = vmatpush1.msra.mxu0 0.0
    %829 = vmatprep.subr.mxu0 0.0
    %830 = vmatpush1.msra.mxu0 0.0
    %831 = vmatprep.subr.mxu0 0.0
    %832 = vmatpush1.msra.mxu0 0.0
    %833 = vmatprep.subr.mxu0 0.0
    %834 = vmatpush1.msra.mxu0 0.0
    %835 = vmatprep.subr.mxu0 0.0
    %836 = vmatpush1.msra.mxu0 0.0
    %837 = vmatprep.subr.mxu0 0.0
    %838 = vmatpush1.msra.mxu0 0.0
    %839 = vmatprep.subr.mxu0 0.0
    %840 = vmatpush1.msra.mxu0 0.0
    %841 = vmatprep.subr.mxu0 0.0
    %842 = vmatpush1.msra.mxu0 0.0
    %843 = vmatprep.subr.mxu0 0.0
    %844 = vmatpush1.msra.mxu0 0.0
    %845 = vmatprep.subr.mxu0 0.0
    %846 = vmatpush1.msra.mxu0 0.0
    %847 = vmatprep.subr.mxu0 0.0
    %848 = vmatpush1.msra.mxu0 0.0
    %849 = vmatprep.subr.mxu0 0.0
    %850 = vmatpush1.msra.mxu0 0.0
    %851 = vmatprep.subr.mxu0 0.0
    %852 = vmatpush1.msra.mxu0 0.0
    %853 = vmatprep.mubr.f32.mxu0 0.0
    %854 = vmatmul.mubr.f32.gmra.mrb[0].mxu0 %v717
    %v855 = vpop.f32.mrb[0].mxu0
    %v856 = vadd.f32 %v545, %v855
    %v857 = vpop.f32.mrb[0].mxu0
    %858 = vdwg.mxu0
    %859 = vmatprep.subr.mxu0 0.0
    %860 = vmatpush1.msra.mxu0 %v448
    %861 = vmatprep.subr.mxu0 0.0
    %862 = vmatpush1.msra.mxu0 %v449
    %863 = vmatprep.subr.mxu0 0.0
    %864 = vmatpush1.msra.mxu0 %v450
    %865 = vmatprep.subr.mxu0 0.0
    %866 = vmatpush1.msra.mxu0 %v451
    %867 = vmatprep.subr.mxu0 0.0
    %868 = vmatpush1.msra.mxu0 %v452
    %869 = vmatprep.subr.mxu0 0.0
    %870 = vmatpush1.msra.mxu0 %v453
    %871 = vmatprep.subr.mxu0 0.0
    %872 = vmatpush1.msra.mxu0 %v454
    %873 = vmatprep.subr.mxu0 0.0
    %874 = vmatpush1.msra.mxu0 %v455
    %875 = vmatprep.subr.mxu0 0.0
    %876 = vmatpush1.msra.mxu0 0.0
    %877 = vmatprep.subr.mxu0 0.0
    %878 = vmatpush1.msra.mxu0 0.0
    %879 = vmatprep.subr.mxu0 0.0
    %880 = vmatpush1.msra.mxu0 0.0
    %881 = vmatprep.subr.mxu0 0.0
    %882 = vmatpush1.msra.mxu0 0.0
    %883 = vmatprep.subr.mxu0 0.0
    %884 = vmatpush1.msra.mxu0 0.0
    %885 = vmatprep.subr.mxu0 0.0
    %886 = vmatpush1.msra.mxu0 0.0
    %887 = vmatprep.subr.mxu0 0.0
    %888 = vmatpush1.msra.mxu0 0.0
    %889 = vmatprep.subr.mxu0 0.0
    %890 = vmatpush1.msra.mxu0 0.0
    %891 = vmatprep.subr.mxu0 0.0
    %892 = vmatpush1.msra.mxu0 0.0
    %893 = vmatprep.subr.mxu0 0.0
    %894 = vmatpush1.msra.mxu0 0.0
    %895 = vmatprep.subr.mxu0 0.0
    %896 = vmatpush1.msra.mxu0 0.0
    %897 = vmatprep.subr.mxu0 0.0
    %898 = vmatpush1.msra.mxu0 0.0
    %899 = vmatprep.subr.mxu0 0.0
    %900 = vmatpush1.msra.mxu0 0.0
    %901 = vmatprep.subr.mxu0 0.0
    %902 = vmatpush1.msra.mxu0 0.0
    %903 = vmatprep.subr.mxu0 0.0
    %904 = vmatpush1.msra.mxu0 0.0
    %905 = vmatprep.subr.mxu0 0.0
    %906 = vmatpush1.msra.mxu0 0.0
    %907 = vmatprep.subr.mxu0 0.0
    %908 = vmatpush1.msra.mxu0 0.0
    %909 = vmatprep.subr.mxu0 0.0
    %910 = vmatpush1.msra.mxu0 0.0
    %911 = vmatprep.subr.mxu0 0.0
    %912 = vmatpush1.msra.mxu0 0.0
    %913 = vmatprep.subr.mxu0 0.0
    %914 = vmatpush1.msra.mxu0 0.0
    %915 = vmatprep.subr.mxu0 0.0
    %916 = vmatpush1.msra.mxu0 0.0
    %917 = vmatprep.subr.mxu0 0.0
    %918 = vmatpush1.msra.mxu0 0.0
    %919 = vmatprep.subr.mxu0 0.0
    %920 = vmatpush1.msra.mxu0 0.0
    %921 = vmatprep.subr.mxu0 0.0
    %922 = vmatpush1.msra.mxu0 0.0
    %923 = vmatprep.mubr.f32.mxu0 0.0
    %924 = vmatmul.mubr.f32.gmra.mrb[0].mxu0 %v717
    %v925 = vpop.f32.mrb[0].mxu0
    %v926 = vadd.f32 %v621, %v925
    %v927 = vpop.f32.mrb[0].mxu0
    %928 = vdwg.mxu0
    %v930 = vrot.slane %v786, 6
    %v932 = vadd.f32 %v244, %v930
    %v933 = vxor.u32 %v932, 2147483648
    %v934 = vmul.f32 %v933, 1.442695
    %v935 = vpow.pop %v934
    %v936 = vadd.f32 %v935, 1.0
    %v937 = vrcp.pop %v936
    %v938 = vmul.f32 1.0, %v937
    %v940 = vrot.slane %v856, 6
    %v942 = vadd.f32 %v333, %v940
    %v943 = vxor.u32 %v942, 2147483648
    %v944 = vmul.f32 %v943, 1.442695
    %v945 = vpow.pop %v944
    %v946 = vadd.f32 %v945, 1.0
    %v947 = vrcp.pop %v946
    %v948 = vmul.f32 1.0, %v947
    %v950 = vrot.slane %v926, 6
    %v952 = vmul.f32 %v938, %v950
    %v953 = vadd.f32 %v422, %v952
    %v954 = vtanh.pop %v953
    %v955 = vsub.f32 1.0, %v948
    %v956 = vmul.f32 %v955, %v954
    %v957 = vrot.slane %v713, 6
    %v959 = vmul.f32 %v948, %v957
    %v960 = vadd.f32 %v956, %v959
    %vm961 = vcmask 519170
    %962 = vst.msk [vmem:[#allocation2] sm:$0xc] %vm961, %v960
    %v964 = vrot.slane %v960, 2
    %v965 = vsel %vm467, %v964, 0
    %967 = vmatprep.subr.mxu0 0.0
    %968 = vmatpush1.msra.mxu0 %v430
    %969 = vmatprep.subr.mxu0 0.0
    %970 = vmatpush1.msra.mxu0 %v431
    %971 = vmatprep.subr.mxu0 0.0
    %972 = vmatpush1.msra.mxu0 %v432
    %973 = vmatprep.subr.mxu0 0.0
    %974 = vmatpush1.msra.mxu0 %v433
    %975 = vmatprep.subr.mxu0 0.0
    %976 = vmatpush1.msra.mxu0 %v434
    %977 = vmatprep.subr.mxu0 0.0
    %978 = vmatpush1.msra.mxu0 %v435
    %979 = vmatprep.subr.mxu0 0.0
    %980 = vmatpush1.msra.mxu0 %v436
    %981 = vmatprep.subr.mxu0 0.0
    %982 = vmatpush1.msra.mxu0 %v437
    %983 = vmatprep.subr.mxu0 0.0
    %984 = vmatpush1.msra.mxu0 0.0
    %985 = vmatprep.subr.mxu0 0.0
    %986 = vmatpush1.msra.mxu0 0.0
    %987 = vmatprep.subr.mxu0 0.0
    %988 = vmatpush1.msra.mxu0 0.0
    %989 = vmatprep.subr.mxu0 0.0
    %990 = vmatpush1.msra.mxu0 0.0
    %991 = vmatprep.subr.mxu0 0.0
    %992 = vmatpush1.msra.mxu0 0.0
    %993 = vmatprep.subr.mxu0 0.0
    %994 = vmatpush1.msra.mxu0 0.0
    %995 = vmatprep.subr.mxu0 0.0
    %996 = vmatpush1.msra.mxu0 0.0
    %997 = vmatprep.subr.mxu0 0.0
    %998 = vmatpush1.msra.mxu0 0.0
    %999 = vmatprep.subr.mxu0 0.0
    %1000 = vmatpush1.msra.mxu0 0.0
    %1001 = vmatprep.subr.mxu0 0.0
    %1002 = vmatpush1.msra.mxu0 0.0
    %1003 = vmatprep.subr.mxu0 0.0
    %1004 = vmatpush1.msra.mxu0 0.0
    %1005 = vmatprep.subr.mxu0 0.0
    %1006 = vmatpush1.msra.mxu0 0.0
    %1007 = vmatprep.subr.mxu0 0.0
    %1008 = vmatpush1.msra.mxu0 0.0
    %1009 = vmatprep.subr.mxu0 0.0
    %1010 = vmatpush1.msra.mxu0 0.0
    %1011 = vmatprep.subr.mxu0 0.0
    %1012 = vmatpush1.msra.mxu0 0.0
    %1013 = vmatprep.subr.mxu0 0.0
    %1014 = vmatpush1.msra.mxu0 0.0
    %1015 = vmatprep.subr.mxu0 0.0
    %1016 = vmatpush1.msra.mxu0 0.0
    %1017 = vmatprep.subr.mxu0 0.0
    %1018 = vmatpush1.msra.mxu0 0.0
    %1019 = vmatprep.subr.mxu0 0.0
    %1020 = vmatpush1.msra.mxu0 0.0
    %1021 = vmatprep.subr.mxu0 0.0
    %1022 = vmatpush1.msra.mxu0 0.0
    %1023 = vmatprep.subr.mxu0 0.0
    %1024 = vmatpush1.msra.mxu0 0.0
    %1025 = vmatprep.subr.mxu0 0.0
    %1026 = vmatpush1.msra.mxu0 0.0
    %1027 = vmatprep.subr.mxu0 0.0
    %1028 = vmatpush1.msra.mxu0 0.0
    %1029 = vmatprep.subr.mxu0 0.0
    %1030 = vmatpush1.msra.mxu0 0.0
    %1031 = vmatprep.mubr.f32.mxu0 0.0
    %1032 = vmatmul.mubr.f32.gmra.mrb[0].mxu0 %v965
    %v1033 = vpop.f32.mrb[0].mxu0
    %v1034 = vadd.f32 %v465, %v1033
    %v1035 = vpop.f32.mrb[0].mxu0
    %1036 = vdwg.mxu0
    %1037 = vmatprep.subr.mxu0 0.0
    %1038 = vmatpush1.msra.mxu0 %v439
    %1039 = vmatprep.subr.mxu0 0.0
    %1040 = vmatpush1.msra.mxu0 %v440
    %1041 = vmatprep.subr.mxu0 0.0
    %1042 = vmatpush1.msra.mxu0 %v441
    %1043 = vmatprep.subr.mxu0 0.0
    %1044 = vmatpush1.msra.mxu0 %v442
    %1045 = vmatprep.subr.mxu0 0.0
    %1046 = vmatpush1.msra.mxu0 %v443
    %1047 = vmatprep.subr.mxu0 0.0
    %1048 = vmatpush1.msra.mxu0 %v444
    %1049 = vmatprep.subr.mxu0 0.0
    %1050 = vmatpush1.msra.mxu0 %v445
    %1051 = vmatprep.subr.mxu0 0.0
    %1052 = vmatpush1.msra.mxu0 %v446
    %1053 = vmatprep.subr.mxu0 0.0
    %1054 = vmatpush1.msra.mxu0 0.0
    %1055 = vmatprep.subr.mxu0 0.0
    %1056 = vmatpush1.msra.mxu0 0.0
    %1057 = vmatprep.subr.mxu0 0.0
    %1058 = vmatpush1.msra.mxu0 0.0
    %1059 = vmatprep.subr.mxu0 0.0
    %1060 = vmatpush1.msra.mxu0 0.0
    %1061 = vmatprep.subr.mxu0 0.0
    %1062 = vmatpush1.msra.mxu0 0.0
    %1063 = vmatprep.subr.mxu0 0.0
    %1064 = vmatpush1.msra.mxu0 0.0
    %1065 = vmatprep.subr.mxu0 0.0
    %1066 = vmatpush1.msra.mxu0 0.0
    %1067 = vmatprep.subr.mxu0 0.0
    %1068 = vmatpush1.msra.mxu0 0.0
    %1069 = vmatprep.subr.mxu0 0.0
    %1070 = vmatpush1.msra.mxu0 0.0
    %1071 = vmatprep.subr.mxu0 0.0
    %1072 = vmatpush1.msra.mxu0 0.0
    %1073 = vmatprep.subr.mxu0 0.0
    %1074 = vmatpush1.msra.mxu0 0.0
    %1075 = vmatprep.subr.mxu0 0.0
    %1076 = vmatpush1.msra.mxu0 0.0
    %1077 = vmatprep.subr.mxu0 0.0
    %1078 = vmatpush1.msra.mxu0 0.0
    %1079 = vmatprep.subr.mxu0 0.0
    %1080 = vmatpush1.msra.mxu0 0.0
    %1081 = vmatprep.subr.mxu0 0.0
    %1082 = vmatpush1.msra.mxu0 0.0
    %1083 = vmatprep.subr.mxu0 0.0
    %1084 = vmatpush1.msra.mxu0 0.0
    %1085 = vmatprep.subr.mxu0 0.0
    %1086 = vmatpush1.msra.mxu0 0.0
    %1087 = vmatprep.subr.mxu0 0.0
    %1088 = vmatpush1.msra.mxu0 0.0
    %1089 = vmatprep.subr.mxu0 0.0
    %1090 = vmatpush1.msra.mxu0 0.0
    %1091 = vmatprep.subr.mxu0 0.0
    %1092 = vmatpush1.msra.mxu0 0.0
    %1093 = vmatprep.subr.mxu0 0.0
    %1094 = vmatpush1.msra.mxu0 0.0
    %1095 = vmatprep.subr.mxu0 0.0
    %1096 = vmatpush1.msra.mxu0 0.0
    %1097 = vmatprep.subr.mxu0 0.0
    %1098 = vmatpush1.msra.mxu0 0.0
    %1099 = vmatprep.subr.mxu0 0.0
    %1100 = vmatpush1.msra.mxu0 0.0
    %1101 = vmatprep.mubr.f32.mxu0 0.0
    %1102 = vmatmul.mubr.f32.gmra.mrb[0].mxu0 %v965
    %v1103 = vpop.f32.mrb[0].mxu0
    %v1104 = vadd.f32 %v545, %v1103
    %v1105 = vpop.f32.mrb[0].mxu0
    %1106 = vdwg.mxu0
    %1107 = vmatprep.subr.mxu0 0.0
    %1108 = vmatpush1.msra.mxu0 %v448
    %1109 = vmatprep.subr.mxu0 0.0
    %1110 = vmatpush1.msra.mxu0 %v449
    %1111 = vmatprep.subr.mxu0 0.0
    %1112 = vmatpush1.msra.mxu0 %v450
    %1113 = vmatprep.subr.mxu0 0.0
    %1114 = vmatpush1.msra.mxu0 %v451
    %1115 = vmatprep.subr.mxu0 0.0
    %1116 = vmatpush1.msra.mxu0 %v452
    %1117 = vmatprep.subr.mxu0 0.0
    %1118 = vmatpush1.msra.mxu0 %v453
    %1119 = vmatprep.subr.mxu0 0.0
    %1120 = vmatpush1.msra.mxu0 %v454
    %1121 = vmatprep.subr.mxu0 0.0
    %1122 = vmatpush1.msra.mxu0 %v455
    %1123 = vmatprep.subr.mxu0 0.0
    %1124 = vmatpush1.msra.mxu0 0.0
    %1125 = vmatprep.subr.mxu0 0.0
    %1126 = vmatpush1.msra.mxu0 0.0
    %1127 = vmatprep.subr.mxu0 0.0
    %1128 = vmatpush1.msra.mxu0 0.0
    %1129 = vmatprep.subr.mxu0 0.0
    %1130 = vmatpush1.msra.mxu0 0.0
    %1131 = vmatprep.subr.mxu0 0.0
    %1132 = vmatpush1.msra.mxu0 0.0
    %1133 = vmatprep.subr.mxu0 0.0
    %1134 = vmatpush1.msra.mxu0 0.0
    %1135 = vmatprep.subr.mxu0 0.0
    %1136 = vmatpush1.msra.mxu0 0.0
    %1137 = vmatprep.subr.mxu0 0.0
    %1138 = vmatpush1.msra.mxu0 0.0
    %1139 = vmatprep.subr.mxu0 0.0
    %1140 = vmatpush1.msra.mxu0 0.0
    %1141 = vmatprep.subr.mxu0 0.0
    %1142 = vmatpush1.msra.mxu0 0.0
    %1143 = vmatprep.subr.mxu0 0.0
    %1144 = vmatpush1.msra.mxu0 0.0
    %1145 = vmatprep.subr.mxu0 0.0
    %1146 = vmatpush1.msra.mxu0 0.0
    %1147 = vmatprep.subr.mxu0 0.0
    %1148 = vmatpush1.msra.mxu0 0.0
    %1149 = vmatprep.subr.mxu0 0.0
    %1150 = vmatpush1.msra.mxu0 0.0
    %1151 = vmatprep.subr.mxu0 0.0
    %1152 = vmatpush1.msra.mxu0 0.0
    %1153 = vmatprep.subr.mxu0 0.0
    %1154 = vmatpush1.msra.mxu0 0.0
    %1155 = vmatprep.subr.mxu0 0.0
    %1156 = vmatpush1.msra.mxu0 0.0
    %1157 = vmatprep.subr.mxu0 0.0
    %1158 = vmatpush1.msra.mxu0 0.0
    %1159 = vmatprep.subr.mxu0 0.0
    %1160 = vmatpush1.msra.mxu0 0.0
    %1161 = vmatprep.subr.mxu0 0.0
    %1162 = vmatpush1.msra.mxu0 0.0
    %1163 = vmatprep.subr.mxu0 0.0
    %1164 = vmatpush1.msra.mxu0 0.0
    %1165 = vmatprep.subr.mxu0 0.0
    %1166 = vmatpush1.msra.mxu0 0.0
    %1167 = vmatprep.subr.mxu0 0.0
    %1168 = vmatpush1.msra.mxu0 0.0
    %1169 = vmatprep.subr.mxu0 0.0
    %1170 = vmatpush1.msra.mxu0 0.0
    %1171 = vmatprep.mubr.f32.mxu0 0.0
    %1172 = vmatmul.mubr.f32.gmra.mrb[0].mxu0 %v965
    %v1173 = vpop.f32.mrb[0].mxu0
    %v1174 = vadd.f32 %v621, %v1173
    %v1175 = vpop.f32.mrb[0].mxu0
    %1176 = vdwg.mxu0
    %v1178 = vrot.slane %v1034, 4
    %v1180 = vadd.f32 %v244, %v1178
    %v1181 = vxor.u32 %v1180, 2147483648
    %v1182 = vmul.f32 %v1181, 1.442695
    %v1183 = vpow.pop %v1182
    %v1184 = vadd.f32 %v1183, 1.0
    %v1185 = vrcp.pop %v1184
    %v1186 = vmul.f32 1.0, %v1185
    %v1188 = vrot.slane %v1104, 4
    %v1190 = vadd.f32 %v333, %v1188
    %v1191 = vxor.u32 %v1190, 2147483648
    %v1192 = vmul.f32 %v1191, 1.442695
    %v1193 = vpow.pop %v1192
    %v1194 = vadd.f32 %v1193, 1.0
    %v1195 = vrcp.pop %v1194
    %v1196 = vmul.f32 1.0, %v1195
    %v1198 = vrot.slane %v1174, 4
    %v1200 = vmul.f32 %v1186, %v1198
    %v1201 = vadd.f32 %v422, %v1200
    %v1202 = vtanh.pop %v1201
    %v1203 = vsub.f32 1.0, %v1196
    %v1204 = vmul.f32 %v1203, %v1202
    %v1205 = vrot.slane %v960, 6
    %v1207 = vmul.f32 %v1196, %v1205
    %v1208 = vadd.f32 %v1204, %v1207
    %vm1209 = vcmask 521220
    %1210 = vst.msk [vmem:[#allocation2] sm:$0x30] %vm1209, %v1208
    %v1212 = vrot.slane %v1208, 4
    %v1213 = vsel %vm467, %v1212, 0
    %1215 = vmatprep.subr.mxu0 0.0
    %1216 = vmatpush1.msra.mxu0 %v430
    %1217 = vmatprep.subr.mxu0 0.0
    %1218 = vmatpush1.msra.mxu0 %v431
    %1219 = vmatprep.subr.mxu0 0.0
    %1220 = vmatpush1.msra.mxu0 %v432
    %1221 = vmatprep.subr.mxu0 0.0
    %1222 = vmatpush1.msra.mxu0 %v433
    %1223 = vmatprep.subr.mxu0 0.0
    %1224 = vmatpush1.msra.mxu0 %v434
    %1225 = vmatprep.subr.mxu0 0.0
    %1226 = vmatpush1.msra.mxu0 %v435
    %1227 = vmatprep.subr.mxu0 0.0
    %1228 = vmatpush1.msra.mxu0 %v436
    %1229 = vmatprep.subr.mxu0 0.0
    %1230 = vmatpush1.msra.mxu0 %v437
    %1231 = vmatprep.subr.mxu0 0.0
    %1232 = vmatpush1.msra.mxu0 0.0
    %1233 = vmatprep.subr.mxu0 0.0
    %1234 = vmatpush1.msra.mxu0 0.0
    %1235 = vmatprep.subr.mxu0 0.0
    %1236 = vmatpush1.msra.mxu0 0.0
    %1237 = vmatprep.subr.mxu0 0.0
    %1238 = vmatpush1.msra.mxu0 0.0
    %1239 = vmatprep.subr.mxu0 0.0
    %1240 = vmatpush1.msra.mxu0 0.0
    %1241 = vmatprep.subr.mxu0 0.0
    %1242 = vmatpush1.msra.mxu0 0.0
    %1243 = vmatprep.subr.mxu0 0.0
    %1244 = vmatpush1.msra.mxu0 0.0
    %1245 = vmatprep.subr.mxu0 0.0
    %1246 = vmatpush1.msra.mxu0 0.0
    %1247 = vmatprep.subr.mxu0 0.0
    %1248 = vmatpush1.msra.mxu0 0.0
    %1249 = vmatprep.subr.mxu0 0.0
    %1250 = vmatpush1.msra.mxu0 0.0
    %1251 = vmatprep.subr.mxu0 0.0
    %1252 = vmatpush1.msra.mxu0 0.0
    %1253 = vmatprep.subr.mxu0 0.0
    %1254 = vmatpush1.msra.mxu0 0.0
    %1255 = vmatprep.subr.mxu0 0.0
    %1256 = vmatpush1.msra.mxu0 0.0
    %1257 = vmatprep.subr.mxu0 0.0
    %1258 = vmatpush1.msra.mxu0 0.0
    %1259 = vmatprep.subr.mxu0 0.0
    %1260 = vmatpush1.msra.mxu0 0.0
    %1261 = vmatprep.subr.mxu0 0.0
    %1262 = vmatpush1.msra.mxu0 0.0
    %1263 = vmatprep.subr.mxu0 0.0
    %1264 = vmatpush1.msra.mxu0 0.0
    %1265 = vmatprep.subr.mxu0 0.0
    %1266 = vmatpush1.msra.mxu0 0.0
    %1267 = vmatprep.subr.mxu0 0.0
    %1268 = vmatpush1.msra.mxu0 0.0
    %1269 = vmatprep.subr.mxu0 0.0
    %1270 = vmatpush1.msra.mxu0 0.0
    %1271 = vmatprep.subr.mxu0 0.0
    %1272 = vmatpush1.msra.mxu0 0.0
    %1273 = vmatprep.subr.mxu0 0.0
    %1274 = vmatpush1.msra.mxu0 0.0
    %1275 = vmatprep.subr.mxu0 0.0
    %1276 = vmatpush1.msra.mxu0 0.0
    %1277 = vmatprep.subr.mxu0 0.0
    %1278 = vmatpush1.msra.mxu0 0.0
    %1279 = vmatprep.mubr.f32.mxu0 0.0
    %1280 = vmatmul.mubr.f32.gmra.mrb[0].mxu0 %v1213
    %v1281 = vpop.f32.mrb[0].mxu0
    %v1282 = vadd.f32 %v465, %v1281
    %v1283 = vpop.f32.mrb[0].mxu0
    %1284 = vdwg.mxu0
    %1285 = vmatprep.subr.mxu0 0.0
    %1286 = vmatpush1.msra.mxu0 %v439
    %1287 = vmatprep.subr.mxu0 0.0
    %1288 = vmatpush1.msra.mxu0 %v440
    %1289 = vmatprep.subr.mxu0 0.0
    %1290 = vmatpush1.msra.mxu0 %v441
    %1291 = vmatprep.subr.mxu0 0.0
    %1292 = vmatpush1.msra.mxu0 %v442
    %1293 = vmatprep.subr.mxu0 0.0
    %1294 = vmatpush1.msra.mxu0 %v443
    %1295 = vmatprep.subr.mxu0 0.0
    %1296 = vmatpush1.msra.mxu0 %v444
    %1297 = vmatprep.subr.mxu0 0.0
    %1298 = vmatpush1.msra.mxu0 %v445
    %1299 = vmatprep.subr.mxu0 0.0
    %1300 = vmatpush1.msra.mxu0 %v446
    %1301 = vmatprep.subr.mxu0 0.0
    %1302 = vmatpush1.msra.mxu0 0.0
    %1303 = vmatprep.subr.mxu0 0.0
    %1304 = vmatpush1.msra.mxu0 0.0
    %1305 = vmatprep.subr.mxu0 0.0
    %1306 = vmatpush1.msra.mxu0 0.0
    %1307 = vmatprep.subr.mxu0 0.0
    %1308 = vmatpush1.msra.mxu0 0.0
    %1309 = vmatprep.subr.mxu0 0.0
    %1310 = vmatpush1.msra.mxu0 0.0
    %1311 = vmatprep.subr.mxu0 0.0
    %1312 = vmatpush1.msra.mxu0 0.0
    %1313 = vmatprep.subr.mxu0 0.0
    %1314 = vmatpush1.msra.mxu0 0.0
    %1315 = vmatprep.subr.mxu0 0.0
    %1316 = vmatpush1.msra.mxu0 0.0
    %1317 = vmatprep.subr.mxu0 0.0
    %1318 = vmatpush1.msra.mxu0 0.0
    %1319 = vmatprep.subr.mxu0 0.0
    %1320 = vmatpush1.msra.mxu0 0.0
    %1321 = vmatprep.subr.mxu0 0.0
    %1322 = vmatpush1.msra.mxu0 0.0
    %1323 = vmatprep.subr.mxu0 0.0
    %1324 = vmatpush1.msra.mxu0 0.0
    %1325 = vmatprep.subr.mxu0 0.0
    %1326 = vmatpush1.msra.mxu0 0.0
    %1327 = vmatprep.subr.mxu0 0.0
    %1328 = vmatpush1.msra.mxu0 0.0
    %1329 = vmatprep.subr.mxu0 0.0
    %1330 = vmatpush1.msra.mxu0 0.0
    %1331 = vmatprep.subr.mxu0 0.0
    %1332 = vmatpush1.msra.mxu0 0.0
    %1333 = vmatprep.subr.mxu0 0.0
    %1334 = vmatpush1.msra.mxu0 0.0
    %1335 = vmatprep.subr.mxu0 0.0
    %1336 = vmatpush1.msra.mxu0 0.0
    %1337 = vmatprep.subr.mxu0 0.0
    %1338 = vmatpush1.msra.mxu0 0.0
    %1339 = vmatprep.subr.mxu0 0.0
    %1340 = vmatpush1.msra.mxu0 0.0
    %1341 = vmatprep.subr.mxu0 0.0
    %1342 = vmatpush1.msra.mxu0 0.0
    %1343 = vmatprep.subr.mxu0 0.0
    %1344 = vmatpush1.msra.mxu0 0.0
    %1345 = vmatprep.subr.mxu0 0.0
    %1346 = vmatpush1.msra.mxu0 0.0
    %1347 = vmatprep.subr.mxu0 0.0
    %1348 = vmatpush1.msra.mxu0 0.0
    %1349 = vmatprep.mubr.f32.mxu0 0.0
    %1350 = vmatmul.mubr.f32.gmra.mrb[0].mxu0 %v1213
    %v1351 = vpop.f32.mrb[0].mxu0
    %v1352 = vadd.f32 %v545, %v1351
    %v1353 = vpop.f32.mrb[0].mxu0
    %1354 = vdwg.mxu0
    %1355 = vmatprep.subr.mxu0 0.0
    %1356 = vmatpush1.msra.mxu0 %v448
    %1357 = vmatprep.subr.mxu0 0.0
    %1358 = vmatpush1.msra.mxu0 %v449
    %1359 = vmatprep.subr.mxu0 0.0
    %1360 = vmatpush1.msra.mxu0 %v450
    %1361 = vmatprep.subr.mxu0 0.0
    %1362 = vmatpush1.msra.mxu0 %v451
    %1363 = vmatprep.subr.mxu0 0.0
    %1364 = vmatpush1.msra.mxu0 %v452
    %1365 = vmatprep.subr.mxu0 0.0
    %1366 = vmatpush1.msra.mxu0 %v453
    %1367 = vmatprep.subr.mxu0 0.0
    %1368 = vmatpush1.msra.mxu0 %v454
    %1369 = vmatprep.subr.mxu0 0.0
    %1370 = vmatpush1.msra.mxu0 %v455
    %1371 = vmatprep.subr.mxu0 0.0
    %1372 = vmatpush1.msra.mxu0 0.0
    %1373 = vmatprep.subr.mxu0 0.0
    %1374 = vmatpush1.msra.mxu0 0.0
    %1375 = vmatprep.subr.mxu0 0.0
    %1376 = vmatpush1.msra.mxu0 0.0
    %1377 = vmatprep.subr.mxu0 0.0
    %1378 = vmatpush1.msra.mxu0 0.0
    %1379 = vmatprep.subr.mxu0 0.0
    %1380 = vmatpush1.msra.mxu0 0.0
    %1381 = vmatprep.subr.mxu0 0.0
    %1382 = vmatpush1.msra.mxu0 0.0
    %1383 = vmatprep.subr.mxu0 0.0
    %1384 = vmatpush1.msra.mxu0 0.0
    %1385 = vmatprep.subr.mxu0 0.0
    %1386 = vmatpush1.msra.mxu0 0.0
    %1387 = vmatprep.subr.mxu0 0.0
    %1388 = vmatpush1.msra.mxu0 0.0
    %1389 = vmatprep.subr.mxu0 0.0
    %1390 = vmatpush1.msra.mxu0 0.0
    %1391 = vmatprep.subr.mxu0 0.0
    %1392 = vmatpush1.msra.mxu0 0.0
    %1393 = vmatprep.subr.mxu0 0.0
    %1394 = vmatpush1.msra.mxu0 0.0
    %1395 = vmatprep.subr.mxu0 0.0
    %1396 = vmatpush1.msra.mxu0 0.0
    %1397 = vmatprep.subr.mxu0 0.0
    %1398 = vmatpush1.msra.mxu0 0.0
    %1399 = vmatprep.subr.mxu0 0.0
    %1400 = vmatpush1.msra.mxu0 0.0
    %1401 = vmatprep.subr.mxu0 0.0
    %1402 = vmatpush1.msra.mxu0 0.0
    %1403 = vmatprep.subr.mxu0 0.0
    %1404 = vmatpush1.msra.mxu0 0.0
    %1405 = vmatprep.subr.mxu0 0.0
    %1406 = vmatpush1.msra.mxu0 0.0
    %1407 = vmatprep.subr.mxu0 0.0
    %1408 = vmatpush1.msra.mxu0 0.0
    %1409 = vmatprep.subr.mxu0 0.0
    %1410 = vmatpush1.msra.mxu0 0.0
    %1411 = vmatprep.subr.mxu0 0.0
    %1412 = vmatpush1.msra.mxu0 0.0
    %1413 = vmatprep.subr.mxu0 0.0
    %1414 = vmatpush1.msra.mxu0 0.0
    %1415 = vmatprep.subr.mxu0 0.0
    %1416 = vmatpush1.msra.mxu0 0.0
    %1417 = vmatprep.subr.mxu0 0.0
    %1418 = vmatpush1.msra.mxu0 0.0
    %1419 = vmatprep.mubr.f32.mxu0 0.0
    %1420 = vmatmul.mubr.f32.gmra.mrb[0].mxu0 %v1213
    %v1421 = vpop.f32.mrb[0].mxu0
    %v1422 = vadd.f32 %v621, %v1421
    %v1423 = vpop.f32.mrb[0].mxu0
    %1424 = vdwg.mxu0
    %v1426 = vrot.slane %v1282, 2
    %v1428 = vadd.f32 %v244, %v1426
    %v1429 = vxor.u32 %v1428, 2147483648
    %v1430 = vmul.f32 %v1429, 1.442695
    %v1431 = vpow.pop %v1430
    %v1432 = vadd.f32 %v1431, 1.0
    %v1433 = vrcp.pop %v1432
    %v1434 = vmul.f32 1.0, %v1433
    %v1436 = vrot.slane %v1352, 2
    %v1438 = vadd.f32 %v333, %v1436
    %v1439 = vxor.u32 %v1438, 2147483648
    %v1440 = vmul.f32 %v1439, 1.442695
    %v1441 = vpow.pop %v1440
    %v1442 = vadd.f32 %v1441, 1.0
    %v1443 = vrcp.pop %v1442
    %v1444 = vmul.f32 1.0, %v1443
    %v1446 = vrot.slane %v1422, 2
    %v1448 = vmul.f32 %v1434, %v1446
    %v1449 = vadd.f32 %v422, %v1448
    %v1450 = vtanh.pop %v1449
    %v1451 = vsub.f32 1.0, %v1444
    %v1452 = vmul.f32 %v1451, %v1450
    %v1453 = vrot.slane %v1208, 6
    %v1455 = vmul.f32 %v1444, %v1453
    %v1456 = vadd.f32 %v1452, %v1455
    %vm1457 = vcmask 523270
    %1458 = vst.msk [vmem:[#allocation2] sm:$0xc0] %vm1457, %v1456
    %v1460 = vrot.slane %v1456, 6
    %v1461 = vsel %vm467, %v1460, 0
    %1463 = vmatprep.subr.mxu0 0.0
    %1464 = vmatpush1.msra.mxu0 %v430
    %1465 = vmatprep.subr.mxu0 0.0
    %1466 = vmatpush1.msra.mxu0 %v431
    %1467 = vmatprep.subr.mxu0 0.0
    %1468 = vmatpush1.msra.mxu0 %v432
    %1469 = vmatprep.subr.mxu0 0.0
    %1470 = vmatpush1.msra.mxu0 %v433
    %1471 = vmatprep.subr.mxu0 0.0
    %1472 = vmatpush1.msra.mxu0 %v434
    %1473 = vmatprep.subr.mxu0 0.0
    %1474 = vmatpush1.msra.mxu0 %v435
    %1475 = vmatprep.subr.mxu0 0.0
    %1476 = vmatpush1.msra.mxu0 %v436
    %1477 = vmatprep.subr.mxu0 0.0
    %1478 = vmatpush1.msra.mxu0 %v437
    %1479 = vmatprep.subr.mxu0 0.0
    %1480 = vmatpush1.msra.mxu0 0.0
    %1481 = vmatprep.subr.mxu0 0.0
    %1482 = vmatpush1.msra.mxu0 0.0
    %1483 = vmatprep.subr.mxu0 0.0
    %1484 = vmatpush1.msra.mxu0 0.0
    %1485 = vmatprep.subr.mxu0 0.0
    %1486 = vmatpush1.msra.mxu0 0.0
    %1487 = vmatprep.subr.mxu0 0.0
    %1488 = vmatpush1.msra.mxu0 0.0
    %1489 = vmatprep.subr.mxu0 0.0
    %1490 = vmatpush1.msra.mxu0 0.0
    %1491 = vmatprep.subr.mxu0 0.0
    %1492 = vmatpush1.msra.mxu0 0.0
    %1493 = vmatprep.subr.mxu0 0.0
    %1494 = vmatpush1.msra.mxu0 0.0
    %1495 = vmatprep.subr.mxu0 0.0
    %1496 = vmatpush1.msra.mxu0 0.0
    %1497 = vmatprep.subr.mxu0 0.0
    %1498 = vmatpush1.msra.mxu0 0.0
    %1499 = vmatprep.subr.mxu0 0.0
    %1500 = vmatpush1.msra.mxu0 0.0
    %1501 = vmatprep.subr.mxu0 0.0
    %1502 = vmatpush1.msra.mxu0 0.0
    %1503 = vmatprep.subr.mxu0 0.0
    %1504 = vmatpush1.msra.mxu0 0.0
    %1505 = vmatprep.subr.mxu0 0.0
    %1506 = vmatpush1.msra.mxu0 0.0
    %1507 = vmatprep.subr.mxu0 0.0
    %1508 = vmatpush1.msra.mxu0 0.0
    %1509 = vmatprep.subr.mxu0 0.0
    %1510 = vmatpush1.msra.mxu0 0.0
    %1511 = vmatprep.subr.mxu0 0.0
    %1512 = vmatpush1.msra.mxu0 0.0
    %1513 = vmatprep.subr.mxu0 0.0
    %1514 = vmatpush1.msra.mxu0 0.0
    %1515 = vmatprep.subr.mxu0 0.0
    %1516 = vmatpush1.msra.mxu0 0.0
    %1517 = vmatprep.subr.mxu0 0.0
    %1518 = vmatpush1.msra.mxu0 0.0
    %1519 = vmatprep.subr.mxu0 0.0
    %1520 = vmatpush1.msra.mxu0 0.0
    %1521 = vmatprep.subr.mxu0 0.0
    %1522 = vmatpush1.msra.mxu0 0.0
    %1523 = vmatprep.subr.mxu0 0.0
    %1524 = vmatpush1.msra.mxu0 0.0
    %1525 = vmatprep.subr.mxu0 0.0
    %1526 = vmatpush1.msra.mxu0 0.0
    %1527 = vmatprep.mubr.f32.mxu0 0.0
    %1528 = vmatmul.mubr.f32.gmra.mrb[0].mxu0 %v1461
    %v1529 = vpop.f32.mrb[0].mxu0
    %v1530 = vadd.f32 %v465, %v1529
    %v1531 = vpop.f32.mrb[0].mxu0
    %1532 = vdwg.mxu0
    %1533 = vmatprep.subr.mxu0 0.0
    %1534 = vmatpush1.msra.mxu0 %v439
    %1535 = vmatprep.subr.mxu0 0.0
    %1536 = vmatpush1.msra.mxu0 %v440
    %1537 = vmatprep.subr.mxu0 0.0
    %1538 = vmatpush1.msra.mxu0 %v441
    %1539 = vmatprep.subr.mxu0 0.0
    %1540 = vmatpush1.msra.mxu0 %v442
    %1541 = vmatprep.subr.mxu0 0.0
    %1542 = vmatpush1.msra.mxu0 %v443
    %1543 = vmatprep.subr.mxu0 0.0
    %1544 = vmatpush1.msra.mxu0 %v444
    %1545 = vmatprep.subr.mxu0 0.0
    %1546 = vmatpush1.msra.mxu0 %v445
    %1547 = vmatprep.subr.mxu0 0.0
    %1548 = vmatpush1.msra.mxu0 %v446
    %1549 = vmatprep.subr.mxu0 0.0
    %1550 = vmatpush1.msra.mxu0 0.0
    %1551 = vmatprep.subr.mxu0 0.0
    %1552 = vmatpush1.msra.mxu0 0.0
    %1553 = vmatprep.subr.mxu0 0.0
    %1554 = vmatpush1.msra.mxu0 0.0
    %1555 = vmatprep.subr.mxu0 0.0
    %1556 = vmatpush1.msra.mxu0 0.0
    %1557 = vmatprep.subr.mxu0 0.0
    %1558 = vmatpush1.msra.mxu0 0.0
    %1559 = vmatprep.subr.mxu0 0.0
    %1560 = vmatpush1.msra.mxu0 0.0
    %1561 = vmatprep.subr.mxu0 0.0
    %1562 = vmatpush1.msra.mxu0 0.0
    %1563 = vmatprep.subr.mxu0 0.0
    %1564 = vmatpush1.msra.mxu0 0.0
    %1565 = vmatprep.subr.mxu0 0.0
    %1566 = vmatpush1.msra.mxu0 0.0
    %1567 = vmatprep.subr.mxu0 0.0
    %1568 = vmatpush1.msra.mxu0 0.0
    %1569 = vmatprep.subr.mxu0 0.0
    %1570 = vmatpush1.msra.mxu0 0.0
    %1571 = vmatprep.subr.mxu0 0.0
    %1572 = vmatpush1.msra.mxu0 0.0
    %1573 = vmatprep.subr.mxu0 0.0
    %1574 = vmatpush1.msra.mxu0 0.0
    %1575 = vmatprep.subr.mxu0 0.0
    %1576 = vmatpush1.msra.mxu0 0.0
    %1577 = vmatprep.subr.mxu0 0.0
    %1578 = vmatpush1.msra.mxu0 0.0
    %1579 = vmatprep.subr.mxu0 0.0
    %1580 = vmatpush1.msra.mxu0 0.0
    %1581 = vmatprep.subr.mxu0 0.0
    %1582 = vmatpush1.msra.mxu0 0.0
    %1583 = vmatprep.subr.mxu0 0.0
    %1584 = vmatpush1.msra.mxu0 0.0
    %1585 = vmatprep.subr.mxu0 0.0
    %1586 = vmatpush1.msra.mxu0 0.0
    %1587 = vmatprep.subr.mxu0 0.0
    %1588 = vmatpush1.msra.mxu0 0.0
    %1589 = vmatprep.subr.mxu0 0.0
    %1590 = vmatpush1.msra.mxu0 0.0
    %1591 = vmatprep.subr.mxu0 0.0
    %1592 = vmatpush1.msra.mxu0 0.0
    %1593 = vmatprep.subr.mxu0 0.0
    %1594 = vmatpush1.msra.mxu0 0.0
    %1595 = vmatprep.subr.mxu0 0.0
    %1596 = vmatpush1.msra.mxu0 0.0
    %1597 = vmatprep.mubr.f32.mxu0 0.0
    %1598 = vmatmul.mubr.f32.gmra.mrb[0].mxu0 %v1461
    %v1599 = vpop.f32.mrb[0].mxu0
    %v1600 = vadd.f32 %v545, %v1599
    %v1601 = vpop.f32.mrb[0].mxu0
    %1602 = vdwg.mxu0
    %1603 = vmatprep.subr.mxu0 0.0
    %1604 = vmatpush1.msra.mxu0 %v448
    %1605 = vmatprep.subr.mxu0 0.0
    %1606 = vmatpush1.msra.mxu0 %v449
    %1607 = vmatprep.subr.mxu0 0.0
    %1608 = vmatpush1.msra.mxu0 %v450
    %1609 = vmatprep.subr.mxu0 0.0
    %1610 = vmatpush1.msra.mxu0 %v451
    %1611 = vmatprep.subr.mxu0 0.0
    %1612 = vmatpush1.msra.mxu0 %v452
    %1613 = vmatprep.subr.mxu0 0.0
    %1614 = vmatpush1.msra.mxu0 %v453
    %1615 = vmatprep.subr.mxu0 0.0
    %1616 = vmatpush1.msra.mxu0 %v454
    %1617 = vmatprep.subr.mxu0 0.0
    %1618 = vmatpush1.msra.mxu0 %v455
    %1619 = vmatprep.subr.mxu0 0.0
    %1620 = vmatpush1.msra.mxu0 0.0
    %1621 = vmatprep.subr.mxu0 0.0
    %1622 = vmatpush1.msra.mxu0 0.0
    %1623 = vmatprep.subr.mxu0 0.0
    %1624 = vmatpush1.msra.mxu0 0.0
    %1625 = vmatprep.subr.mxu0 0.0
    %1626 = vmatpush1.msra.mxu0 0.0
    %1627 = vmatprep.subr.mxu0 0.0
    %1628 = vmatpush1.msra.mxu0 0.0
    %1629 = vmatprep.subr.mxu0 0.0
    %1630 = vmatpush1.msra.mxu0 0.0
    %1631 = vmatprep.subr.mxu0 0.0
    %1632 = vmatpush1.msra.mxu0 0.0
    %1633 = vmatprep.subr.mxu0 0.0
    %1634 = vmatpush1.msra.mxu0 0.0
    %1635 = vmatprep.subr.mxu0 0.0
    %1636 = vmatpush1.msra.mxu0 0.0
    %1637 = vmatprep.subr.mxu0 0.0
    %1638 = vmatpush1.msra.mxu0 0.0
    %1639 = vmatprep.subr.mxu0 0.0
    %1640 = vmatpush1.msra.mxu0 0.0
    %1641 = vmatprep.subr.mxu0 0.0
    %1642 = vmatpush1.msra.mxu0 0.0
    %1643 = vmatprep.subr.mxu0 0.0
    %1644 = vmatpush1.msra.mxu0 0.0
    %1645 = vmatprep.subr.mxu0 0.0
    %1646 = vmatpush1.msra.mxu0 0.0
    %1647 = vmatprep.subr.mxu0 0.0
    %1648 = vmatpush1.msra.mxu0 0.0
    %1649 = vmatprep.subr.mxu0 0.0
    %1650 = vmatpush1.msra.mxu0 0.0
    %1651 = vmatprep.subr.mxu0 0.0
    %1652 = vmatpush1.msra.mxu0 0.0
    %1653 = vmatprep.subr.mxu0 0.0
    %1654 = vmatpush1.msra.mxu0 0.0
    %1655 = vmatprep.subr.mxu0 0.0
    %1656 = vmatpush1.msra.mxu0 0.0
    %1657 = vmatprep.subr.mxu0 0.0
    %1658 = vmatpush1.msra.mxu0 0.0
    %1659 = vmatprep.subr.mxu0 0.0
    %1660 = vmatpush1.msra.mxu0 0.0
    %1661 = vmatprep.subr.mxu0 0.0
    %1662 = vmatpush1.msra.mxu0 0.0
    %1663 = vmatprep.subr.mxu0 0.0
    %1664 = vmatpush1.msra.mxu0 0.0
    %1665 = vmatprep.subr.mxu0 0.0
    %1666 = vmatpush1.msra.mxu0 0.0
    %1667 = vmatprep.mubr.f32.mxu0 0.0
    %1668 = vmatmul.mubr.f32.gmra.mrb[0].mxu0 %v1461
    %v1669 = vpop.f32.mrb[0].mxu0
    %v1670 = vadd.f32 %v621, %v1669
    %v1671 = vpop.f32.mrb[0].mxu0
    %1672 = vdwg.mxu0
    %v1673 = vadd.f32 %v249, %v1530
    %v1674 = vxor.u32 %v1673, 2147483648
    %v1675 = vmul.f32 %v1674, 1.442695
    %v1676 = vpow.pop %v1675
    %v1677 = vadd.f32 %v1676, 1.0
    %v1678 = vrcp.pop %v1677
    %v1679 = vmul.f32 1.0, %v1678
    %v1680 = vadd.f32 %v338, %v1600
    %v1681 = vxor.u32 %v1680, 2147483648
    %v1682 = vmul.f32 %v1681, 1.442695
    %v1683 = vpow.pop %v1682
    %v1684 = vadd.f32 %v1683, 1.0
    %v1685 = vrcp.pop %v1684
    %v1686 = vmul.f32 1.0, %v1685
    %v1687 = vmul.f32 %v1679, %v1670
    %v1688 = vadd.f32 %v427, %v1687
    %v1689 = vtanh.pop %v1688
    %v1690 = vsub.f32 1.0, %v1686
    %v1691 = vmul.f32 %v1690, %v1689
    %v1693 = vmul.f32 %v1686, %v1460
    %v1694 = vadd.f32 %v1691, %v1693
    %1695 = vst.msk [vmem:[#allocation2 + $0x8] sm:$0x3] %vm714, %v1694
    %v1697 = vsel %vm467, %v1694, 0
    %1699 = vmatprep.subr.mxu0 0.0
    %1700 = vmatpush1.msra.mxu0 %v430
    %1701 = vmatprep.subr.mxu0 0.0
    %1702 = vmatpush1.msra.mxu0 %v431
    %1703 = vmatprep.subr.mxu0 0.0
    %1704 = vmatpush1.msra.mxu0 %v432
    %1705 = vmatprep.subr.mxu0 0.0
    %1706 = vmatpush1.msra.mxu0 %v433
    %1707 = vmatprep.subr.mxu0 0.0
    %1708 = vmatpush1.msra.mxu0 %v434
    %1709 = vmatprep.subr.mxu0 0.0
    %1710 = vmatpush1.msra.mxu0 %v435
    %1711 = vmatprep.subr.mxu0 0.0
    %1712 = vmatpush1.msra.mxu0 %v436
    %1713 = vmatprep.subr.mxu0 0.0
    %1714 = vmatpush1.msra.mxu0 %v437
    %1715 = vmatprep.subr.mxu0 0.0
    %1716 = vmatpush1.msra.mxu0 0.0
    %1717 = vmatprep.subr.mxu0 0.0
    %1718 = vmatpush1.msra.mxu0 0.0
    %1719 = vmatprep.subr.mxu0 0.0
    %1720 = vmatpush1.msra.mxu0 0.0
    %1721 = vmatprep.subr.mxu0 0.0
    %1722 = vmatpush1.msra.mxu0 0.0
    %1723 = vmatprep.subr.mxu0 0.0
    %1724 = vmatpush1.msra.mxu0 0.0
    %1725 = vmatprep.subr.mxu0 0.0
    %1726 = vmatpush1.msra.mxu0 0.0
    %1727 = vmatprep.subr.mxu0 0.0
    %1728 = vmatpush1.msra.mxu0 0.0
    %1729 = vmatprep.subr.mxu0 0.0
    %1730 = vmatpush1.msra.mxu0 0.0
    %1731 = vmatprep.subr.mxu0 0.0
    %1732 = vmatpush1.msra.mxu0 0.0
    %1733 = vmatprep.subr.mxu0 0.0
    %1734 = vmatpush1.msra.mxu0 0.0
    %1735 = vmatprep.subr.mxu0 0.0
    %1736 = vmatpush1.msra.mxu0 0.0
    %1737 = vmatprep.subr.mxu0 0.0
    %1738 = vmatpush1.msra.mxu0 0.0
    %1739 = vmatprep.subr.mxu0 0.0
    %1740 = vmatpush1.msra.mxu0 0.0
    %1741 = vmatprep.subr.mxu0 0.0
    %1742 = vmatpush1.msra.mxu0 0.0
    %1743 = vmatprep.subr.mxu0 0.0
    %1744 = vmatpush1.msra.mxu0 0.0
    %1745 = vmatprep.subr.mxu0 0.0
    %1746 = vmatpush1.msra.mxu0 0.0
    %1747 = vmatprep.subr.mxu0 0.0
    %1748 = vmatpush1.msra.mxu0 0.0
    %1749 = vmatprep.subr.mxu0 0.0
    %1750 = vmatpush1.msra.mxu0 0.0
    %1751 = vmatprep.subr.mxu0 0.0
    %1752 = vmatpush1.msra.mxu0 0.0
    %1753 = vmatprep.subr.mxu0 0.0
    %1754 = vmatpush1.msra.mxu0 0.0
    %1755 = vmatprep.subr.mxu0 0.0
    %1756 = vmatpush1.msra.mxu0 0.0
    %1757 = vmatprep.subr.mxu0 0.0
    %1758 = vmatpush1.msra.mxu0 0.0
    %1759 = vmatprep.subr.mxu0 0.0
    %1760 = vmatpush1.msra.mxu0 0.0
    %1761 = vmatprep.subr.mxu0 0.0
    %1762 = vmatpush1.msra.mxu0 0.0
    %1763 = vmatprep.mubr.f32.mxu0 0.0
    %1764 = vmatmul.mubr.f32.gmra.mrb[0].mxu0 %v1697
    %v1765 = vpop.f32.mrb[0].mxu0
    %v1766 = vadd.f32 %v465, %v1765
    %v1767 = vpop.f32.mrb[0].mxu0
    %1768 = vdwg.mxu0
    %1769 = vmatprep.subr.mxu0 0.0
    %1770 = vmatpush1.msra.mxu0 %v439
    %1771 = vmatprep.subr.mxu0 0.0
    %1772 = vmatpush1.msra.mxu0 %v440
    %1773 = vmatprep.subr.mxu0 0.0
    %1774 = vmatpush1.msra.mxu0 %v441
    %1775 = vmatprep.subr.mxu0 0.0
    %1776 = vmatpush1.msra.mxu0 %v442
    %1777 = vmatprep.subr.mxu0 0.0
    %1778 = vmatpush1.msra.mxu0 %v443
    %1779 = vmatprep.subr.mxu0 0.0
    %1780 = vmatpush1.msra.mxu0 %v444
    %1781 = vmatprep.subr.mxu0 0.0
    %1782 = vmatpush1.msra.mxu0 %v445
    %1783 = vmatprep.subr.mxu0 0.0
    %1784 = vmatpush1.msra.mxu0 %v446
    %1785 = vmatprep.subr.mxu0 0.0
    %1786 = vmatpush1.msra.mxu0 0.0
    %1787 = vmatprep.subr.mxu0 0.0
    %1788 = vmatpush1.msra.mxu0 0.0
    %1789 = vmatprep.subr.mxu0 0.0
    %1790 = vmatpush1.msra.mxu0 0.0
    %1791 = vmatprep.subr.mxu0 0.0
    %1792 = vmatpush1.msra.mxu0 0.0
    %1793 = vmatprep.subr.mxu0 0.0
    %1794 = vmatpush1.msra.mxu0 0.0
    %1795 = vmatprep.subr.mxu0 0.0
    %1796 = vmatpush1.msra.mxu0 0.0
    %1797 = vmatprep.subr.mxu0 0.0
    %1798 = vmatpush1.msra.mxu0 0.0
    %1799 = vmatprep.subr.mxu0 0.0
    %1800 = vmatpush1.msra.mxu0 0.0
    %1801 = vmatprep.subr.mxu0 0.0
    %1802 = vmatpush1.msra.mxu0 0.0
    %1803 = vmatprep.subr.mxu0 0.0
    %1804 = vmatpush1.msra.mxu0 0.0
    %1805 = vmatprep.subr.mxu0 0.0
    %1806 = vmatpush1.msra.mxu0 0.0
    %1807 = vmatprep.subr.mxu0 0.0
    %1808 = vmatpush1.msra.mxu0 0.0
    %1809 = vmatprep.subr.mxu0 0.0
    %1810 = vmatpush1.msra.mxu0 0.0
    %1811 = vmatprep.subr.mxu0 0.0
    %1812 = vmatpush1.msra.mxu0 0.0
    %1813 = vmatprep.subr.mxu0 0.0
    %1814 = vmatpush1.msra.mxu0 0.0
    %1815 = vmatprep.subr.mxu0 0.0
    %1816 = vmatpush1.msra.mxu0 0.0
    %1817 = vmatprep.subr.mxu0 0.0
    %1818 = vmatpush1.msra.mxu0 0.0
    %1819 = vmatprep.subr.mxu0 0.0
    %1820 = vmatpush1.msra.mxu0 0.0
    %1821 = vmatprep.subr.mxu0 0.0
    %1822 = vmatpush1.msra.mxu0 0.0
    %1823 = vmatprep.subr.mxu0 0.0
    %1824 = vmatpush1.msra.mxu0 0.0
    %1825 = vmatprep.subr.mxu0 0.0
    %1826 = vmatpush1.msra.mxu0 0.0
    %1827 = vmatprep.subr.mxu0 0.0
    %1828 = vmatpush1.msra.mxu0 0.0
    %1829 = vmatprep.subr.mxu0 0.0
    %1830 = vmatpush1.msra.mxu0 0.0
    %1831 = vmatprep.subr.mxu0 0.0
    %1832 = vmatpush1.msra.mxu0 0.0
    %1833 = vmatprep.mubr.f32.mxu0 0.0
    %1834 = vmatmul.mubr.f32.gmra.mrb[0].mxu0 %v1697
    %v1835 = vpop.f32.mrb[0].mxu0
    %v1836 = vadd.f32 %v545, %v1835
    %v1837 = vpop.f32.mrb[0].mxu0
    %1838 = vdwg.mxu0
    %1839 = vmatprep.subr.mxu0 0.0
    %1840 = vmatpush1.msra.mxu0 %v448
    %1841 = vmatprep.subr.mxu0 0.0
    %1842 = vmatpush1.msra.mxu0 %v449
    %1843 = vmatprep.subr.mxu0 0.0
    %1844 = vmatpush1.msra.mxu0 %v450
    %1845 = vmatprep.subr.mxu0 0.0
    %1846 = vmatpush1.msra.mxu0 %v451
    %1847 = vmatprep.subr.mxu0 0.0
    %1848 = vmatpush1.msra.mxu0 %v452
    %1849 = vmatprep.subr.mxu0 0.0
    %1850 = vmatpush1.msra.mxu0 %v453
    %1851 = vmatprep.subr.mxu0 0.0
    %1852 = vmatpush1.msra.mxu0 %v454
    %1853 = vmatprep.subr.mxu0 0.0
    %1854 = vmatpush1.msra.mxu0 %v455
    %1855 = vmatprep.subr.mxu0 0.0
    %1856 = vmatpush1.msra.mxu0 0.0
    %1857 = vmatprep.subr.mxu0 0.0
    %1858 = vmatpush1.msra.mxu0 0.0
    %1859 = vmatprep.subr.mxu0 0.0
    %1860 = vmatpush1.msra.mxu0 0.0
    %1861 = vmatprep.subr.mxu0 0.0
    %1862 = vmatpush1.msra.mxu0 0.0
    %1863 = vmatprep.subr.mxu0 0.0
    %1864 = vmatpush1.msra.mxu0 0.0
    %1865 = vmatprep.subr.mxu0 0.0
    %1866 = vmatpush1.msra.mxu0 0.0
    %1867 = vmatprep.subr.mxu0 0.0
    %1868 = vmatpush1.msra.mxu0 0.0
    %1869 = vmatprep.subr.mxu0 0.0
    %1870 = vmatpush1.msra.mxu0 0.0
    %1871 = vmatprep.subr.mxu0 0.0
    %1872 = vmatpush1.msra.mxu0 0.0
    %1873 = vmatprep.subr.mxu0 0.0
    %1874 = vmatpush1.msra.mxu0 0.0
    %1875 = vmatprep.subr.mxu0 0.0
    %1876 = vmatpush1.msra.mxu0 0.0
    %1877 = vmatprep.subr.mxu0 0.0
    %1878 = vmatpush1.msra.mxu0 0.0
    %1879 = vmatprep.subr.mxu0 0.0
    %1880 = vmatpush1.msra.mxu0 0.0
    %1881 = vmatprep.subr.mxu0 0.0
    %1882 = vmatpush1.msra.mxu0 0.0
    %1883 = vmatprep.subr.mxu0 0.0
    %1884 = vmatpush1.msra.mxu0 0.0
    %1885 = vmatprep.subr.mxu0 0.0
    %1886 = vmatpush1.msra.mxu0 0.0
    %1887 = vmatprep.subr.mxu0 0.0
    %1888 = vmatpush1.msra.mxu0 0.0
    %1889 = vmatprep.subr.mxu0 0.0
    %1890 = vmatpush1.msra.mxu0 0.0
    %1891 = vmatprep.subr.mxu0 0.0
    %1892 = vmatpush1.msra.mxu0 0.0
    %1893 = vmatprep.subr.mxu0 0.0
    %1894 = vmatpush1.msra.mxu0 0.0
    %1895 = vmatprep.subr.mxu0 0.0
    %1896 = vmatpush1.msra.mxu0 0.0
    %1897 = vmatprep.subr.mxu0 0.0
    %1898 = vmatpush1.msra.mxu0 0.0
    %1899 = vmatprep.subr.mxu0 0.0
    %1900 = vmatpush1.msra.mxu0 0.0
    %1901 = vmatprep.subr.mxu0 0.0
    %1902 = vmatpush1.msra.mxu0 0.0
    %1903 = vmatprep.mubr.f32.mxu0 0.0
    %1904 = vmatmul.mubr.f32.gmra.mrb[0].mxu0 %v1697
    %v1905 = vpop.f32.mrb[0].mxu0
    %v1906 = vadd.f32 %v621, %v1905
    %v1907 = vpop.f32.mrb[0].mxu0
    %1908 = vdwg.mxu0
    %v1910 = vrot.slane %v1766, 6
    %v1912 = vadd.f32 %v249, %v1910
    %v1913 = vxor.u32 %v1912, 2147483648
    %v1914 = vmul.f32 %v1913, 1.442695
    %v1915 = vpow.pop %v1914
    %v1916 = vadd.f32 %v1915, 1.0
    %v1917 = vrcp.pop %v1916
    %v1918 = vmul.f32 1.0, %v1917
    %v1920 = vrot.slane %v1836, 6
    %v1922 = vadd.f32 %v338, %v1920
    %v1923 = vxor.u32 %v1922, 2147483648
    %v1924 = vmul.f32 %v1923, 1.442695
    %v1925 = vpow.pop %v1924
    %v1926 = vadd.f32 %v1925, 1.0
    %v1927 = vrcp.pop %v1926
    %v1928 = vmul.f32 1.0, %v1927
    %v1930 = vrot.slane %v1906, 6
    %v1932 = vmul.f32 %v1918, %v1930
    %v1933 = vadd.f32 %v427, %v1932
    %v1934 = vtanh.pop %v1933
    %v1935 = vsub.f32 1.0, %v1928
    %v1936 = vmul.f32 %v1935, %v1934
    %v1937 = vrot.slane %v1694, 6
    %v1939 = vmul.f32 %v1928, %v1937
    %v1940 = vadd.f32 %v1936, %v1939
    %1941 = vst.msk [vmem:[#allocation2 + $0x8] sm:$0xc] %vm961, %v1940
    %v1943 = vrot.slane %v1940, 2
    %v1944 = vsel %vm467, %v1943, 0
    %1946 = vmatprep.subr.mxu0 0.0
    %1947 = vmatpush1.msra.mxu0 %v430
    %1948 = vmatprep.subr.mxu0 0.0
    %1949 = vmatpush1.msra.mxu0 %v431
    %1950 = vmatprep.subr.mxu0 0.0
    %1951 = vmatpush1.msra.mxu0 %v432
    %1952 = vmatprep.subr.mxu0 0.0
    %1953 = vmatpush1.msra.mxu0 %v433
    %1954 = vmatprep.subr.mxu0 0.0
    %1955 = vmatpush1.msra.mxu0 %v434
    %1956 = vmatprep.subr.mxu0 0.0
    %1957 = vmatpush1.msra.mxu0 %v435
    %1958 = vmatprep.subr.mxu0 0.0
    %1959 = vmatpush1.msra.mxu0 %v436
    %1960 = vmatprep.subr.mxu0 0.0
    %1961 = vmatpush1.msra.mxu0 %v437
    %1962 = vmatprep.subr.mxu0 0.0
    %1963 = vmatpush1.msra.mxu0 0.0
    %1964 = vmatprep.subr.mxu0 0.0
    %1965 = vmatpush1.msra.mxu0 0.0
    %1966 = vmatprep.subr.mxu0 0.0
    %1967 = vmatpush1.msra.mxu0 0.0
    %1968 = vmatprep.subr.mxu0 0.0
    %1969 = vmatpush1.msra.mxu0 0.0
    %1970 = vmatprep.subr.mxu0 0.0
    %1971 = vmatpush1.msra.mxu0 0.0
    %1972 = vmatprep.subr.mxu0 0.0
    %1973 = vmatpush1.msra.mxu0 0.0
    %1974 = vmatprep.subr.mxu0 0.0
    %1975 = vmatpush1.msra.mxu0 0.0
    %1976 = vmatprep.subr.mxu0 0.0
    %1977 = vmatpush1.msra.mxu0 0.0
    %1978 = vmatprep.subr.mxu0 0.0
    %1979 = vmatpush1.msra.mxu0 0.0
    %1980 = vmatprep.subr.mxu0 0.0
    %1981 = vmatpush1.msra.mxu0 0.0
    %1982 = vmatprep.subr.mxu0 0.0
    %1983 = vmatpush1.msra.mxu0 0.0
    %1984 = vmatprep.subr.mxu0 0.0
    %1985 = vmatpush1.msra.mxu0 0.0
    %1986 = vmatprep.subr.mxu0 0.0
    %1987 = vmatpush1.msra.mxu0 0.0
    %1988 = vmatprep.subr.mxu0 0.0
    %1989 = vmatpush1.msra.mxu0 0.0
    %1990 = vmatprep.subr.mxu0 0.0
    %1991 = vmatpush1.msra.mxu0 0.0
    %1992 = vmatprep.subr.mxu0 0.0
    %1993 = vmatpush1.msra.mxu0 0.0
    %1994 = vmatprep.subr.mxu0 0.0
    %1995 = vmatpush1.msra.mxu0 0.0
    %1996 = vmatprep.subr.mxu0 0.0
    %1997 = vmatpush1.msra.mxu0 0.0
    %1998 = vmatprep.subr.mxu0 0.0
    %1999 = vmatpush1.msra.mxu0 0.0
    %2000 = vmatprep.subr.mxu0 0.0
    %2001 = vmatpush1.msra.mxu0 0.0
    %2002 = vmatprep.subr.mxu0 0.0
    %2003 = vmatpush1.msra.mxu0 0.0
    %2004 = vmatprep.subr.mxu0 0.0
    %2005 = vmatpush1.msra.mxu0 0.0
    %2006 = vmatprep.subr.mxu0 0.0
    %2007 = vmatpush1.msra.mxu0 0.0
    %2008 = vmatprep.subr.mxu0 0.0
    %2009 = vmatpush1.msra.mxu0 0.0
    %2010 = vmatprep.mubr.f32.mxu0 0.0
    %2011 = vmatmul.mubr.f32.gmra.mrb[0].mxu0 %v1944
    %v2012 = vpop.f32.mrb[0].mxu0
    %v2013 = vadd.f32 %v465, %v2012
    %v2014 = vpop.f32.mrb[0].mxu0
    %2015 = vdwg.mxu0
    %2016 = vmatprep.subr.mxu0 0.0
    %2017 = vmatpush1.msra.mxu0 %v439
    %2018 = vmatprep.subr.mxu0 0.0
    %2019 = vmatpush1.msra.mxu0 %v440
    %2020 = vmatprep.subr.mxu0 0.0
    %2021 = vmatpush1.msra.mxu0 %v441
    %2022 = vmatprep.subr.mxu0 0.0
    %2023 = vmatpush1.msra.mxu0 %v442
    %2024 = vmatprep.subr.mxu0 0.0
    %2025 = vmatpush1.msra.mxu0 %v443
    %2026 = vmatprep.subr.mxu0 0.0
    %2027 = vmatpush1.msra.mxu0 %v444
    %2028 = vmatprep.subr.mxu0 0.0
    %2029 = vmatpush1.msra.mxu0 %v445
    %2030 = vmatprep.subr.mxu0 0.0
    %2031 = vmatpush1.msra.mxu0 %v446
    %2032 = vmatprep.subr.mxu0 0.0
    %2033 = vmatpush1.msra.mxu0 0.0
    %2034 = vmatprep.subr.mxu0 0.0
    %2035 = vmatpush1.msra.mxu0 0.0
    %2036 = vmatprep.subr.mxu0 0.0
    %2037 = vmatpush1.msra.mxu0 0.0
    %2038 = vmatprep.subr.mxu0 0.0
    %2039 = vmatpush1.msra.mxu0 0.0
    %2040 = vmatprep.subr.mxu0 0.0
    %2041 = vmatpush1.msra.mxu0 0.0
    %2042 = vmatprep.subr.mxu0 0.0
    %2043 = vmatpush1.msra.mxu0 0.0
    %2044 = vmatprep.subr.mxu0 0.0
    %2045 = vmatpush1.msra.mxu0 0.0
    %2046 = vmatprep.subr.mxu0 0.0
    %2047 = vmatpush1.msra.mxu0 0.0
    %2048 = vmatprep.subr.mxu0 0.0
    %2049 = vmatpush1.msra.mxu0 0.0
    %2050 = vmatprep.subr.mxu0 0.0
    %2051 = vmatpush1.msra.mxu0 0.0
    %2052 = vmatprep.subr.mxu0 0.0
    %2053 = vmatpush1.msra.mxu0 0.0
    %2054 = vmatprep.subr.mxu0 0.0
    %2055 = vmatpush1.msra.mxu0 0.0
    %2056 = vmatprep.subr.mxu0 0.0
    %2057 = vmatpush1.msra.mxu0 0.0
    %2058 = vmatprep.subr.mxu0 0.0
    %2059 = vmatpush1.msra.mxu0 0.0
    %2060 = vmatprep.subr.mxu0 0.0
    %2061 = vmatpush1.msra.mxu0 0.0
    %2062 = vmatprep.subr.mxu0 0.0
    %2063 = vmatpush1.msra.mxu0 0.0
    %2064 = vmatprep.subr.mxu0 0.0
    %2065 = vmatpush1.msra.mxu0 0.0
    %2066 = vmatprep.subr.mxu0 0.0
    %2067 = vmatpush1.msra.mxu0 0.0
    %2068 = vmatprep.subr.mxu0 0.0
    %2069 = vmatpush1.msra.mxu0 0.0
    %2070 = vmatprep.subr.mxu0 0.0
    %2071 = vmatpush1.msra.mxu0 0.0
    %2072 = vmatprep.subr.mxu0 0.0
    %2073 = vmatpush1.msra.mxu0 0.0
    %2074 = vmatprep.subr.mxu0 0.0
    %2075 = vmatpush1.msra.mxu0 0.0
    %2076 = vmatprep.subr.mxu0 0.0
    %2077 = vmatpush1.msra.mxu0 0.0
    %2078 = vmatprep.subr.mxu0 0.0
    %2079 = vmatpush1.msra.mxu0 0.0
    %2080 = vmatprep.mubr.f32.mxu0 0.0
    %2081 = vmatmul.mubr.f32.gmra.mrb[0].mxu0 %v1944
    %v2082 = vpop.f32.mrb[0].mxu0
    %v2083 = vadd.f32 %v545, %v2082
    %v2084 = vpop.f32.mrb[0].mxu0
    %2085 = vdwg.mxu0
    %2086 = vmatprep.subr.mxu0 0.0
    %2087 = vmatpush1.msra.mxu0 %v448
    %2088 = vmatprep.subr.mxu0 0.0
    %2089 = vmatpush1.msra.mxu0 %v449
    %2090 = vmatprep.subr.mxu0 0.0
    %2091 = vmatpush1.msra.mxu0 %v450
    %2092 = vmatprep.subr.mxu0 0.0
    %2093 = vmatpush1.msra.mxu0 %v451
    %2094 = vmatprep.subr.mxu0 0.0
    %2095 = vmatpush1.msra.mxu0 %v452
    %2096 = vmatprep.subr.mxu0 0.0
    %2097 = vmatpush1.msra.mxu0 %v453
    %2098 = vmatprep.subr.mxu0 0.0
    %2099 = vmatpush1.msra.mxu0 %v454
    %2100 = vmatprep.subr.mxu0 0.0
    %2101 = vmatpush1.msra.mxu0 %v455
    %2102 = vmatprep.subr.mxu0 0.0
    %2103 = vmatpush1.msra.mxu0 0.0
    %2104 = vmatprep.subr.mxu0 0.0
    %2105 = vmatpush1.msra.mxu0 0.0
    %2106 = vmatprep.subr.mxu0 0.0
    %2107 = vmatpush1.msra.mxu0 0.0
    %2108 = vmatprep.subr.mxu0 0.0
    %2109 = vmatpush1.msra.mxu0 0.0
    %2110 = vmatprep.subr.mxu0 0.0
    %2111 = vmatpush1.msra.mxu0 0.0
    %2112 = vmatprep.subr.mxu0 0.0
    %2113 = vmatpush1.msra.mxu0 0.0
    %2114 = vmatprep.subr.mxu0 0.0
    %2115 = vmatpush1.msra.mxu0 0.0
    %2116 = vmatprep.subr.mxu0 0.0
    %2117 = vmatpush1.msra.mxu0 0.0
    %2118 = vmatprep.subr.mxu0 0.0
    %2119 = vmatpush1.msra.mxu0 0.0
    %2120 = vmatprep.subr.mxu0 0.0
    %2121 = vmatpush1.msra.mxu0 0.0
    %2122 = vmatprep.subr.mxu0 0.0
    %2123 = vmatpush1.msra.mxu0 0.0
    %2124 = vmatprep.subr.mxu0 0.0
    %2125 = vmatpush1.msra.mxu0 0.0
    %2126 = vmatprep.subr.mxu0 0.0
    %2127 = vmatpush1.msra.mxu0 0.0
    %2128 = vmatprep.subr.mxu0 0.0
    %2129 = vmatpush1.msra.mxu0 0.0
    %2130 = vmatprep.subr.mxu0 0.0
    %2131 = vmatpush1.msra.mxu0 0.0
    %2132 = vmatprep.subr.mxu0 0.0
    %2133 = vmatpush1.msra.mxu0 0.0
    %2134 = vmatprep.subr.mxu0 0.0
    %2135 = vmatpush1.msra.mxu0 0.0
    %2136 = vmatprep.subr.mxu0 0.0
    %2137 = vmatpush1.msra.mxu0 0.0
    %2138 = vmatprep.subr.mxu0 0.0
    %2139 = vmatpush1.msra.mxu0 0.0
    %2140 = vmatprep.subr.mxu0 0.0
    %2141 = vmatpush1.msra.mxu0 0.0
    %2142 = vmatprep.subr.mxu0 0.0
    %2143 = vmatpush1.msra.mxu0 0.0
    %2144 = vmatprep.subr.mxu0 0.0
    %2145 = vmatpush1.msra.mxu0 0.0
    %2146 = vmatprep.subr.mxu0 0.0
    %2147 = vmatpush1.msra.mxu0 0.0
    %2148 = vmatprep.subr.mxu0 0.0
    %2149 = vmatpush1.msra.mxu0 0.0
    %2150 = vmatprep.mubr.f32.mxu0 0.0
    %2151 = vmatmul.mubr.f32.gmra.mrb[0].mxu0 %v1944
    %v2152 = vpop.f32.mrb[0].mxu0
    %v2153 = vadd.f32 %v621, %v2152
    %v2154 = vpop.f32.mrb[0].mxu0
    %2155 = vdwg.mxu0
    %v2157 = vrot.slane %v2013, 4
    %v2159 = vadd.f32 %v249, %v2157
    %v2160 = vxor.u32 %v2159, 2147483648
    %v2161 = vmul.f32 %v2160, 1.442695
    %v2162 = vpow.pop %v2161
    %v2163 = vadd.f32 %v2162, 1.0
    %v2164 = vrcp.pop %v2163
    %v2165 = vmul.f32 1.0, %v2164
    %v2167 = vrot.slane %v2083, 4
    %v2169 = vadd.f32 %v338, %v2167
    %v2170 = vxor.u32 %v2169, 2147483648
    %v2171 = vmul.f32 %v2170, 1.442695
    %v2172 = vpow.pop %v2171
    %v2173 = vadd.f32 %v2172, 1.0
    %v2174 = vrcp.pop %v2173
    %v2175 = vmul.f32 1.0, %v2174
    %v2177 = vrot.slane %v2153, 4
    %v2179 = vmul.f32 %v2165, %v2177
    %v2180 = vadd.f32 %v427, %v2179
    %v2181 = vtanh.pop %v2180
    %v2182 = vsub.f32 1.0, %v2175
    %v2183 = vmul.f32 %v2182, %v2181
    %v2184 = vrot.slane %v1940, 6
    %v2186 = vmul.f32 %v2175, %v2184
    %v2187 = vadd.f32 %v2183, %v2186
    %2188 = vst.msk [vmem:[#allocation2 + $0x8] sm:$0x30] %vm1209, %v2187
    %v2190 = vrot.slane %v2187, 4
    %v2191 = vsel %vm467, %v2190, 0
    %2193 = vmatprep.subr.mxu0 0.0
    %2194 = vmatpush1.msra.mxu0 %v430
    %2195 = vmatprep.subr.mxu0 0.0
    %2196 = vmatpush1.msra.mxu0 %v431
    %2197 = vmatprep.subr.mxu0 0.0
    %2198 = vmatpush1.msra.mxu0 %v432
    %2199 = vmatprep.subr.mxu0 0.0
    %2200 = vmatpush1.msra.mxu0 %v433
    %2201 = vmatprep.subr.mxu0 0.0
    %2202 = vmatpush1.msra.mxu0 %v434
    %2203 = vmatprep.subr.mxu0 0.0
    %2204 = vmatpush1.msra.mxu0 %v435
    %2205 = vmatprep.subr.mxu0 0.0
    %2206 = vmatpush1.msra.mxu0 %v436
    %2207 = vmatprep.subr.mxu0 0.0
    %2208 = vmatpush1.msra.mxu0 %v437
    %2209 = vmatprep.subr.mxu0 0.0
    %2210 = vmatpush1.msra.mxu0 0.0
    %2211 = vmatprep.subr.mxu0 0.0
    %2212 = vmatpush1.msra.mxu0 0.0
    %2213 = vmatprep.subr.mxu0 0.0
    %2214 = vmatpush1.msra.mxu0 0.0
    %2215 = vmatprep.subr.mxu0 0.0
    %2216 = vmatpush1.msra.mxu0 0.0
    %2217 = vmatprep.subr.mxu0 0.0
    %2218 = vmatpush1.msra.mxu0 0.0
    %2219 = vmatprep.subr.mxu0 0.0
    %2220 = vmatpush1.msra.mxu0 0.0
    %2221 = vmatprep.subr.mxu0 0.0
    %2222 = vmatpush1.msra.mxu0 0.0
    %2223 = vmatprep.subr.mxu0 0.0
    %2224 = vmatpush1.msra.mxu0 0.0
    %2225 = vmatprep.subr.mxu0 0.0
    %2226 = vmatpush1.msra.mxu0 0.0
    %2227 = vmatprep.subr.mxu0 0.0
    %2228 = vmatpush1.msra.mxu0 0.0
    %2229 = vmatprep.subr.mxu0 0.0
    %2230 = vmatpush1.msra.mxu0 0.0
    %2231 = vmatprep.subr.mxu0 0.0
    %2232 = vmatpush1.msra.mxu0 0.0
    %2233 = vmatprep.subr.mxu0 0.0
    %2234 = vmatpush1.msra.mxu0 0.0
    %2235 = vmatprep.subr.mxu0 0.0
    %2236 = vmatpush1.msra.mxu0 0.0
    %2237 = vmatprep.subr.mxu0 0.0
    %2238 = vmatpush1.msra.mxu0 0.0
    %2239 = vmatprep.subr.mxu0 0.0
    %2240 = vmatpush1.msra.mxu0 0.0
    %2241 = vmatprep.subr.mxu0 0.0
    %2242 = vmatpush1.msra.mxu0 0.0
    %2243 = vmatprep.subr.mxu0 0.0
    %2244 = vmatpush1.msra.mxu0 0.0
    %2245 = vmatprep.subr.mxu0 0.0
    %2246 = vmatpush1.msra.mxu0 0.0
    %2247 = vmatprep.subr.mxu0 0.0
    %2248 = vmatpush1.msra.mxu0 0.0
    %2249 = vmatprep.subr.mxu0 0.0
    %2250 = vmatpush1.msra.mxu0 0.0
    %2251 = vmatprep.subr.mxu0 0.0
    %2252 = vmatpush1.msra.mxu0 0.0
    %2253 = vmatprep.subr.mxu0 0.0
    %2254 = vmatpush1.msra.mxu0 0.0
    %2255 = vmatprep.subr.mxu0 0.0
    %2256 = vmatpush1.msra.mxu0 0.0
    %2257 = vmatprep.mubr.f32.mxu0 0.0
    %2258 = vmatmul.mubr.f32.gmra.mrb[0].mxu0 %v2191
    %v2259 = vpop.f32.mrb[0].mxu0
    %v2260 = vadd.f32 %v465, %v2259
    %v2261 = vpop.f32.mrb[0].mxu0
    %2262 = vdwg.mxu0
    %2263 = vmatprep.subr.mxu0 0.0
    %2264 = vmatpush1.msra.mxu0 %v439
    %2265 = vmatprep.subr.mxu0 0.0
    %2266 = vmatpush1.msra.mxu0 %v440
    %2267 = vmatprep.subr.mxu0 0.0
    %2268 = vmatpush1.msra.mxu0 %v441
    %2269 = vmatprep.subr.mxu0 0.0
    %2270 = vmatpush1.msra.mxu0 %v442
    %2271 = vmatprep.subr.mxu0 0.0
    %2272 = vmatpush1.msra.mxu0 %v443
    %2273 = vmatprep.subr.mxu0 0.0
    %2274 = vmatpush1.msra.mxu0 %v444
    %2275 = vmatprep.subr.mxu0 0.0
    %2276 = vmatpush1.msra.mxu0 %v445
    %2277 = vmatprep.subr.mxu0 0.0
    %2278 = vmatpush1.msra.mxu0 %v446
    %2279 = vmatprep.subr.mxu0 0.0
    %2280 = vmatpush1.msra.mxu0 0.0
    %2281 = vmatprep.subr.mxu0 0.0
    %2282 = vmatpush1.msra.mxu0 0.0
    %2283 = vmatprep.subr.mxu0 0.0
    %2284 = vmatpush1.msra.mxu0 0.0
    %2285 = vmatprep.subr.mxu0 0.0
    %2286 = vmatpush1.msra.mxu0 0.0
    %2287 = vmatprep.subr.mxu0 0.0
    %2288 = vmatpush1.msra.mxu0 0.0
    %2289 = vmatprep.subr.mxu0 0.0
    %2290 = vmatpush1.msra.mxu0 0.0
    %2291 = vmatprep.subr.mxu0 0.0
    %2292 = vmatpush1.msra.mxu0 0.0
    %2293 = vmatprep.subr.mxu0 0.0
    %2294 = vmatpush1.msra.mxu0 0.0
    %2295 = vmatprep.subr.mxu0 0.0
    %2296 = vmatpush1.msra.mxu0 0.0
    %2297 = vmatprep.subr.mxu0 0.0
    %2298 = vmatpush1.msra.mxu0 0.0
    %2299 = vmatprep.subr.mxu0 0.0
    %2300 = vmatpush1.msra.mxu0 0.0
    %2301 = vmatprep.subr.mxu0 0.0
    %2302 = vmatpush1.msra.mxu0 0.0
    %2303 = vmatprep.subr.mxu0 0.0
    %2304 = vmatpush1.msra.mxu0 0.0
    %2305 = vmatprep.subr.mxu0 0.0
    %2306 = vmatpush1.msra.mxu0 0.0
    %2307 = vmatprep.subr.mxu0 0.0
    %2308 = vmatpush1.msra.mxu0 0.0
    %2309 = vmatprep.subr.mxu0 0.0
    %2310 = vmatpush1.msra.mxu0 0.0
    %2311 = vmatprep.subr.mxu0 0.0
    %2312 = vmatpush1.msra.mxu0 0.0
    %2313 = vmatprep.subr.mxu0 0.0
    %2314 = vmatpush1.msra.mxu0 0.0
    %2315 = vmatprep.subr.mxu0 0.0
    %2316 = vmatpush1.msra.mxu0 0.0
    %2317 = vmatprep.subr.mxu0 0.0
    %2318 = vmatpush1.msra.mxu0 0.0
    %2319 = vmatprep.subr.mxu0 0.0
    %2320 = vmatpush1.msra.mxu0 0.0
    %2321 = vmatprep.subr.mxu0 0.0
    %2322 = vmatpush1.msra.mxu0 0.0
    %2323 = vmatprep.subr.mxu0 0.0
    %2324 = vmatpush1.msra.mxu0 0.0
    %2325 = vmatprep.subr.mxu0 0.0
    %2326 = vmatpush1.msra.mxu0 0.0
    %2327 = vmatprep.mubr.f32.mxu0 0.0
    %2328 = vmatmul.mubr.f32.gmra.mrb[0].mxu0 %v2191
    %v2329 = vpop.f32.mrb[0].mxu0
    %v2330 = vadd.f32 %v545, %v2329
    %v2331 = vpop.f32.mrb[0].mxu0
    %2332 = vdwg.mxu0
    %2333 = vmatprep.subr.mxu0 0.0
    %2334 = vmatpush1.msra.mxu0 %v448
    %2335 = vmatprep.subr.mxu0 0.0
    %2336 = vmatpush1.msra.mxu0 %v449
    %2337 = vmatprep.subr.mxu0 0.0
    %2338 = vmatpush1.msra.mxu0 %v450
    %2339 = vmatprep.subr.mxu0 0.0
    %2340 = vmatpush1.msra.mxu0 %v451
    %2341 = vmatprep.subr.mxu0 0.0
    %2342 = vmatpush1.msra.mxu0 %v452
    %2343 = vmatprep.subr.mxu0 0.0
    %2344 = vmatpush1.msra.mxu0 %v453
    %2345 = vmatprep.subr.mxu0 0.0
    %2346 = vmatpush1.msra.mxu0 %v454
    %2347 = vmatprep.subr.mxu0 0.0
    %2348 = vmatpush1.msra.mxu0 %v455
    %2349 = vmatprep.subr.mxu0 0.0
    %2350 = vmatpush1.msra.mxu0 0.0
    %2351 = vmatprep.subr.mxu0 0.0
    %2352 = vmatpush1.msra.mxu0 0.0
    %2353 = vmatprep.subr.mxu0 0.0
    %2354 = vmatpush1.msra.mxu0 0.0
    %2355 = vmatprep.subr.mxu0 0.0
    %2356 = vmatpush1.msra.mxu0 0.0
    %2357 = vmatprep.subr.mxu0 0.0
    %2358 = vmatpush1.msra.mxu0 0.0
    %2359 = vmatprep.subr.mxu0 0.0
    %2360 = vmatpush1.msra.mxu0 0.0
    %2361 = vmatprep.subr.mxu0 0.0
    %2362 = vmatpush1.msra.mxu0 0.0
    %2363 = vmatprep.subr.mxu0 0.0
    %2364 = vmatpush1.msra.mxu0 0.0
    %2365 = vmatprep.subr.mxu0 0.0
    %2366 = vmatpush1.msra.mxu0 0.0
    %2367 = vmatprep.subr.mxu0 0.0
    %2368 = vmatpush1.msra.mxu0 0.0
    %2369 = vmatprep.subr.mxu0 0.0
    %2370 = vmatpush1.msra.mxu0 0.0
    %2371 = vmatprep.subr.mxu0 0.0
    %2372 = vmatpush1.msra.mxu0 0.0
    %2373 = vmatprep.subr.mxu0 0.0
    %2374 = vmatpush1.msra.mxu0 0.0
    %2375 = vmatprep.subr.mxu0 0.0
    %2376 = vmatpush1.msra.mxu0 0.0
    %2377 = vmatprep.subr.mxu0 0.0
    %2378 = vmatpush1.msra.mxu0 0.0
    %2379 = vmatprep.subr.mxu0 0.0
    %2380 = vmatpush1.msra.mxu0 0.0
    %2381 = vmatprep.subr.mxu0 0.0
    %2382 = vmatpush1.msra.mxu0 0.0
    %2383 = vmatprep.subr.mxu0 0.0
    %2384 = vmatpush1.msra.mxu0 0.0
    %2385 = vmatprep.subr.mxu0 0.0
    %2386 = vmatpush1.msra.mxu0 0.0
    %2387 = vmatprep.subr.mxu0 0.0
    %2388 = vmatpush1.msra.mxu0 0.0
    %2389 = vmatprep.subr.mxu0 0.0
    %2390 = vmatpush1.msra.mxu0 0.0
    %2391 = vmatprep.subr.mxu0 0.0
    %2392 = vmatpush1.msra.mxu0 0.0
    %2393 = vmatprep.subr.mxu0 0.0
    %2394 = vmatpush1.msra.mxu0 0.0
    %2395 = vmatprep.subr.mxu0 0.0
    %2396 = vmatpush1.msra.mxu0 0.0
    %2397 = vmatprep.mubr.f32.mxu0 0.0
    %2398 = vmatmul.mubr.f32.gmra.mrb[0].mxu0 %v2191
    %v2399 = vpop.f32.mrb[0].mxu0
    %v2400 = vadd.f32 %v621, %v2399
    %v2401 = vpop.f32.mrb[0].mxu0
    %2402 = vdwg.mxu0
    %v2404 = vrot.slane %v2260, 2
    %v2406 = vadd.f32 %v249, %v2404
    %v2407 = vxor.u32 %v2406, 2147483648
    %v2408 = vmul.f32 %v2407, 1.442695
    %v2409 = vpow.pop %v2408
    %v2410 = vadd.f32 %v2409, 1.0
    %v2411 = vrcp.pop %v2410
    %v2412 = vmul.f32 1.0, %v2411
    %v2414 = vrot.slane %v2330, 2
    %v2416 = vadd.f32 %v338, %v2414
    %v2417 = vxor.u32 %v2416, 2147483648
    %v2418 = vmul.f32 %v2417, 1.442695
    %v2419 = vpow.pop %v2418
    %v2420 = vadd.f32 %v2419, 1.0
    %v2421 = vrcp.pop %v2420
    %v2422 = vmul.f32 1.0, %v2421
    %v2424 = vrot.slane %v2400, 2
    %v2426 = vmul.f32 %v2412, %v2424
    %v2427 = vadd.f32 %v427, %v2426
    %v2428 = vtanh.pop %v2427
    %v2429 = vsub.f32 1.0, %v2422
    %v2430 = vmul.f32 %v2429, %v2428
    %v2431 = vrot.slane %v2187, 6
    %v2433 = vmul.f32 %v2422, %v2431
    %v2434 = vadd.f32 %v2430, %v2433
    %2435 = vst.msk [vmem:[#allocation2 + $0x8] sm:$0xc0] %vm1457, %v2434
    %v2436 = vld [vmem:[#allocation2] sm:$0xff]
    %v2437 = vld [vmem:[#allocation2 + $0x8] sm:$0xff]
    %v2438 = vld [vmem:[#allocation8] sm:$0xff]
    %v2439 = vld [vmem:[#allocation8 + $0x8] sm:$0xff]
    %v2440 = vld [vmem:[#allocation8 + $0x10] sm:$0xff]
    %v2441 = vld [vmem:[#allocation8 + $0x18] sm:$0xff]
    %v2442 = vld [vmem:[#allocation8 + $0x20] sm:$0xff]
    %v2443 = vld [vmem:[#allocation8 + $0x28] sm:$0xff]
    %v2444 = vld [vmem:[#allocation8 + $0x30] sm:$0xff]
    %v2445 = vld [vmem:[#allocation8 + $0x38] sm:$0xff]
    %v2446 = vld [vmem:[%s6] sm:$0x1]
    %v2448 = vlaneseq
    %v2449 = vshrl.u32 %v2448, 7
    %v2450 = vsub.s32 0, %v2449
    %v2451 = vrot.slane %v2446, %v2450
    %v2454 = vsel %vm467, %v2436, 0
    %v2457 = vsel %vm467, %v2437, 0
    %2459 = vmatprep.subr.mxu0 0.0
    %2460 = vmatpush1.msra.mxu0 %v2438
    %2461 = vmatprep.subr.mxu0 0.0
    %2462 = vmatpush1.msra.mxu0 %v2439
    %2463 = vmatprep.subr.mxu0 0.0
    %2464 = vmatpush1.msra.mxu0 %v2440
    %2465 = vmatprep.subr.mxu0 0.0
    %2466 = vmatpush1.msra.mxu0 %v2441
    %2467 = vmatprep.subr.mxu0 0.0
    %2468 = vmatpush1.msra.mxu0 %v2442
    %2469 = vmatprep.subr.mxu0 0.0
    %2470 = vmatpush1.msra.mxu0 %v2443
    %2471 = vmatprep.subr.mxu0 0.0
    %2472 = vmatpush1.msra.mxu0 %v2444
    %2473 = vmatprep.subr.mxu0 0.0
    %2474 = vmatpush1.msra.mxu0 %v2445
    %2475 = vmatprep.subr.mxu0 0.0
    %2476 = vmatpush1.msra.mxu0 0.0
    %2477 = vmatprep.subr.mxu0 0.0
    %2478 = vmatpush1.msra.mxu0 0.0
    %2479 = vmatprep.subr.mxu0 0.0
    %2480 = vmatpush1.msra.mxu0 0.0
    %2481 = vmatprep.subr.mxu0 0.0
    %2482 = vmatpush1.msra.mxu0 0.0
    %2483 = vmatprep.subr.mxu0 0.0
    %2484 = vmatpush1.msra.mxu0 0.0
    %2485 = vmatprep.subr.mxu0 0.0
    %2486 = vmatpush1.msra.mxu0 0.0
    %2487 = vmatprep.subr.mxu0 0.0
    %2488 = vmatpush1.msra.mxu0 0.0
    %2489 = vmatprep.subr.mxu0 0.0
    %2490 = vmatpush1.msra.mxu0 0.0
    %2491 = vmatprep.subr.mxu0 0.0
    %2492 = vmatpush1.msra.mxu0 0.0
    %2493 = vmatprep.subr.mxu0 0.0
    %2494 = vmatpush1.msra.mxu0 0.0
    %2495 = vmatprep.subr.mxu0 0.0
    %2496 = vmatpush1.msra.mxu0 0.0
    %2497 = vmatprep.subr.mxu0 0.0
    %2498 = vmatpush1.msra.mxu0 0.0
    %2499 = vmatprep.subr.mxu0 0.0
    %2500 = vmatpush1.msra.mxu0 0.0
    %2501 = vmatprep.subr.mxu0 0.0
    %2502 = vmatpush1.msra.mxu0 0.0
    %2503 = vmatprep.subr.mxu0 0.0
    %2504 = vmatpush1.msra.mxu0 0.0
    %2505 = vmatprep.subr.mxu0 0.0
    %2506 = vmatpush1.msra.mxu0 0.0
    %2507 = vmatprep.subr.mxu0 0.0
    %2508 = vmatpush1.msra.mxu0 0.0
    %2509 = vmatprep.subr.mxu0 0.0
    %2510 = vmatpush1.msra.mxu0 0.0
    %2511 = vmatprep.subr.mxu0 0.0
    %2512 = vmatpush1.msra.mxu0 0.0
    %2513 = vmatprep.subr.mxu0 0.0
    %2514 = vmatpush1.msra.mxu0 0.0
    %2515 = vmatprep.subr.mxu0 0.0
    %2516 = vmatpush1.msra.mxu0 0.0
    %2517 = vmatprep.subr.mxu0 0.0
    %2518 = vmatpush1.msra.mxu0 0.0
    %2519 = vmatprep.subr.mxu0 0.0
    %2520 = vmatpush1.msra.mxu0 0.0
    %2521 = vmatprep.subr.mxu0 0.0
    %2522 = vmatpush1.msra.mxu0 0.0
    %2523 = vmatprep.mubr.f32.mxu0 0.0
    %2524 = vmatmul.mubr.f32.gmra.mrb[0].mxu0 %v2454
    %v2525 = vpop.f32.mrb[0].mxu0
    %v2526 = vadd.f32 %v2451, %v2525
    %v2527 = vpop.f32.mrb[0].mxu0
    %2528 = vmatprep.mubr.f32.mxu0 0.0
    %2529 = vmatmul.mubr.f32.gmra.mrb[0].mxu0 %v2457
    %v2530 = vpop.f32.mrb[0].mxu0
    %v2531 = vadd.f32 %v2451, %v2530
    %v2532 = vpop.f32.mrb[0].mxu0
    %2533 = vdwg.mxu0
    %s2534 = scalar_lea.vmem [#allocation8], 64
    %v2535 = vld [vmem:[%s2534] sm:$0xff]
    %v2536 = vld [vmem:[%s2534 + $0x8] sm:$0xff]
    %v2537 = vld [vmem:[%s2534 + $0x10] sm:$0xff]
    %v2538 = vld [vmem:[%s2534 + $0x18] sm:$0xff]
    %v2539 = vld [vmem:[%s2534 + $0x20] sm:$0xff]
    %v2540 = vld [vmem:[%s2534 + $0x28] sm:$0xff]
    %v2541 = vld [vmem:[%s2534 + $0x30] sm:$0xff]
    %v2542 = vld [vmem:[%s2534 + $0x38] sm:$0xff]
    %s2543 = scalar_lea.vmem %s6, 1
    %v2544 = vld [vmem:[%s2543] sm:$0x1]
    %v2546 = vlaneseq
    %v2547 = vshrl.u32 %v2546, 7
    %v2548 = vsub.s32 0, %v2547
    %v2549 = vrot.slane %v2544, %v2548
    %2551 = vmatprep.subr.mxu0 0.0
    %2552 = vmatpush1.msra.mxu0 %v2535
    %2553 = vmatprep.subr.mxu0 0.0
    %2554 = vmatpush1.msra.mxu0 %v2536
    %2555 = vmatprep.subr.mxu0 0.0
    %2556 = vmatpush1.msra.mxu0 %v2537
    %2557 = vmatprep.subr.mxu0 0.0
    %2558 = vmatpush1.msra.mxu0 %v2538
    %2559 = vmatprep.subr.mxu0 0.0
    %2560 = vmatpush1.msra.mxu0 %v2539
    %2561 = vmatprep.subr.mxu0 0.0
    %2562 = vmatpush1.msra.mxu0 %v2540
    %2563 = vmatprep.subr.mxu0 0.0
    %2564 = vmatpush1.msra.mxu0 %v2541
    %2565 = vmatprep.subr.mxu0 0.0
    %2566 = vmatpush1.msra.mxu0 %v2542
    %2567 = vmatprep.subr.mxu0 0.0
    %2568 = vmatpush1.msra.mxu0 0.0
    %2569 = vmatprep.subr.mxu0 0.0
    %2570 = vmatpush1.msra.mxu0 0.0
    %2571 = vmatprep.subr.mxu0 0.0
    %2572 = vmatpush1.msra.mxu0 0.0
    %2573 = vmatprep.subr.mxu0 0.0
    %2574 = vmatpush1.msra.mxu0 0.0
    %2575 = vmatprep.subr.mxu0 0.0
    %2576 = vmatpush1.msra.mxu0 0.0
    %2577 = vmatprep.subr.mxu0 0.0
    %2578 = vmatpush1.msra.mxu0 0.0
    %2579 = vmatprep.subr.mxu0 0.0
    %2580 = vmatpush1.msra.mxu0 0.0
    %2581 = vmatprep.subr.mxu0 0.0
    %2582 = vmatpush1.msra.mxu0 0.0
    %2583 = vmatprep.subr.mxu0 0.0
    %2584 = vmatpush1.msra.mxu0 0.0
    %2585 = vmatprep.subr.mxu0 0.0
    %2586 = vmatpush1.msra.mxu0 0.0
    %2587 = vmatprep.subr.mxu0 0.0
    %2588 = vmatpush1.msra.mxu0 0.0
    %2589 = vmatprep.subr.mxu0 0.0
    %2590 = vmatpush1.msra.mxu0 0.0
    %2591 = vmatprep.subr.mxu0 0.0
    %2592 = vmatpush1.msra.mxu0 0.0
    %2593 = vmatprep.subr.mxu0 0.0
    %2594 = vmatpush1.msra.mxu0 0.0
    %2595 = vmatprep.subr.mxu0 0.0
    %2596 = vmatpush1.msra.mxu0 0.0
    %2597 = vmatprep.subr.mxu0 0.0
    %2598 = vmatpush1.msra.mxu0 0.0
    %2599 = vmatprep.subr.mxu0 0.0
    %2600 = vmatpush1.msra.mxu0 0.0
    %2601 = vmatprep.subr.mxu0 0.0
    %2602 = vmatpush1.msra.mxu0 0.0
    %2603 = vmatprep.subr.mxu0 0.0
    %2604 = vmatpush1.msra.mxu0 0.0
    %2605 = vmatprep.subr.mxu0 0.0
    %2606 = vmatpush1.msra.mxu0 0.0
    %2607 = vmatprep.subr.mxu0 0.0
    %2608 = vmatpush1.msra.mxu0 0.0
    %2609 = vmatprep.subr.mxu0 0.0
    %2610 = vmatpush1.msra.mxu0 0.0
    %2611 = vmatprep.subr.mxu0 0.0
    %2612 = vmatpush1.msra.mxu0 0.0
    %2613 = vmatprep.subr.mxu0 0.0
    %2614 = vmatpush1.msra.mxu0 0.0
    %2615 = vmatprep.mubr.f32.mxu0 0.0
    %2616 = vmatmul.mubr.f32.gmra.mrb[0].mxu0 %v2454
    %v2617 = vpop.f32.mrb[0].mxu0
    %v2618 = vadd.f32 %v2549, %v2617
    %v2619 = vpop.f32.mrb[0].mxu0
    %2620 = vmatprep.mubr.f32.mxu0 0.0
    %2621 = vmatmul.mubr.f32.gmra.mrb[0].mxu0 %v2457
    %v2622 = vpop.f32.mrb[0].mxu0
    %v2623 = vadd.f32 %v2549, %v2622
    %v2624 = vpop.f32.mrb[0].mxu0
    %2625 = vdwg.mxu0
    %s2626 = scalar_lea.vmem [#allocation8], 128
    %v2627 = vld [vmem:[%s2626] sm:$0xff]
    %v2628 = vld [vmem:[%s2626 + $0x8] sm:$0xff]
    %v2629 = vld [vmem:[%s2626 + $0x10] sm:$0xff]
    %v2630 = vld [vmem:[%s2626 + $0x18] sm:$0xff]
    %v2631 = vld [vmem:[%s2626 + $0x20] sm:$0xff]
    %v2632 = vld [vmem:[%s2626 + $0x28] sm:$0xff]
    %v2633 = vld [vmem:[%s2626 + $0x30] sm:$0xff]
    %v2634 = vld [vmem:[%s2626 + $0x38] sm:$0xff]
    %s2635 = scalar_lea.vmem %s6, 2
    %v2636 = vld [vmem:[%s2635] sm:$0x1]
    %v2638 = vlaneseq
    %v2639 = vshrl.u32 %v2638, 7
    %v2640 = vsub.s32 0, %v2639
    %v2641 = vrot.slane %v2636, %v2640
    %2643 = vmatprep.subr.mxu0 0.0
    %2644 = vmatpush1.msra.mxu0 %v2627
    %2645 = vmatprep.subr.mxu0 0.0
    %2646 = vmatpush1.msra.mxu0 %v2628
    %2647 = vmatprep.subr.mxu0 0.0
    %2648 = vmatpush1.msra.mxu0 %v2629
    %2649 = vmatprep.subr.mxu0 0.0
    %2650 = vmatpush1.msra.mxu0 %v2630
    %2651 = vmatprep.subr.mxu0 0.0
    %2652 = vmatpush1.msra.mxu0 %v2631
    %2653 = vmatprep.subr.mxu0 0.0
    %2654 = vmatpush1.msra.mxu0 %v2632
    %2655 = vmatprep.subr.mxu0 0.0
    %2656 = vmatpush1.msra.mxu0 %v2633
    %2657 = vmatprep.subr.mxu0 0.0
    %2658 = vmatpush1.msra.mxu0 %v2634
    %2659 = vmatprep.subr.mxu0 0.0
    %2660 = vmatpush1.msra.mxu0 0.0
    %2661 = vmatprep.subr.mxu0 0.0
    %2662 = vmatpush1.msra.mxu0 0.0
    %2663 = vmatprep.subr.mxu0 0.0
    %2664 = vmatpush1.msra.mxu0 0.0
    %2665 = vmatprep.subr.mxu0 0.0
    %2666 = vmatpush1.msra.mxu0 0.0
    %2667 = vmatprep.subr.mxu0 0.0
    %2668 = vmatpush1.msra.mxu0 0.0
    %2669 = vmatprep.subr.mxu0 0.0
    %2670 = vmatpush1.msra.mxu0 0.0
    %2671 = vmatprep.subr.mxu0 0.0
    %2672 = vmatpush1.msra.mxu0 0.0
    %2673 = vmatprep.subr.mxu0 0.0
    %2674 = vmatpush1.msra.mxu0 0.0
    %2675 = vmatprep.subr.mxu0 0.0
    %2676 = vmatpush1.msra.mxu0 0.0
    %2677 = vmatprep.subr.mxu0 0.0
    %2678 = vmatpush1.msra.mxu0 0.0
    %2679 = vmatprep.subr.mxu0 0.0
    %2680 = vmatpush1.msra.mxu0 0.0
    %2681 = vmatprep.subr.mxu0 0.0
    %2682 = vmatpush1.msra.mxu0 0.0
    %2683 = vmatprep.subr.mxu0 0.0
    %2684 = vmatpush1.msra.mxu0 0.0
    %2685 = vmatprep.subr.mxu0 0.0
    %2686 = vmatpush1.msra.mxu0 0.0
    %2687 = vmatprep.subr.mxu0 0.0
    %2688 = vmatpush1.msra.mxu0 0.0
    %2689 = vmatprep.subr.mxu0 0.0
    %2690 = vmatpush1.msra.mxu0 0.0
    %2691 = vmatprep.subr.mxu0 0.0
    %2692 = vmatpush1.msra.mxu0 0.0
    %2693 = vmatprep.subr.mxu0 0.0
    %2694 = vmatpush1.msra.mxu0 0.0
    %2695 = vmatprep.subr.mxu0 0.0
    %2696 = vmatpush1.msra.mxu0 0.0
    %2697 = vmatprep.subr.mxu0 0.0
    %2698 = vmatpush1.msra.mxu0 0.0
    %2699 = vmatprep.subr.mxu0 0.0
    %2700 = vmatpush1.msra.mxu0 0.0
    %2701 = vmatprep.subr.mxu0 0.0
    %2702 = vmatpush1.msra.mxu0 0.0
    %2703 = vmatprep.subr.mxu0 0.0
    %2704 = vmatpush1.msra.mxu0 0.0
    %2705 = vmatprep.subr.mxu0 0.0
    %2706 = vmatpush1.msra.mxu0 0.0
    %2707 = vmatprep.mubr.f32.mxu0 0.0
    %2708 = vmatmul.mubr.f32.gmra.mrb[0].mxu0 %v2454
    %v2709 = vpop.f32.mrb[0].mxu0
    %v2710 = vadd.f32 %v2641, %v2709
    %v2711 = vpop.f32.mrb[0].mxu0
    %2712 = vmatprep.mubr.f32.mxu0 0.0
    %2713 = vmatmul.mubr.f32.gmra.mrb[0].mxu0 %v2457
    %v2714 = vpop.f32.mrb[0].mxu0
    %v2715 = vadd.f32 %v2641, %v2714
    %v2716 = vpop.f32.mrb[0].mxu0
    %2717 = vdwg.mxu0
    %v2718 = vld [vmem:[#allocation9] sm:$0xff]
    %v2719 = vld [vmem:[#allocation9 + $0x8] sm:$0xff]
    %v2720 = vld [vmem:[#allocation9 + $0x10] sm:$0xff]
    %v2721 = vld [vmem:[#allocation9 + $0x18] sm:$0xff]
    %v2722 = vld [vmem:[#allocation9 + $0x20] sm:$0xff]
    %v2723 = vld [vmem:[#allocation9 + $0x28] sm:$0xff]
    %v2724 = vld [vmem:[#allocation9 + $0x30] sm:$0xff]
    %v2725 = vld [vmem:[#allocation9 + $0x38] sm:$0xff]
    %s2726 = scalar_lea.vmem [#allocation9], 64
    %v2727 = vld [vmem:[%s2726] sm:$0xff]
    %v2728 = vld [vmem:[%s2726 + $0x8] sm:$0xff]
    %v2729 = vld [vmem:[%s2726 + $0x10] sm:$0xff]
    %v2730 = vld [vmem:[%s2726 + $0x18] sm:$0xff]
    %v2731 = vld [vmem:[%s2726 + $0x20] sm:$0xff]
    %v2732 = vld [vmem:[%s2726 + $0x28] sm:$0xff]
    %v2733 = vld [vmem:[%s2726 + $0x30] sm:$0xff]
    %v2734 = vld [vmem:[%s2726 + $0x38] sm:$0xff]
    %s2735 = scalar_lea.vmem [#allocation9], 128
    %v2736 = vld [vmem:[%s2735] sm:$0xff]
    %v2737 = vld [vmem:[%s2735 + $0x8] sm:$0xff]
    %v2738 = vld [vmem:[%s2735 + $0x10] sm:$0xff]
    %v2739 = vld [vmem:[%s2735 + $0x18] sm:$0xff]
    %v2740 = vld [vmem:[%s2735 + $0x20] sm:$0xff]
    %v2741 = vld [vmem:[%s2735 + $0x28] sm:$0xff]
    %v2742 = vld [vmem:[%s2735 + $0x30] sm:$0xff]
    %v2743 = vld [vmem:[%s2735 + $0x38] sm:$0xff]
    %v2744 = vld [vmem:[%s8] sm:$0x1]
    %s2745 = scalar_lea.vmem %s8, 1
    %v2746 = vld [vmem:[%s2745] sm:$0x1]
    %s2747 = scalar_lea.vmem %s8, 2
    %v2748 = vld [vmem:[%s2747] sm:$0x1]
    %v2750 = vlaneseq
    %v2751 = vshrl.u32 %v2750, 7
    %v2752 = vsub.s32 0, %v2751
    %v2753 = vrot.slane %v2744, %v2752
    %2755 = vmatprep.subr.mxu0 0.0
    %2756 = vmatpush1.msra.mxu0 %v2718
    %2757 = vmatprep.subr.mxu0 0.0
    %2758 = vmatpush1.msra.mxu0 %v2719
    %2759 = vmatprep.subr.mxu0 0.0
    %2760 = vmatpush1.msra.mxu0 %v2720
    %2761 = vmatprep.subr.mxu0 0.0
    %2762 = vmatpush1.msra.mxu0 %v2721
    %2763 = vmatprep.subr.mxu0 0.0
    %2764 = vmatpush1.msra.mxu0 %v2722
    %2765 = vmatprep.subr.mxu0 0.0
    %2766 = vmatpush1.msra.mxu0 %v2723
    %2767 = vmatprep.subr.mxu0 0.0
    %2768 = vmatpush1.msra.mxu0 %v2724
    %2769 = vmatprep.subr.mxu0 0.0
    %2770 = vmatpush1.msra.mxu0 %v2725
    %2771 = vmatprep.subr.mxu0 0.0
    %2772 = vmatpush1.msra.mxu0 0.0
    %2773 = vmatprep.subr.mxu0 0.0
    %2774 = vmatpush1.msra.mxu0 0.0
    %2775 = vmatprep.subr.mxu0 0.0
    %2776 = vmatpush1.msra.mxu0 0.0
    %2777 = vmatprep.subr.mxu0 0.0
    %2778 = vmatpush1.msra.mxu0 0.0
    %2779 = vmatprep.subr.mxu0 0.0
    %2780 = vmatpush1.msra.mxu0 0.0
    %2781 = vmatprep.subr.mxu0 0.0
    %2782 = vmatpush1.msra.mxu0 0.0
    %2783 = vmatprep.subr.mxu0 0.0
    %2784 = vmatpush1.msra.mxu0 0.0
    %2785 = vmatprep.subr.mxu0 0.0
    %2786 = vmatpush1.msra.mxu0 0.0
    %2787 = vmatprep.subr.mxu0 0.0
    %2788 = vmatpush1.msra.mxu0 0.0
    %2789 = vmatprep.subr.mxu0 0.0
    %2790 = vmatpush1.msra.mxu0 0.0
    %2791 = vmatprep.subr.mxu0 0.0
    %2792 = vmatpush1.msra.mxu0 0.0
    %2793 = vmatprep.subr.mxu0 0.0
    %2794 = vmatpush1.msra.mxu0 0.0
    %2795 = vmatprep.subr.mxu0 0.0
    %2796 = vmatpush1.msra.mxu0 0.0
    %2797 = vmatprep.subr.mxu0 0.0
    %2798 = vmatpush1.msra.mxu0 0.0
    %2799 = vmatprep.subr.mxu0 0.0
    %2800 = vmatpush1.msra.mxu0 0.0
    %2801 = vmatprep.subr.mxu0 0.0
    %2802 = vmatpush1.msra.mxu0 0.0
    %2803 = vmatprep.subr.mxu0 0.0
    %2804 = vmatpush1.msra.mxu0 0.0
    %2805 = vmatprep.subr.mxu0 0.0
    %2806 = vmatpush1.msra.mxu0 0.0
    %2807 = vmatprep.subr.mxu0 0.0
    %2808 = vmatpush1.msra.mxu0 0.0
    %2809 = vmatprep.subr.mxu0 0.0
    %2810 = vmatpush1.msra.mxu0 0.0
    %2811 = vmatprep.subr.mxu0 0.0
    %2812 = vmatpush1.msra.mxu0 0.0
    %2813 = vmatprep.subr.mxu0 0.0
    %2814 = vmatpush1.msra.mxu0 0.0
    %2815 = vmatprep.subr.mxu0 0.0
    %2816 = vmatpush1.msra.mxu0 0.0
    %2817 = vmatprep.subr.mxu0 0.0
    %2818 = vmatpush1.msra.mxu0 0.0
    %2819 = vmatprep.mubr.f32.mxu0 0.0
    %2820 = vmatmul.mubr.f32.gmra.mrb[0].mxu0 %v469
    %v2821 = vpop.f32.mrb[0].mxu0
    %v2822 = vadd.f32 %v2753, %v2821
    %v2823 = vpop.f32.mrb[0].mxu0
    %2824 = vdwg.mxu0
    %v2826 = vlaneseq
    %v2827 = vshrl.u32 %v2826, 7
    %v2828 = vsub.s32 0, %v2827
    %v2829 = vrot.slane %v2746, %v2828
    %2831 = vmatprep.subr.mxu0 0.0
    %2832 = vmatpush1.msra.mxu0 %v2727
    %2833 = vmatprep.subr.mxu0 0.0
    %2834 = vmatpush1.msra.mxu0 %v2728
    %2835 = vmatprep.subr.mxu0 0.0
    %2836 = vmatpush1.msra.mxu0 %v2729
    %2837 = vmatprep.subr.mxu0 0.0
    %2838 = vmatpush1.msra.mxu0 %v2730
    %2839 = vmatprep.subr.mxu0 0.0
    %2840 = vmatpush1.msra.mxu0 %v2731
    %2841 = vmatprep.subr.mxu0 0.0
    %2842 = vmatpush1.msra.mxu0 %v2732
    %2843 = vmatprep.subr.mxu0 0.0
    %2844 = vmatpush1.msra.mxu0 %v2733
    %2845 = vmatprep.subr.mxu0 0.0
    %2846 = vmatpush1.msra.mxu0 %v2734
    %2847 = vmatprep.subr.mxu0 0.0
    %2848 = vmatpush1.msra.mxu0 0.0
    %2849 = vmatprep.subr.mxu0 0.0
    %2850 = vmatpush1.msra.mxu0 0.0
    %2851 = vmatprep.subr.mxu0 0.0
    %2852 = vmatpush1.msra.mxu0 0.0
    %2853 = vmatprep.subr.mxu0 0.0
    %2854 = vmatpush1.msra.mxu0 0.0
    %2855 = vmatprep.subr.mxu0 0.0
    %2856 = vmatpush1.msra.mxu0 0.0
    %2857 = vmatprep.subr.mxu0 0.0
    %2858 = vmatpush1.msra.mxu0 0.0
    %2859 = vmatprep.subr.mxu0 0.0
    %2860 = vmatpush1.msra.mxu0 0.0
    %2861 = vmatprep.subr.mxu0 0.0
    %2862 = vmatpush1.msra.mxu0 0.0
    %2863 = vmatprep.subr.mxu0 0.0
    %2864 = vmatpush1.msra.mxu0 0.0
    %2865 = vmatprep.subr.mxu0 0.0
    %2866 = vmatpush1.msra.mxu0 0.0
    %2867 = vmatprep.subr.mxu0 0.0
    %2868 = vmatpush1.msra.mxu0 0.0
    %2869 = vmatprep.subr.mxu0 0.0
    %2870 = vmatpush1.msra.mxu0 0.0
    %2871 = vmatprep.subr.mxu0 0.0
    %2872 = vmatpush1.msra.mxu0 0.0
    %2873 = vmatprep.subr.mxu0 0.0
    %2874 = vmatpush1.msra.mxu0 0.0
    %2875 = vmatprep.subr.mxu0 0.0
    %2876 = vmatpush1.msra.mxu0 0.0
    %2877 = vmatprep.subr.mxu0 0.0
    %2878 = vmatpush1.msra.mxu0 0.0
    %2879 = vmatprep.subr.mxu0 0.0
    %2880 = vmatpush1.msra.mxu0 0.0
    %2881 = vmatprep.subr.mxu0 0.0
    %2882 = vmatpush1.msra.mxu0 0.0
    %2883 = vmatprep.subr.mxu0 0.0
    %2884 = vmatpush1.msra.mxu0 0.0
    %2885 = vmatprep.subr.mxu0 0.0
    %2886 = vmatpush1.msra.mxu0 0.0
    %2887 = vmatprep.subr.mxu0 0.0
    %2888 = vmatpush1.msra.mxu0 0.0
    %2889 = vmatprep.subr.mxu0 0.0
    %2890 = vmatpush1.msra.mxu0 0.0
    %2891 = vmatprep.subr.mxu0 0.0
    %2892 = vmatpush1.msra.mxu0 0.0
    %2893 = vmatprep.subr.mxu0 0.0
    %2894 = vmatpush1.msra.mxu0 0.0
    %2895 = vmatprep.mubr.f32.mxu0 0.0
    %2896 = vmatmul.mubr.f32.gmra.mrb[0].mxu0 %v469
    %v2897 = vpop.f32.mrb[0].mxu0
    %v2898 = vadd.f32 %v2829, %v2897
    %v2899 = vpop.f32.mrb[0].mxu0
    %2900 = vdwg.mxu0
    %v2902 = vlaneseq
    %v2903 = vshrl.u32 %v2902, 7
    %v2904 = vsub.s32 0, %v2903
    %v2905 = vrot.slane %v2748, %v2904
    %2907 = vmatprep.subr.mxu0 0.0
    %2908 = vmatpush1.msra.mxu0 %v2736
    %2909 = vmatprep.subr.mxu0 0.0
    %2910 = vmatpush1.msra.mxu0 %v2737
    %2911 = vmatprep.subr.mxu0 0.0
    %2912 = vmatpush1.msra.mxu0 %v2738
    %2913 = vmatprep.subr.mxu0 0.0
    %2914 = vmatpush1.msra.mxu0 %v2739
    %2915 = vmatprep.subr.mxu0 0.0
    %2916 = vmatpush1.msra.mxu0 %v2740
    %2917 = vmatprep.subr.mxu0 0.0
    %2918 = vmatpush1.msra.mxu0 %v2741
    %2919 = vmatprep.subr.mxu0 0.0
    %2920 = vmatpush1.msra.mxu0 %v2742
    %2921 = vmatprep.subr.mxu0 0.0
    %2922 = vmatpush1.msra.mxu0 %v2743
    %2923 = vmatprep.subr.mxu0 0.0
    %2924 = vmatpush1.msra.mxu0 0.0
    %2925 = vmatprep.subr.mxu0 0.0
    %2926 = vmatpush1.msra.mxu0 0.0
    %2927 = vmatprep.subr.mxu0 0.0
    %2928 = vmatpush1.msra.mxu0 0.0
    %2929 = vmatprep.subr.mxu0 0.0
    %2930 = vmatpush1.msra.mxu0 0.0
    %2931 = vmatprep.subr.mxu0 0.0
    %2932 = vmatpush1.msra.mxu0 0.0
    %2933 = vmatprep.subr.mxu0 0.0
    %2934 = vmatpush1.msra.mxu0 0.0
    %2935 = vmatprep.subr.mxu0 0.0
    %2936 = vmatpush1.msra.mxu0 0.0
    %2937 = vmatprep.subr.mxu0 0.0
    %2938 = vmatpush1.msra.mxu0 0.0
    %2939 = vmatprep.subr.mxu0 0.0
    %2940 = vmatpush1.msra.mxu0 0.0
    %2941 = vmatprep.subr.mxu0 0.0
    %2942 = vmatpush1.msra.mxu0 0.0
    %2943 = vmatprep.subr.mxu0 0.0
    %2944 = vmatpush1.msra.mxu0 0.0
    %2945 = vmatprep.subr.mxu0 0.0
    %2946 = vmatpush1.msra.mxu0 0.0
    %2947 = vmatprep.subr.mxu0 0.0
    %2948 = vmatpush1.msra.mxu0 0.0
    %2949 = vmatprep.subr.mxu0 0.0
    %2950 = vmatpush1.msra.mxu0 0.0
    %2951 = vmatprep.subr.mxu0 0.0
    %2952 = vmatpush1.msra.mxu0 0.0
    %2953 = vmatprep.subr.mxu0 0.0
    %2954 = vmatpush1.msra.mxu0 0.0
    %2955 = vmatprep.subr.mxu0 0.0
    %2956 = vmatpush1.msra.mxu0 0.0
    %2957 = vmatprep.subr.mxu0 0.0
    %2958 = vmatpush1.msra.mxu0 0.0
    %2959 = vmatprep.subr.mxu0 0.0
    %2960 = vmatpush1.msra.mxu0 0.0
    %2961 = vmatprep.subr.mxu0 0.0
    %2962 = vmatpush1.msra.mxu0 0.0
    %2963 = vmatprep.subr.mxu0 0.0
    %2964 = vmatpush1.msra.mxu0 0.0
    %2965 = vmatprep.subr.mxu0 0.0
    %2966 = vmatpush1.msra.mxu0 0.0
    %2967 = vmatprep.subr.mxu0 0.0
    %2968 = vmatpush1.msra.mxu0 0.0
    %2969 = vmatprep.subr.mxu0 0.0
    %2970 = vmatpush1.msra.mxu0 0.0
    %2971 = vmatprep.mubr.f32.mxu0 0.0
    %2972 = vmatmul.mubr.f32.gmra.mrb[0].mxu0 %v469
    %v2973 = vpop.f32.mrb[0].mxu0
    %v2974 = vadd.f32 %v2905, %v2973
    %v2975 = vpop.f32.mrb[0].mxu0
    %2976 = vdwg.mxu0
    %v2977 = vadd.f32 %v2526, %v2822
    %v2978 = vxor.u32 %v2977, 2147483648
    %v2979 = vmul.f32 %v2978, 1.442695
    %v2980 = vpow.pop %v2979
    %v2981 = vadd.f32 %v2980, 1.0
    %v2982 = vrcp.pop %v2981
    %v2983 = vmul.f32 1.0, %v2982
    %v2984 = vadd.f32 %v2618, %v2898
    %v2985 = vxor.u32 %v2984, 2147483648
    %v2986 = vmul.f32 %v2985, 1.442695
    %v2987 = vpow.pop %v2986
    %v2988 = vadd.f32 %v2987, 1.0
    %v2989 = vrcp.pop %v2988
    %v2990 = vmul.f32 1.0, %v2989
    %v2991 = vmul.f32 %v2983, %v2974
    %v2992 = vadd.f32 %v2710, %v2991
    %v2993 = vtanh.pop %v2992
    %v2994 = vsub.f32 1.0, %v2990
    %v2995 = vmul.f32 %v2994, %v2993
    %v2996 = vmul.f32 %v2990, 0.0
    %v2997 = vadd.f32 %v2995, %v2996
    %v2999 = vsel %vm467, %v2997, 0
    %3001 = vmatprep.subr.mxu0 0.0
    %3002 = vmatpush1.msra.mxu0 %v2718
    %3003 = vmatprep.subr.mxu0 0.0
    %3004 = vmatpush1.msra.mxu0 %v2719
    %3005 = vmatprep.subr.mxu0 0.0
    %3006 = vmatpush1.msra.mxu0 %v2720
    %3007 = vmatprep.subr.mxu0 0.0
    %3008 = vmatpush1.msra.mxu0 %v2721
    %3009 = vmatprep.subr.mxu0 0.0
    %3010 = vmatpush1.msra.mxu0 %v2722
    %3011 = vmatprep.subr.mxu0 0.0
    %3012 = vmatpush1.msra.mxu0 %v2723
    %3013 = vmatprep.subr.mxu0 0.0
    %3014 = vmatpush1.msra.mxu0 %v2724
    %3015 = vmatprep.subr.mxu0 0.0
    %3016 = vmatpush1.msra.mxu0 %v2725
    %3017 = vmatprep.subr.mxu0 0.0
    %3018 = vmatpush1.msra.mxu0 0.0
    %3019 = vmatprep.subr.mxu0 0.0
    %3020 = vmatpush1.msra.mxu0 0.0
    %3021 = vmatprep.subr.mxu0 0.0
    %3022 = vmatpush1.msra.mxu0 0.0
    %3023 = vmatprep.subr.mxu0 0.0
    %3024 = vmatpush1.msra.mxu0 0.0
    %3025 = vmatprep.subr.mxu0 0.0
    %3026 = vmatpush1.msra.mxu0 0.0
    %3027 = vmatprep.subr.mxu0 0.0
    %3028 = vmatpush1.msra.mxu0 0.0
    %3029 = vmatprep.subr.mxu0 0.0
    %3030 = vmatpush1.msra.mxu0 0.0
    %3031 = vmatprep.subr.mxu0 0.0
    %3032 = vmatpush1.msra.mxu0 0.0
    %3033 = vmatprep.subr.mxu0 0.0
    %3034 = vmatpush1.msra.mxu0 0.0
    %3035 = vmatprep.subr.mxu0 0.0
    %3036 = vmatpush1.msra.mxu0 0.0
    %3037 = vmatprep.subr.mxu0 0.0
    %3038 = vmatpush1.msra.mxu0 0.0
    %3039 = vmatprep.subr.mxu0 0.0
    %3040 = vmatpush1.msra.mxu0 0.0
    %3041 = vmatprep.subr.mxu0 0.0
    %3042 = vmatpush1.msra.mxu0 0.0
    %3043 = vmatprep.subr.mxu0 0.0
    %3044 = vmatpush1.msra.mxu0 0.0
    %3045 = vmatprep.subr.mxu0 0.0
    %3046 = vmatpush1.msra.mxu0 0.0
    %3047 = vmatprep.subr.mxu0 0.0
    %3048 = vmatpush1.msra.mxu0 0.0
    %3049 = vmatprep.subr.mxu0 0.0
    %3050 = vmatpush1.msra.mxu0 0.0
    %3051 = vmatprep.subr.mxu0 0.0
    %3052 = vmatpush1.msra.mxu0 0.0
    %3053 = vmatprep.subr.mxu0 0.0
    %3054 = vmatpush1.msra.mxu0 0.0
    %3055 = vmatprep.subr.mxu0 0.0
    %3056 = vmatpush1.msra.mxu0 0.0
    %3057 = vmatprep.subr.mxu0 0.0
    %3058 = vmatpush1.msra.mxu0 0.0
    %3059 = vmatprep.subr.mxu0 0.0
    %3060 = vmatpush1.msra.mxu0 0.0
    %3061 = vmatprep.subr.mxu0 0.0
    %3062 = vmatpush1.msra.mxu0 0.0
    %3063 = vmatprep.subr.mxu0 0.0
    %3064 = vmatpush1.msra.mxu0 0.0
    %3065 = vmatprep.mubr.f32.mxu0 0.0
    %3066 = vmatmul.mubr.f32.gmra.mrb[0].mxu0 %v2999
    %v3067 = vpop.f32.mrb[0].mxu0
    %v3068 = vadd.f32 %v2753, %v3067
    %v3069 = vpop.f32.mrb[0].mxu0
    %3070 = vdwg.mxu0
    %3071 = vmatprep.subr.mxu0 0.0
    %3072 = vmatpush1.msra.mxu0 %v2727
    %3073 = vmatprep.subr.mxu0 0.0
    %3074 = vmatpush1.msra.mxu0 %v2728
    %3075 = vmatprep.subr.mxu0 0.0
    %3076 = vmatpush1.msra.mxu0 %v2729
    %3077 = vmatprep.subr.mxu0 0.0
    %3078 = vmatpush1.msra.mxu0 %v2730
    %3079 = vmatprep.subr.mxu0 0.0
    %3080 = vmatpush1.msra.mxu0 %v2731
    %3081 = vmatprep.subr.mxu0 0.0
    %3082 = vmatpush1.msra.mxu0 %v2732
    %3083 = vmatprep.subr.mxu0 0.0
    %3084 = vmatpush1.msra.mxu0 %v2733
    %3085 = vmatprep.subr.mxu0 0.0
    %3086 = vmatpush1.msra.mxu0 %v2734
    %3087 = vmatprep.subr.mxu0 0.0
    %3088 = vmatpush1.msra.mxu0 0.0
    %3089 = vmatprep.subr.mxu0 0.0
    %3090 = vmatpush1.msra.mxu0 0.0
    %3091 = vmatprep.subr.mxu0 0.0
    %3092 = vmatpush1.msra.mxu0 0.0
    %3093 = vmatprep.subr.mxu0 0.0
    %3094 = vmatpush1.msra.mxu0 0.0
    %3095 = vmatprep.subr.mxu0 0.0
    %3096 = vmatpush1.msra.mxu0 0.0
    %3097 = vmatprep.subr.mxu0 0.0
    %3098 = vmatpush1.msra.mxu0 0.0
    %3099 = vmatprep.subr.mxu0 0.0
    %3100 = vmatpush1.msra.mxu0 0.0
    %3101 = vmatprep.subr.mxu0 0.0
    %3102 = vmatpush1.msra.mxu0 0.0
    %3103 = vmatprep.subr.mxu0 0.0
    %3104 = vmatpush1.msra.mxu0 0.0
    %3105 = vmatprep.subr.mxu0 0.0
    %3106 = vmatpush1.msra.mxu0 0.0
    %3107 = vmatprep.subr.mxu0 0.0
    %3108 = vmatpush1.msra.mxu0 0.0
    %3109 = vmatprep.subr.mxu0 0.0
    %3110 = vmatpush1.msra.mxu0 0.0
    %3111 = vmatprep.subr.mxu0 0.0
    %3112 = vmatpush1.msra.mxu0 0.0
    %3113 = vmatprep.subr.mxu0 0.0
    %3114 = vmatpush1.msra.mxu0 0.0
    %3115 = vmatprep.subr.mxu0 0.0
    %3116 = vmatpush1.msra.mxu0 0.0
    %3117 = vmatprep.subr.mxu0 0.0
    %3118 = vmatpush1.msra.mxu0 0.0
    %3119 = vmatprep.subr.mxu0 0.0
    %3120 = vmatpush1.msra.mxu0 0.0
    %3121 = vmatprep.subr.mxu0 0.0
    %3122 = vmatpush1.msra.mxu0 0.0
    %3123 = vmatprep.subr.mxu0 0.0
    %3124 = vmatpush1.msra.mxu0 0.0
    %3125 = vmatprep.subr.mxu0 0.0
    %3126 = vmatpush1.msra.mxu0 0.0
    %3127 = vmatprep.subr.mxu0 0.0
    %3128 = vmatpush1.msra.mxu0 0.0
    %3129 = vmatprep.subr.mxu0 0.0
    %3130 = vmatpush1.msra.mxu0 0.0
    %3131 = vmatprep.subr.mxu0 0.0
    %3132 = vmatpush1.msra.mxu0 0.0
    %3133 = vmatprep.subr.mxu0 0.0
    %3134 = vmatpush1.msra.mxu0 0.0
    %3135 = vmatprep.mubr.f32.mxu0 0.0
    %3136 = vmatmul.mubr.f32.gmra.mrb[0].mxu0 %v2999
    %v3137 = vpop.f32.mrb[0].mxu0
    %v3138 = vadd.f32 %v2829, %v3137
    %v3139 = vpop.f32.mrb[0].mxu0
    %3140 = vdwg.mxu0
    %3141 = vmatprep.subr.mxu0 0.0
    %3142 = vmatpush1.msra.mxu0 %v2736
    %3143 = vmatprep.subr.mxu0 0.0
    %3144 = vmatpush1.msra.mxu0 %v2737
    %3145 = vmatprep.subr.mxu0 0.0
    %3146 = vmatpush1.msra.mxu0 %v2738
    %3147 = vmatprep.subr.mxu0 0.0
    %3148 = vmatpush1.msra.mxu0 %v2739
    %3149 = vmatprep.subr.mxu0 0.0
    %3150 = vmatpush1.msra.mxu0 %v2740
    %3151 = vmatprep.subr.mxu0 0.0
    %3152 = vmatpush1.msra.mxu0 %v2741
    %3153 = vmatprep.subr.mxu0 0.0
    %3154 = vmatpush1.msra.mxu0 %v2742
    %3155 = vmatprep.subr.mxu0 0.0
    %3156 = vmatpush1.msra.mxu0 %v2743
    %3157 = vmatprep.subr.mxu0 0.0
    %3158 = vmatpush1.msra.mxu0 0.0
    %3159 = vmatprep.subr.mxu0 0.0
    %3160 = vmatpush1.msra.mxu0 0.0
    %3161 = vmatprep.subr.mxu0 0.0
    %3162 = vmatpush1.msra.mxu0 0.0
    %3163 = vmatprep.subr.mxu0 0.0
    %3164 = vmatpush1.msra.mxu0 0.0
    %3165 = vmatprep.subr.mxu0 0.0
    %3166 = vmatpush1.msra.mxu0 0.0
    %3167 = vmatprep.subr.mxu0 0.0
    %3168 = vmatpush1.msra.mxu0 0.0
    %3169 = vmatprep.subr.mxu0 0.0
    %3170 = vmatpush1.msra.mxu0 0.0
    %3171 = vmatprep.subr.mxu0 0.0
    %3172 = vmatpush1.msra.mxu0 0.0
    %3173 = vmatprep.subr.mxu0 0.0
    %3174 = vmatpush1.msra.mxu0 0.0
    %3175 = vmatprep.subr.mxu0 0.0
    %3176 = vmatpush1.msra.mxu0 0.0
    %3177 = vmatprep.subr.mxu0 0.0
    %3178 = vmatpush1.msra.mxu0 0.0
    %3179 = vmatprep.subr.mxu0 0.0
    %3180 = vmatpush1.msra.mxu0 0.0
    %3181 = vmatprep.subr.mxu0 0.0
    %3182 = vmatpush1.msra.mxu0 0.0
    %3183 = vmatprep.subr.mxu0 0.0
    %3184 = vmatpush1.msra.mxu0 0.0
    %3185 = vmatprep.subr.mxu0 0.0
    %3186 = vmatpush1.msra.mxu0 0.0
    %3187 = vmatprep.subr.mxu0 0.0
    %3188 = vmatpush1.msra.mxu0 0.0
    %3189 = vmatprep.subr.mxu0 0.0
    %3190 = vmatpush1.msra.mxu0 0.0
    %3191 = vmatprep.subr.mxu0 0.0
    %3192 = vmatpush1.msra.mxu0 0.0
    %3193 = vmatprep.subr.mxu0 0.0
    %3194 = vmatpush1.msra.mxu0 0.0
    %3195 = vmatprep.subr.mxu0 0.0
    %3196 = vmatpush1.msra.mxu0 0.0
    %3197 = vmatprep.subr.mxu0 0.0
    %3198 = vmatpush1.msra.mxu0 0.0
    %3199 = vmatprep.subr.mxu0 0.0
    %3200 = vmatpush1.msra.mxu0 0.0
    %3201 = vmatprep.subr.mxu0 0.0
    %3202 = vmatpush1.msra.mxu0 0.0
    %3203 = vmatprep.subr.mxu0 0.0
    %3204 = vmatpush1.msra.mxu0 0.0
    %3205 = vmatprep.mubr.f32.mxu0 0.0
    %3206 = vmatmul.mubr.f32.gmra.mrb[0].mxu0 %v2999
    %v3207 = vpop.f32.mrb[0].mxu0
    %v3208 = vadd.f32 %v2905, %v3207
    %v3209 = vpop.f32.mrb[0].mxu0
    %3210 = vdwg.mxu0
    %v3212 = vrot.slane %v3068, 6
    %v3214 = vadd.f32 %v2526, %v3212
    %v3215 = vxor.u32 %v3214, 2147483648
    %v3216 = vmul.f32 %v3215, 1.442695
    %v3217 = vpow.pop %v3216
    %v3218 = vadd.f32 %v3217, 1.0
    %v3219 = vrcp.pop %v3218
    %v3220 = vmul.f32 1.0, %v3219
    %v3222 = vrot.slane %v3138, 6
    %v3224 = vadd.f32 %v2618, %v3222
    %v3225 = vxor.u32 %v3224, 2147483648
    %v3226 = vmul.f32 %v3225, 1.442695
    %v3227 = vpow.pop %v3226
    %v3228 = vadd.f32 %v3227, 1.0
    %v3229 = vrcp.pop %v3228
    %v3230 = vmul.f32 1.0, %v3229
    %v3232 = vrot.slane %v3208, 6
    %v3234 = vmul.f32 %v3220, %v3232
    %v3235 = vadd.f32 %v2710, %v3234
    %v3236 = vtanh.pop %v3235
    %v3237 = vsub.f32 1.0, %v3230
    %v3238 = vmul.f32 %v3237, %v3236
    %v3239 = vrot.slane %v2997, 6
    %v3241 = vmul.f32 %v3230, %v3239
    %v3242 = vadd.f32 %v3238, %v3241
    %v3244 = vrot.slane %v3242, 2
    %v3245 = vsel %vm467, %v3244, 0
    %3247 = vmatprep.subr.mxu0 0.0
    %3248 = vmatpush1.msra.mxu0 %v2718
    %3249 = vmatprep.subr.mxu0 0.0
    %3250 = vmatpush1.msra.mxu0 %v2719
    %3251 = vmatprep.subr.mxu0 0.0
    %3252 = vmatpush1.msra.mxu0 %v2720
    %3253 = vmatprep.subr.mxu0 0.0
    %3254 = vmatpush1.msra.mxu0 %v2721
    %3255 = vmatprep.subr.mxu0 0.0
    %3256 = vmatpush1.msra.mxu0 %v2722
    %3257 = vmatprep.subr.mxu0 0.0
    %3258 = vmatpush1.msra.mxu0 %v2723
    %3259 = vmatprep.subr.mxu0 0.0
    %3260 = vmatpush1.msra.mxu0 %v2724
    %3261 = vmatprep.subr.mxu0 0.0
    %3262 = vmatpush1.msra.mxu0 %v2725
    %3263 = vmatprep.subr.mxu0 0.0
    %3264 = vmatpush1.msra.mxu0 0.0
    %3265 = vmatprep.subr.mxu0 0.0
    %3266 = vmatpush1.msra.mxu0 0.0
    %3267 = vmatprep.subr.mxu0 0.0
    %3268 = vmatpush1.msra.mxu0 0.0
    %3269 = vmatprep.subr.mxu0 0.0
    %3270 = vmatpush1.msra.mxu0 0.0
    %3271 = vmatprep.subr.mxu0 0.0
    %3272 = vmatpush1.msra.mxu0 0.0
    %3273 = vmatprep.subr.mxu0 0.0
    %3274 = vmatpush1.msra.mxu0 0.0
    %3275 = vmatprep.subr.mxu0 0.0
    %3276 = vmatpush1.msra.mxu0 0.0
    %3277 = vmatprep.subr.mxu0 0.0
    %3278 = vmatpush1.msra.mxu0 0.0
    %3279 = vmatprep.subr.mxu0 0.0
    %3280 = vmatpush1.msra.mxu0 0.0
    %3281 = vmatprep.subr.mxu0 0.0
    %3282 = vmatpush1.msra.mxu0 0.0
    %3283 = vmatprep.subr.mxu0 0.0
    %3284 = vmatpush1.msra.mxu0 0.0
    %3285 = vmatprep.subr.mxu0 0.0
    %3286 = vmatpush1.msra.mxu0 0.0
    %3287 = vmatprep.subr.mxu0 0.0
    %3288 = vmatpush1.msra.mxu0 0.0
    %3289 = vmatprep.subr.mxu0 0.0
    %3290 = vmatpush1.msra.mxu0 0.0
    %3291 = vmatprep.subr.mxu0 0.0
    %3292 = vmatpush1.msra.mxu0 0.0
    %3293 = vmatprep.subr.mxu0 0.0
    %3294 = vmatpush1.msra.mxu0 0.0
    %3295 = vmatprep.subr.mxu0 0.0
    %3296 = vmatpush1.msra.mxu0 0.0
    %3297 = vmatprep.subr.mxu0 0.0
    %3298 = vmatpush1.msra.mxu0 0.0
    %3299 = vmatprep.subr.mxu0 0.0
    %3300 = vmatpush1.msra.mxu0 0.0
    %3301 = vmatprep.subr.mxu0 0.0
    %3302 = vmatpush1.msra.mxu0 0.0
    %3303 = vmatprep.subr.mxu0 0.0
    %3304 = vmatpush1.msra.mxu0 0.0
    %3305 = vmatprep.subr.mxu0 0.0
    %3306 = vmatpush1.msra.mxu0 0.0
    %3307 = vmatprep.subr.mxu0 0.0
    %3308 = vmatpush1.msra.mxu0 0.0
    %3309 = vmatprep.subr.mxu0 0.0
    %3310 = vmatpush1.msra.mxu0 0.0
    %3311 = vmatprep.mubr.f32.mxu0 0.0
    %3312 = vmatmul.mubr.f32.gmra.mrb[0].mxu0 %v3245
    %v3313 = vpop.f32.mrb[0].mxu0
    %v3314 = vadd.f32 %v2753, %v3313
    %v3315 = vpop.f32.mrb[0].mxu0
    %3316 = vdwg.mxu0
    %3317 = vmatprep.subr.mxu0 0.0
    %3318 = vmatpush1.msra.mxu0 %v2727
    %3319 = vmatprep.subr.mxu0 0.0
    %3320 = vmatpush1.msra.mxu0 %v2728
    %3321 = vmatprep.subr.mxu0 0.0
    %3322 = vmatpush1.msra.mxu0 %v2729
    %3323 = vmatprep.subr.mxu0 0.0
    %3324 = vmatpush1.msra.mxu0 %v2730
    %3325 = vmatprep.subr.mxu0 0.0
    %3326 = vmatpush1.msra.mxu0 %v2731
    %3327 = vmatprep.subr.mxu0 0.0
    %3328 = vmatpush1.msra.mxu0 %v2732
    %3329 = vmatprep.subr.mxu0 0.0
    %3330 = vmatpush1.msra.mxu0 %v2733
    %3331 = vmatprep.subr.mxu0 0.0
    %3332 = vmatpush1.msra.mxu0 %v2734
    %3333 = vmatprep.subr.mxu0 0.0
    %3334 = vmatpush1.msra.mxu0 0.0
    %3335 = vmatprep.subr.mxu0 0.0
    %3336 = vmatpush1.msra.mxu0 0.0
    %3337 = vmatprep.subr.mxu0 0.0
    %3338 = vmatpush1.msra.mxu0 0.0
    %3339 = vmatprep.subr.mxu0 0.0
    %3340 = vmatpush1.msra.mxu0 0.0
    %3341 = vmatprep.subr.mxu0 0.0
    %3342 = vmatpush1.msra.mxu0 0.0
    %3343 = vmatprep.subr.mxu0 0.0
    %3344 = vmatpush1.msra.mxu0 0.0
    %3345 = vmatprep.subr.mxu0 0.0
    %3346 = vmatpush1.msra.mxu0 0.0
    %3347 = vmatprep.subr.mxu0 0.0
    %3348 = vmatpush1.msra.mxu0 0.0
    %3349 = vmatprep.subr.mxu0 0.0
    %3350 = vmatpush1.msra.mxu0 0.0
    %3351 = vmatprep.subr.mxu0 0.0
    %3352 = vmatpush1.msra.mxu0 0.0
    %3353 = vmatprep.subr.mxu0 0.0
    %3354 = vmatpush1.msra.mxu0 0.0
    %3355 = vmatprep.subr.mxu0 0.0
    %3356 = vmatpush1.msra.mxu0 0.0
    %3357 = vmatprep.subr.mxu0 0.0
    %3358 = vmatpush1.msra.mxu0 0.0
    %3359 = vmatprep.subr.mxu0 0.0
    %3360 = vmatpush1.msra.mxu0 0.0
    %3361 = vmatprep.subr.mxu0 0.0
    %3362 = vmatpush1.msra.mxu0 0.0
    %3363 = vmatprep.subr.mxu0 0.0
    %3364 = vmatpush1.msra.mxu0 0.0
    %3365 = vmatprep.subr.mxu0 0.0
    %3366 = vmatpush1.msra.mxu0 0.0
    %3367 = vmatprep.subr.mxu0 0.0
    %3368 = vmatpush1.msra.mxu0 0.0
    %3369 = vmatprep.subr.mxu0 0.0
    %3370 = vmatpush1.msra.mxu0 0.0
    %3371 = vmatprep.subr.mxu0 0.0
    %3372 = vmatpush1.msra.mxu0 0.0
    %3373 = vmatprep.subr.mxu0 0.0
    %3374 = vmatpush1.msra.mxu0 0.0
    %3375 = vmatprep.subr.mxu0 0.0
    %3376 = vmatpush1.msra.mxu0 0.0
    %3377 = vmatprep.subr.mxu0 0.0
    %3378 = vmatpush1.msra.mxu0 0.0
    %3379 = vmatprep.subr.mxu0 0.0
    %3380 = vmatpush1.msra.mxu0 0.0
    %3381 = vmatprep.mubr.f32.mxu0 0.0
    %3382 = vmatmul.mubr.f32.gmra.mrb[0].mxu0 %v3245
    %v3383 = vpop.f32.mrb[0].mxu0
    %v3384 = vadd.f32 %v2829, %v3383
    %v3385 = vpop.f32.mrb[0].mxu0
    %3386 = vdwg.mxu0
    %3387 = vmatprep.subr.mxu0 0.0
    %3388 = vmatpush1.msra.mxu0 %v2736
    %3389 = vmatprep.subr.mxu0 0.0
    %3390 = vmatpush1.msra.mxu0 %v2737
    %3391 = vmatprep.subr.mxu0 0.0
    %3392 = vmatpush1.msra.mxu0 %v2738
    %3393 = vmatprep.subr.mxu0 0.0
    %3394 = vmatpush1.msra.mxu0 %v2739
    %3395 = vmatprep.subr.mxu0 0.0
    %3396 = vmatpush1.msra.mxu0 %v2740
    %3397 = vmatprep.subr.mxu0 0.0
    %3398 = vmatpush1.msra.mxu0 %v2741
    %3399 = vmatprep.subr.mxu0 0.0
    %3400 = vmatpush1.msra.mxu0 %v2742
    %3401 = vmatprep.subr.mxu0 0.0
    %3402 = vmatpush1.msra.mxu0 %v2743
    %3403 = vmatprep.subr.mxu0 0.0
    %3404 = vmatpush1.msra.mxu0 0.0
    %3405 = vmatprep.subr.mxu0 0.0
    %3406 = vmatpush1.msra.mxu0 0.0
    %3407 = vmatprep.subr.mxu0 0.0
    %3408 = vmatpush1.msra.mxu0 0.0
    %3409 = vmatprep.subr.mxu0 0.0
    %3410 = vmatpush1.msra.mxu0 0.0
    %3411 = vmatprep.subr.mxu0 0.0
    %3412 = vmatpush1.msra.mxu0 0.0
    %3413 = vmatprep.subr.mxu0 0.0
    %3414 = vmatpush1.msra.mxu0 0.0
    %3415 = vmatprep.subr.mxu0 0.0
    %3416 = vmatpush1.msra.mxu0 0.0
    %3417 = vmatprep.subr.mxu0 0.0
    %3418 = vmatpush1.msra.mxu0 0.0
    %3419 = vmatprep.subr.mxu0 0.0
    %3420 = vmatpush1.msra.mxu0 0.0
    %3421 = vmatprep.subr.mxu0 0.0
    %3422 = vmatpush1.msra.mxu0 0.0
    %3423 = vmatprep.subr.mxu0 0.0
    %3424 = vmatpush1.msra.mxu0 0.0
    %3425 = vmatprep.subr.mxu0 0.0
    %3426 = vmatpush1.msra.mxu0 0.0
    %3427 = vmatprep.subr.mxu0 0.0
    %3428 = vmatpush1.msra.mxu0 0.0
    %3429 = vmatprep.subr.mxu0 0.0
    %3430 = vmatpush1.msra.mxu0 0.0
    %3431 = vmatprep.subr.mxu0 0.0
    %3432 = vmatpush1.msra.mxu0 0.0
    %3433 = vmatprep.subr.mxu0 0.0
    %3434 = vmatpush1.msra.mxu0 0.0
    %3435 = vmatprep.subr.mxu0 0.0
    %3436 = vmatpush1.msra.mxu0 0.0
    %3437 = vmatprep.subr.mxu0 0.0
    %3438 = vmatpush1.msra.mxu0 0.0
    %3439 = vmatprep.subr.mxu0 0.0
    %3440 = vmatpush1.msra.mxu0 0.0
    %3441 = vmatprep.subr.mxu0 0.0
    %3442 = vmatpush1.msra.mxu0 0.0
    %3443 = vmatprep.subr.mxu0 0.0
    %3444 = vmatpush1.msra.mxu0 0.0
    %3445 = vmatprep.subr.mxu0 0.0
    %3446 = vmatpush1.msra.mxu0 0.0
    %3447 = vmatprep.subr.mxu0 0.0
    %3448 = vmatpush1.msra.mxu0 0.0
    %3449 = vmatprep.subr.mxu0 0.0
    %3450 = vmatpush1.msra.mxu0 0.0
    %3451 = vmatprep.mubr.f32.mxu0 0.0
    %3452 = vmatmul.mubr.f32.gmra.mrb[0].mxu0 %v3245
    %v3453 = vpop.f32.mrb[0].mxu0
    %v3454 = vadd.f32 %v2905, %v3453
    %v3455 = vpop.f32.mrb[0].mxu0
    %3456 = vdwg.mxu0
    %v3458 = vrot.slane %v3314, 4
    %v3460 = vadd.f32 %v2526, %v3458
    %v3461 = vxor.u32 %v3460, 2147483648
    %v3462 = vmul.f32 %v3461, 1.442695
    %v3463 = vpow.pop %v3462
    %v3464 = vadd.f32 %v3463, 1.0
    %v3465 = vrcp.pop %v3464
    %v3466 = vmul.f32 1.0, %v3465
    %v3468 = vrot.slane %v3384, 4
    %v3470 = vadd.f32 %v2618, %v3468
    %v3471 = vxor.u32 %v3470, 2147483648
    %v3472 = vmul.f32 %v3471, 1.442695
    %v3473 = vpow.pop %v3472
    %v3474 = vadd.f32 %v3473, 1.0
    %v3475 = vrcp.pop %v3474
    %v3476 = vmul.f32 1.0, %v3475
    %v3478 = vrot.slane %v3454, 4
    %v3480 = vmul.f32 %v3466, %v3478
    %v3481 = vadd.f32 %v2710, %v3480
    %v3482 = vtanh.pop %v3481
    %v3483 = vsub.f32 1.0, %v3476
    %v3484 = vmul.f32 %v3483, %v3482
    %v3485 = vrot.slane %v3242, 6
    %v3487 = vmul.f32 %v3476, %v3485
    %v3488 = vadd.f32 %v3484, %v3487
    %v3490 = vrot.slane %v3488, 4
    %v3491 = vsel %vm467, %v3490, 0
    %3493 = vmatprep.subr.mxu0 0.0
    %3494 = vmatpush1.msra.mxu0 %v2718
    %3495 = vmatprep.subr.mxu0 0.0
    %3496 = vmatpush1.msra.mxu0 %v2719
    %3497 = vmatprep.subr.mxu0 0.0
    %3498 = vmatpush1.msra.mxu0 %v2720
    %3499 = vmatprep.subr.mxu0 0.0
    %3500 = vmatpush1.msra.mxu0 %v2721
    %3501 = vmatprep.subr.mxu0 0.0
    %3502 = vmatpush1.msra.mxu0 %v2722
    %3503 = vmatprep.subr.mxu0 0.0
    %3504 = vmatpush1.msra.mxu0 %v2723
    %3505 = vmatprep.subr.mxu0 0.0
    %3506 = vmatpush1.msra.mxu0 %v2724
    %3507 = vmatprep.subr.mxu0 0.0
    %3508 = vmatpush1.msra.mxu0 %v2725
    %3509 = vmatprep.subr.mxu0 0.0
    %3510 = vmatpush1.msra.mxu0 0.0
    %3511 = vmatprep.subr.mxu0 0.0
    %3512 = vmatpush1.msra.mxu0 0.0
    %3513 = vmatprep.subr.mxu0 0.0
    %3514 = vmatpush1.msra.mxu0 0.0
    %3515 = vmatprep.subr.mxu0 0.0
    %3516 = vmatpush1.msra.mxu0 0.0
    %3517 = vmatprep.subr.mxu0 0.0
    %3518 = vmatpush1.msra.mxu0 0.0
    %3519 = vmatprep.subr.mxu0 0.0
    %3520 = vmatpush1.msra.mxu0 0.0
    %3521 = vmatprep.subr.mxu0 0.0
    %3522 = vmatpush1.msra.mxu0 0.0
    %3523 = vmatprep.subr.mxu0 0.0
    %3524 = vmatpush1.msra.mxu0 0.0
    %3525 = vmatprep.subr.mxu0 0.0
    %3526 = vmatpush1.msra.mxu0 0.0
    %3527 = vmatprep.subr.mxu0 0.0
    %3528 = vmatpush1.msra.mxu0 0.0
    %3529 = vmatprep.subr.mxu0 0.0
    %3530 = vmatpush1.msra.mxu0 0.0
    %3531 = vmatprep.subr.mxu0 0.0
    %3532 = vmatpush1.msra.mxu0 0.0
    %3533 = vmatprep.subr.mxu0 0.0
    %3534 = vmatpush1.msra.mxu0 0.0
    %3535 = vmatprep.subr.mxu0 0.0
    %3536 = vmatpush1.msra.mxu0 0.0
    %3537 = vmatprep.subr.mxu0 0.0
    %3538 = vmatpush1.msra.mxu0 0.0
    %3539 = vmatprep.subr.mxu0 0.0
    %3540 = vmatpush1.msra.mxu0 0.0
    %3541 = vmatprep.subr.mxu0 0.0
    %3542 = vmatpush1.msra.mxu0 0.0
    %3543 = vmatprep.subr.mxu0 0.0
    %3544 = vmatpush1.msra.mxu0 0.0
    %3545 = vmatprep.subr.mxu0 0.0
    %3546 = vmatpush1.msra.mxu0 0.0
    %3547 = vmatprep.subr.mxu0 0.0
    %3548 = vmatpush1.msra.mxu0 0.0
    %3549 = vmatprep.subr.mxu0 0.0
    %3550 = vmatpush1.msra.mxu0 0.0
    %3551 = vmatprep.subr.mxu0 0.0
    %3552 = vmatpush1.msra.mxu0 0.0
    %3553 = vmatprep.subr.mxu0 0.0
    %3554 = vmatpush1.msra.mxu0 0.0
    %3555 = vmatprep.subr.mxu0 0.0
    %3556 = vmatpush1.msra.mxu0 0.0
    %3557 = vmatprep.mubr.f32.mxu0 0.0
    %3558 = vmatmul.mubr.f32.gmra.mrb[0].mxu0 %v3491
    %v3559 = vpop.f32.mrb[0].mxu0
    %v3560 = vadd.f32 %v2753, %v3559
    %v3561 = vpop.f32.mrb[0].mxu0
    %3562 = vdwg.mxu0
    %3563 = vmatprep.subr.mxu0 0.0
    %3564 = vmatpush1.msra.mxu0 %v2727
    %3565 = vmatprep.subr.mxu0 0.0
    %3566 = vmatpush1.msra.mxu0 %v2728
    %3567 = vmatprep.subr.mxu0 0.0
    %3568 = vmatpush1.msra.mxu0 %v2729
    %3569 = vmatprep.subr.mxu0 0.0
    %3570 = vmatpush1.msra.mxu0 %v2730
    %3571 = vmatprep.subr.mxu0 0.0
    %3572 = vmatpush1.msra.mxu0 %v2731
    %3573 = vmatprep.subr.mxu0 0.0
    %3574 = vmatpush1.msra.mxu0 %v2732
    %3575 = vmatprep.subr.mxu0 0.0
    %3576 = vmatpush1.msra.mxu0 %v2733
    %3577 = vmatprep.subr.mxu0 0.0
    %3578 = vmatpush1.msra.mxu0 %v2734
    %3579 = vmatprep.subr.mxu0 0.0
    %3580 = vmatpush1.msra.mxu0 0.0
    %3581 = vmatprep.subr.mxu0 0.0
    %3582 = vmatpush1.msra.mxu0 0.0
    %3583 = vmatprep.subr.mxu0 0.0
    %3584 = vmatpush1.msra.mxu0 0.0
    %3585 = vmatprep.subr.mxu0 0.0
    %3586 = vmatpush1.msra.mxu0 0.0
    %3587 = vmatprep.subr.mxu0 0.0
    %3588 = vmatpush1.msra.mxu0 0.0
    %3589 = vmatprep.subr.mxu0 0.0
    %3590 = vmatpush1.msra.mxu0 0.0
    %3591 = vmatprep.subr.mxu0 0.0
    %3592 = vmatpush1.msra.mxu0 0.0
    %3593 = vmatprep.subr.mxu0 0.0
    %3594 = vmatpush1.msra.mxu0 0.0
    %3595 = vmatprep.subr.mxu0 0.0
    %3596 = vmatpush1.msra.mxu0 0.0
    %3597 = vmatprep.subr.mxu0 0.0
    %3598 = vmatpush1.msra.mxu0 0.0
    %3599 = vmatprep.subr.mxu0 0.0
    %3600 = vmatpush1.msra.mxu0 0.0
    %3601 = vmatprep.subr.mxu0 0.0
    %3602 = vmatpush1.msra.mxu0 0.0
    %3603 = vmatprep.subr.mxu0 0.0
    %3604 = vmatpush1.msra.mxu0 0.0
    %3605 = vmatprep.subr.mxu0 0.0
    %3606 = vmatpush1.msra.mxu0 0.0
    %3607 = vmatprep.subr.mxu0 0.0
    %3608 = vmatpush1.msra.mxu0 0.0
    %3609 = vmatprep.subr.mxu0 0.0
    %3610 = vmatpush1.msra.mxu0 0.0
    %3611 = vmatprep.subr.mxu0 0.0
    %3612 = vmatpush1.msra.mxu0 0.0
    %3613 = vmatprep.subr.mxu0 0.0
    %3614 = vmatpush1.msra.mxu0 0.0
    %3615 = vmatprep.subr.mxu0 0.0
    %3616 = vmatpush1.msra.mxu0 0.0
    %3617 = vmatprep.subr.mxu0 0.0
    %3618 = vmatpush1.msra.mxu0 0.0
    %3619 = vmatprep.subr.mxu0 0.0
    %3620 = vmatpush1.msra.mxu0 0.0
    %3621 = vmatprep.subr.mxu0 0.0
    %3622 = vmatpush1.msra.mxu0 0.0
    %3623 = vmatprep.subr.mxu0 0.0
    %3624 = vmatpush1.msra.mxu0 0.0
    %3625 = vmatprep.subr.mxu0 0.0
    %3626 = vmatpush1.msra.mxu0 0.0
    %3627 = vmatprep.mubr.f32.mxu0 0.0
    %3628 = vmatmul.mubr.f32.gmra.mrb[0].mxu0 %v3491
    %v3629 = vpop.f32.mrb[0].mxu0
    %v3630 = vadd.f32 %v2829, %v3629
    %v3631 = vpop.f32.mrb[0].mxu0
    %3632 = vdwg.mxu0
    %3633 = vmatprep.subr.mxu0 0.0
    %3634 = vmatpush1.msra.mxu0 %v2736
    %3635 = vmatprep.subr.mxu0 0.0
    %3636 = vmatpush1.msra.mxu0 %v2737
    %3637 = vmatprep.subr.mxu0 0.0
    %3638 = vmatpush1.msra.mxu0 %v2738
    %3639 = vmatprep.subr.mxu0 0.0
    %3640 = vmatpush1.msra.mxu0 %v2739
    %3641 = vmatprep.subr.mxu0 0.0
    %3642 = vmatpush1.msra.mxu0 %v2740
    %3643 = vmatprep.subr.mxu0 0.0
    %3644 = vmatpush1.msra.mxu0 %v2741
    %3645 = vmatprep.subr.mxu0 0.0
    %3646 = vmatpush1.msra.mxu0 %v2742
    %3647 = vmatprep.subr.mxu0 0.0
    %3648 = vmatpush1.msra.mxu0 %v2743
    %3649 = vmatprep.subr.mxu0 0.0
    %3650 = vmatpush1.msra.mxu0 0.0
    %3651 = vmatprep.subr.mxu0 0.0
    %3652 = vmatpush1.msra.mxu0 0.0
    %3653 = vmatprep.subr.mxu0 0.0
    %3654 = vmatpush1.msra.mxu0 0.0
    %3655 = vmatprep.subr.mxu0 0.0
    %3656 = vmatpush1.msra.mxu0 0.0
    %3657 = vmatprep.subr.mxu0 0.0
    %3658 = vmatpush1.msra.mxu0 0.0
    %3659 = vmatprep.subr.mxu0 0.0
    %3660 = vmatpush1.msra.mxu0 0.0
    %3661 = vmatprep.subr.mxu0 0.0
    %3662 = vmatpush1.msra.mxu0 0.0
    %3663 = vmatprep.subr.mxu0 0.0
    %3664 = vmatpush1.msra.mxu0 0.0
    %3665 = vmatprep.subr.mxu0 0.0
    %3666 = vmatpush1.msra.mxu0 0.0
    %3667 = vmatprep.subr.mxu0 0.0
    %3668 = vmatpush1.msra.mxu0 0.0
    %3669 = vmatprep.subr.mxu0 0.0
    %3670 = vmatpush1.msra.mxu0 0.0
    %3671 = vmatprep.subr.mxu0 0.0
    %3672 = vmatpush1.msra.mxu0 0.0
    %3673 = vmatprep.subr.mxu0 0.0
    %3674 = vmatpush1.msra.mxu0 0.0
    %3675 = vmatprep.subr.mxu0 0.0
    %3676 = vmatpush1.msra.mxu0 0.0
    %3677 = vmatprep.subr.mxu0 0.0
    %3678 = vmatpush1.msra.mxu0 0.0
    %3679 = vmatprep.subr.mxu0 0.0
    %3680 = vmatpush1.msra.mxu0 0.0
    %3681 = vmatprep.subr.mxu0 0.0
    %3682 = vmatpush1.msra.mxu0 0.0
    %3683 = vmatprep.subr.mxu0 0.0
    %3684 = vmatpush1.msra.mxu0 0.0
    %3685 = vmatprep.subr.mxu0 0.0
    %3686 = vmatpush1.msra.mxu0 0.0
    %3687 = vmatprep.subr.mxu0 0.0
    %3688 = vmatpush1.msra.mxu0 0.0
    %3689 = vmatprep.subr.mxu0 0.0
    %3690 = vmatpush1.msra.mxu0 0.0
    %3691 = vmatprep.subr.mxu0 0.0
    %3692 = vmatpush1.msra.mxu0 0.0
    %3693 = vmatprep.subr.mxu0 0.0
    %3694 = vmatpush1.msra.mxu0 0.0
    %3695 = vmatprep.subr.mxu0 0.0
    %3696 = vmatpush1.msra.mxu0 0.0
    %3697 = vmatprep.mubr.f32.mxu0 0.0
    %3698 = vmatmul.mubr.f32.gmra.mrb[0].mxu0 %v3491
    %v3699 = vpop.f32.mrb[0].mxu0
    %v3700 = vadd.f32 %v2905, %v3699
    %v3701 = vpop.f32.mrb[0].mxu0
    %3702 = vdwg.mxu0
    %v3704 = vrot.slane %v3560, 2
    %v3706 = vadd.f32 %v2526, %v3704
    %v3707 = vxor.u32 %v3706, 2147483648
    %v3708 = vmul.f32 %v3707, 1.442695
    %v3709 = vpow.pop %v3708
    %v3710 = vadd.f32 %v3709, 1.0
    %v3711 = vrcp.pop %v3710
    %v3712 = vmul.f32 1.0, %v3711
    %v3714 = vrot.slane %v3630, 2
    %v3716 = vadd.f32 %v2618, %v3714
    %v3717 = vxor.u32 %v3716, 2147483648
    %v3718 = vmul.f32 %v3717, 1.442695
    %v3719 = vpow.pop %v3718
    %v3720 = vadd.f32 %v3719, 1.0
    %v3721 = vrcp.pop %v3720
    %v3722 = vmul.f32 1.0, %v3721
    %v3724 = vrot.slane %v3700, 2
    %v3726 = vmul.f32 %v3712, %v3724
    %v3727 = vadd.f32 %v2710, %v3726
    %v3728 = vtanh.pop %v3727
    %v3729 = vsub.f32 1.0, %v3722
    %v3730 = vmul.f32 %v3729, %v3728
    %v3731 = vrot.slane %v3488, 6
    %v3733 = vmul.f32 %v3722, %v3731
    %v3734 = vadd.f32 %v3730, %v3733
    %v3736 = vrot.slane %v3734, 6
    %v3737 = vsel %vm467, %v3736, 0
    %3739 = vmatprep.subr.mxu0 0.0
    %3740 = vmatpush1.msra.mxu0 %v2718
    %3741 = vmatprep.subr.mxu0 0.0
    %3742 = vmatpush1.msra.mxu0 %v2719
    %3743 = vmatprep.subr.mxu0 0.0
    %3744 = vmatpush1.msra.mxu0 %v2720
    %3745 = vmatprep.subr.mxu0 0.0
    %3746 = vmatpush1.msra.mxu0 %v2721
    %3747 = vmatprep.subr.mxu0 0.0
    %3748 = vmatpush1.msra.mxu0 %v2722
    %3749 = vmatprep.subr.mxu0 0.0
    %3750 = vmatpush1.msra.mxu0 %v2723
    %3751 = vmatprep.subr.mxu0 0.0
    %3752 = vmatpush1.msra.mxu0 %v2724
    %3753 = vmatprep.subr.mxu0 0.0
    %3754 = vmatpush1.msra.mxu0 %v2725
    %3755 = vmatprep.subr.mxu0 0.0
    %3756 = vmatpush1.msra.mxu0 0.0
    %3757 = vmatprep.subr.mxu0 0.0
    %3758 = vmatpush1.msra.mxu0 0.0
    %3759 = vmatprep.subr.mxu0 0.0
    %3760 = vmatpush1.msra.mxu0 0.0
    %3761 = vmatprep.subr.mxu0 0.0
    %3762 = vmatpush1.msra.mxu0 0.0
    %3763 = vmatprep.subr.mxu0 0.0
    %3764 = vmatpush1.msra.mxu0 0.0
    %3765 = vmatprep.subr.mxu0 0.0
    %3766 = vmatpush1.msra.mxu0 0.0
    %3767 = vmatprep.subr.mxu0 0.0
    %3768 = vmatpush1.msra.mxu0 0.0
    %3769 = vmatprep.subr.mxu0 0.0
    %3770 = vmatpush1.msra.mxu0 0.0
    %3771 = vmatprep.subr.mxu0 0.0
    %3772 = vmatpush1.msra.mxu0 0.0
    %3773 = vmatprep.subr.mxu0 0.0
    %3774 = vmatpush1.msra.mxu0 0.0
    %3775 = vmatprep.subr.mxu0 0.0
    %3776 = vmatpush1.msra.mxu0 0.0
    %3777 = vmatprep.subr.mxu0 0.0
    %3778 = vmatpush1.msra.mxu0 0.0
    %3779 = vmatprep.subr.mxu0 0.0
    %3780 = vmatpush1.msra.mxu0 0.0
    %3781 = vmatprep.subr.mxu0 0.0
    %3782 = vmatpush1.msra.mxu0 0.0
    %3783 = vmatprep.subr.mxu0 0.0
    %3784 = vmatpush1.msra.mxu0 0.0
    %3785 = vmatprep.subr.mxu0 0.0
    %3786 = vmatpush1.msra.mxu0 0.0
    %3787 = vmatprep.subr.mxu0 0.0
    %3788 = vmatpush1.msra.mxu0 0.0
    %3789 = vmatprep.subr.mxu0 0.0
    %3790 = vmatpush1.msra.mxu0 0.0
    %3791 = vmatprep.subr.mxu0 0.0
    %3792 = vmatpush1.msra.mxu0 0.0
    %3793 = vmatprep.subr.mxu0 0.0
    %3794 = vmatpush1.msra.mxu0 0.0
    %3795 = vmatprep.subr.mxu0 0.0
    %3796 = vmatpush1.msra.mxu0 0.0
    %3797 = vmatprep.subr.mxu0 0.0
    %3798 = vmatpush1.msra.mxu0 0.0
    %3799 = vmatprep.subr.mxu0 0.0
    %3800 = vmatpush1.msra.mxu0 0.0
    %3801 = vmatprep.subr.mxu0 0.0
    %3802 = vmatpush1.msra.mxu0 0.0
    %3803 = vmatprep.mubr.f32.mxu0 0.0
    %3804 = vmatmul.mubr.f32.gmra.mrb[0].mxu0 %v3737
    %v3805 = vpop.f32.mrb[0].mxu0
    %v3806 = vadd.f32 %v2753, %v3805
    %v3807 = vpop.f32.mrb[0].mxu0
    %3808 = vdwg.mxu0
    %3809 = vmatprep.subr.mxu0 0.0
    %3810 = vmatpush1.msra.mxu0 %v2727
    %3811 = vmatprep.subr.mxu0 0.0
    %3812 = vmatpush1.msra.mxu0 %v2728
    %3813 = vmatprep.subr.mxu0 0.0
    %3814 = vmatpush1.msra.mxu0 %v2729
    %3815 = vmatprep.subr.mxu0 0.0
    %3816 = vmatpush1.msra.mxu0 %v2730
    %3817 = vmatprep.subr.mxu0 0.0
    %3818 = vmatpush1.msra.mxu0 %v2731
    %3819 = vmatprep.subr.mxu0 0.0
    %3820 = vmatpush1.msra.mxu0 %v2732
    %3821 = vmatprep.subr.mxu0 0.0
    %3822 = vmatpush1.msra.mxu0 %v2733
    %3823 = vmatprep.subr.mxu0 0.0
    %3824 = vmatpush1.msra.mxu0 %v2734
    %3825 = vmatprep.subr.mxu0 0.0
    %3826 = vmatpush1.msra.mxu0 0.0
    %3827 = vmatprep.subr.mxu0 0.0
    %3828 = vmatpush1.msra.mxu0 0.0
    %3829 = vmatprep.subr.mxu0 0.0
    %3830 = vmatpush1.msra.mxu0 0.0
    %3831 = vmatprep.subr.mxu0 0.0
    %3832 = vmatpush1.msra.mxu0 0.0
    %3833 = vmatprep.subr.mxu0 0.0
    %3834 = vmatpush1.msra.mxu0 0.0
    %3835 = vmatprep.subr.mxu0 0.0
    %3836 = vmatpush1.msra.mxu0 0.0
    %3837 = vmatprep.subr.mxu0 0.0
    %3838 = vmatpush1.msra.mxu0 0.0
    %3839 = vmatprep.subr.mxu0 0.0
    %3840 = vmatpush1.msra.mxu0 0.0
    %3841 = vmatprep.subr.mxu0 0.0
    %3842 = vmatpush1.msra.mxu0 0.0
    %3843 = vmatprep.subr.mxu0 0.0
    %3844 = vmatpush1.msra.mxu0 0.0
    %3845 = vmatprep.subr.mxu0 0.0
    %3846 = vmatpush1.msra.mxu0 0.0
    %3847 = vmatprep.subr.mxu0 0.0
    %3848 = vmatpush1.msra.mxu0 0.0
    %3849 = vmatprep.subr.mxu0 0.0
    %3850 = vmatpush1.msra.mxu0 0.0
    %3851 = vmatprep.subr.mxu0 0.0
    %3852 = vmatpush1.msra.mxu0 0.0
    %3853 = vmatprep.subr.mxu0 0.0
    %3854 = vmatpush1.msra.mxu0 0.0
    %3855 = vmatprep.subr.mxu0 0.0
    %3856 = vmatpush1.msra.mxu0 0.0
    %3857 = vmatprep.subr.mxu0 0.0
    %3858 = vmatpush1.msra.mxu0 0.0
    %3859 = vmatprep.subr.mxu0 0.0
    %3860 = vmatpush1.msra.mxu0 0.0
    %3861 = vmatprep.subr.mxu0 0.0
    %3862 = vmatpush1.msra.mxu0 0.0
    %3863 = vmatprep.subr.mxu0 0.0
    %3864 = vmatpush1.msra.mxu0 0.0
    %3865 = vmatprep.subr.mxu0 0.0
    %3866 = vmatpush1.msra.mxu0 0.0
    %3867 = vmatprep.subr.mxu0 0.0
    %3868 = vmatpush1.msra.mxu0 0.0
    %3869 = vmatprep.subr.mxu0 0.0
    %3870 = vmatpush1.msra.mxu0 0.0
    %3871 = vmatprep.subr.mxu0 0.0
    %3872 = vmatpush1.msra.mxu0 0.0
    %3873 = vmatprep.mubr.f32.mxu0 0.0
    %3874 = vmatmul.mubr.f32.gmra.mrb[0].mxu0 %v3737
    %v3875 = vpop.f32.mrb[0].mxu0
    %v3876 = vadd.f32 %v2829, %v3875
    %v3877 = vpop.f32.mrb[0].mxu0
    %3878 = vdwg.mxu0
    %3879 = vmatprep.subr.mxu0 0.0
    %3880 = vmatpush1.msra.mxu0 %v2736
    %3881 = vmatprep.subr.mxu0 0.0
    %3882 = vmatpush1.msra.mxu0 %v2737
    %3883 = vmatprep.subr.mxu0 0.0
    %3884 = vmatpush1.msra.mxu0 %v2738
    %3885 = vmatprep.subr.mxu0 0.0
    %3886 = vmatpush1.msra.mxu0 %v2739
    %3887 = vmatprep.subr.mxu0 0.0
    %3888 = vmatpush1.msra.mxu0 %v2740
    %3889 = vmatprep.subr.mxu0 0.0
    %3890 = vmatpush1.msra.mxu0 %v2741
    %3891 = vmatprep.subr.mxu0 0.0
    %3892 = vmatpush1.msra.mxu0 %v2742
    %3893 = vmatprep.subr.mxu0 0.0
    %3894 = vmatpush1.msra.mxu0 %v2743
    %3895 = vmatprep.subr.mxu0 0.0
    %3896 = vmatpush1.msra.mxu0 0.0
    %3897 = vmatprep.subr.mxu0 0.0
    %3898 = vmatpush1.msra.mxu0 0.0
    %3899 = vmatprep.subr.mxu0 0.0
    %3900 = vmatpush1.msra.mxu0 0.0
    %3901 = vmatprep.subr.mxu0 0.0
    %3902 = vmatpush1.msra.mxu0 0.0
    %3903 = vmatprep.subr.mxu0 0.0
    %3904 = vmatpush1.msra.mxu0 0.0
    %3905 = vmatprep.subr.mxu0 0.0
    %3906 = vmatpush1.msra.mxu0 0.0
    %3907 = vmatprep.subr.mxu0 0.0
    %3908 = vmatpush1.msra.mxu0 0.0
    %3909 = vmatprep.subr.mxu0 0.0
    %3910 = vmatpush1.msra.mxu0 0.0
    %3911 = vmatprep.subr.mxu0 0.0
    %3912 = vmatpush1.msra.mxu0 0.0
    %3913 = vmatprep.subr.mxu0 0.0
    %3914 = vmatpush1.msra.mxu0 0.0
    %3915 = vmatprep.subr.mxu0 0.0
    %3916 = vmatpush1.msra.mxu0 0.0
    %3917 = vmatprep.subr.mxu0 0.0
    %3918 = vmatpush1.msra.mxu0 0.0
    %3919 = vmatprep.subr.mxu0 0.0
    %3920 = vmatpush1.msra.mxu0 0.0
    %3921 = vmatprep.subr.mxu0 0.0
    %3922 = vmatpush1.msra.mxu0 0.0
    %3923 = vmatprep.subr.mxu0 0.0
    %3924 = vmatpush1.msra.mxu0 0.0
    %3925 = vmatprep.subr.mxu0 0.0
    %3926 = vmatpush1.msra.mxu0 0.0
    %3927 = vmatprep.subr.mxu0 0.0
    %3928 = vmatpush1.msra.mxu0 0.0
    %3929 = vmatprep.subr.mxu0 0.0
    %3930 = vmatpush1.msra.mxu0 0.0
    %3931 = vmatprep.subr.mxu0 0.0
    %3932 = vmatpush1.msra.mxu0 0.0
    %3933 = vmatprep.subr.mxu0 0.0
    %3934 = vmatpush1.msra.mxu0 0.0
    %3935 = vmatprep.subr.mxu0 0.0
    %3936 = vmatpush1.msra.mxu0 0.0
    %3937 = vmatprep.subr.mxu0 0.0
    %3938 = vmatpush1.msra.mxu0 0.0
    %3939 = vmatprep.subr.mxu0 0.0
    %3940 = vmatpush1.msra.mxu0 0.0
    %3941 = vmatprep.subr.mxu0 0.0
    %3942 = vmatpush1.msra.mxu0 0.0
    %3943 = vmatprep.mubr.f32.mxu0 0.0
    %3944 = vmatmul.mubr.f32.gmra.mrb[0].mxu0 %v3737
    %v3945 = vpop.f32.mrb[0].mxu0
    %v3946 = vadd.f32 %v2905, %v3945
    %v3947 = vpop.f32.mrb[0].mxu0
    %3948 = vdwg.mxu0
    %v3949 = vadd.f32 %v2531, %v3806
    %v3950 = vxor.u32 %v3949, 2147483648
    %v3951 = vmul.f32 %v3950, 1.442695
    %v3952 = vpow.pop %v3951
    %v3953 = vadd.f32 %v3952, 1.0
    %v3954 = vrcp.pop %v3953
    %v3955 = vmul.f32 1.0, %v3954
    %v3956 = vadd.f32 %v2623, %v3876
    %v3957 = vxor.u32 %v3956, 2147483648
    %v3958 = vmul.f32 %v3957, 1.442695
    %v3959 = vpow.pop %v3958
    %v3960 = vadd.f32 %v3959, 1.0
    %v3961 = vrcp.pop %v3960
    %v3962 = vmul.f32 1.0, %v3961
    %v3963 = vmul.f32 %v3955, %v3946
    %v3964 = vadd.f32 %v2715, %v3963
    %v3965 = vtanh.pop %v3964
    %v3966 = vsub.f32 1.0, %v3962
    %v3967 = vmul.f32 %v3966, %v3965
    %v3969 = vmul.f32 %v3962, %v3736
    %v3970 = vadd.f32 %v3967, %v3969
    %v3972 = vsel %vm467, %v3970, 0
    %3974 = vmatprep.subr.mxu0 0.0
    %3975 = vmatpush1.msra.mxu0 %v2718
    %3976 = vmatprep.subr.mxu0 0.0
    %3977 = vmatpush1.msra.mxu0 %v2719
    %3978 = vmatprep.subr.mxu0 0.0
    %3979 = vmatpush1.msra.mxu0 %v2720
    %3980 = vmatprep.subr.mxu0 0.0
    %3981 = vmatpush1.msra.mxu0 %v2721
    %3982 = vmatprep.subr.mxu0 0.0
    %3983 = vmatpush1.msra.mxu0 %v2722
    %3984 = vmatprep.subr.mxu0 0.0
    %3985 = vmatpush1.msra.mxu0 %v2723
    %3986 = vmatprep.subr.mxu0 0.0
    %3987 = vmatpush1.msra.mxu0 %v2724
    %3988 = vmatprep.subr.mxu0 0.0
    %3989 = vmatpush1.msra.mxu0 %v2725
    %3990 = vmatprep.subr.mxu0 0.0
    %3991 = vmatpush1.msra.mxu0 0.0
    %3992 = vmatprep.subr.mxu0 0.0
    %3993 = vmatpush1.msra.mxu0 0.0
    %3994 = vmatprep.subr.mxu0 0.0
    %3995 = vmatpush1.msra.mxu0 0.0
    %3996 = vmatprep.subr.mxu0 0.0
    %3997 = vmatpush1.msra.mxu0 0.0
    %3998 = vmatprep.subr.mxu0 0.0
    %3999 = vmatpush1.msra.mxu0 0.0
    %4000 = vmatprep.subr.mxu0 0.0
    %4001 = vmatpush1.msra.mxu0 0.0
    %4002 = vmatprep.subr.mxu0 0.0
    %4003 = vmatpush1.msra.mxu0 0.0
    %4004 = vmatprep.subr.mxu0 0.0
    %4005 = vmatpush1.msra.mxu0 0.0
    %4006 = vmatprep.subr.mxu0 0.0
    %4007 = vmatpush1.msra.mxu0 0.0
    %4008 = vmatprep.subr.mxu0 0.0
    %4009 = vmatpush1.msra.mxu0 0.0
    %4010 = vmatprep.subr.mxu0 0.0
    %4011 = vmatpush1.msra.mxu0 0.0
    %4012 = vmatprep.subr.mxu0 0.0
    %4013 = vmatpush1.msra.mxu0 0.0
    %4014 = vmatprep.subr.mxu0 0.0
    %4015 = vmatpush1.msra.mxu0 0.0
    %4016 = vmatprep.subr.mxu0 0.0
    %4017 = vmatpush1.msra.mxu0 0.0
    %4018 = vmatprep.subr.mxu0 0.0
    %4019 = vmatpush1.msra.mxu0 0.0
    %4020 = vmatprep.subr.mxu0 0.0
    %4021 = vmatpush1.msra.mxu0 0.0
    %4022 = vmatprep.subr.mxu0 0.0
    %4023 = vmatpush1.msra.mxu0 0.0
    %4024 = vmatprep.subr.mxu0 0.0
    %4025 = vmatpush1.msra.mxu0 0.0
    %4026 = vmatprep.subr.mxu0 0.0
    %4027 = vmatpush1.msra.mxu0 0.0
    %4028 = vmatprep.subr.mxu0 0.0
    %4029 = vmatpush1.msra.mxu0 0.0
    %4030 = vmatprep.subr.mxu0 0.0
    %4031 = vmatpush1.msra.mxu0 0.0
    %4032 = vmatprep.subr.mxu0 0.0
    %4033 = vmatpush1.msra.mxu0 0.0
    %4034 = vmatprep.subr.mxu0 0.0
    %4035 = vmatpush1.msra.mxu0 0.0
    %4036 = vmatprep.subr.mxu0 0.0
    %4037 = vmatpush1.msra.mxu0 0.0
    %4038 = vmatprep.mubr.f32.mxu0 0.0
    %4039 = vmatmul.mubr.f32.gmra.mrb[0].mxu0 %v3972
    %v4040 = vpop.f32.mrb[0].mxu0
    %v4041 = vadd.f32 %v2753, %v4040
    %v4042 = vpop.f32.mrb[0].mxu0
    %4043 = vdwg.mxu0
    %4044 = vmatprep.subr.mxu0 0.0
    %4045 = vmatpush1.msra.mxu0 %v2727
    %4046 = vmatprep.subr.mxu0 0.0
    %4047 = vmatpush1.msra.mxu0 %v2728
    %4048 = vmatprep.subr.mxu0 0.0
    %4049 = vmatpush1.msra.mxu0 %v2729
    %4050 = vmatprep.subr.mxu0 0.0
    %4051 = vmatpush1.msra.mxu0 %v2730
    %4052 = vmatprep.subr.mxu0 0.0
    %4053 = vmatpush1.msra.mxu0 %v2731
    %4054 = vmatprep.subr.mxu0 0.0
    %4055 = vmatpush1.msra.mxu0 %v2732
    %4056 = vmatprep.subr.mxu0 0.0
    %4057 = vmatpush1.msra.mxu0 %v2733
    %4058 = vmatprep.subr.mxu0 0.0
    %4059 = vmatpush1.msra.mxu0 %v2734
    %4060 = vmatprep.subr.mxu0 0.0
    %4061 = vmatpush1.msra.mxu0 0.0
    %4062 = vmatprep.subr.mxu0 0.0
    %4063 = vmatpush1.msra.mxu0 0.0
    %4064 = vmatprep.subr.mxu0 0.0
    %4065 = vmatpush1.msra.mxu0 0.0
    %4066 = vmatprep.subr.mxu0 0.0
    %4067 = vmatpush1.msra.mxu0 0.0
    %4068 = vmatprep.subr.mxu0 0.0
    %4069 = vmatpush1.msra.mxu0 0.0
    %4070 = vmatprep.subr.mxu0 0.0
    %4071 = vmatpush1.msra.mxu0 0.0
    %4072 = vmatprep.subr.mxu0 0.0
    %4073 = vmatpush1.msra.mxu0 0.0
    %4074 = vmatprep.subr.mxu0 0.0
    %4075 = vmatpush1.msra.mxu0 0.0
    %4076 = vmatprep.subr.mxu0 0.0
    %4077 = vmatpush1.msra.mxu0 0.0
    %4078 = vmatprep.subr.mxu0 0.0
    %4079 = vmatpush1.msra.mxu0 0.0
    %4080 = vmatprep.subr.mxu0 0.0
    %4081 = vmatpush1.msra.mxu0 0.0
    %4082 = vmatprep.subr.mxu0 0.0
    %4083 = vmatpush1.msra.mxu0 0.0
    %4084 = vmatprep.subr.mxu0 0.0
    %4085 = vmatpush1.msra.mxu0 0.0
    %4086 = vmatprep.subr.mxu0 0.0
    %4087 = vmatpush1.msra.mxu0 0.0
    %4088 = vmatprep.subr.mxu0 0.0
    %4089 = vmatpush1.msra.mxu0 0.0
    %4090 = vmatprep.subr.mxu0 0.0
    %4091 = vmatpush1.msra.mxu0 0.0
    %4092 = vmatprep.subr.mxu0 0.0
    %4093 = vmatpush1.msra.mxu0 0.0
    %4094 = vmatprep.subr.mxu0 0.0
    %4095 = vmatpush1.msra.mxu0 0.0
    %4096 = vmatprep.subr.mxu0 0.0
    %4097 = vmatpush1.msra.mxu0 0.0
    %4098 = vmatprep.subr.mxu0 0.0
    %4099 = vmatpush1.msra.mxu0 0.0
    %4100 = vmatprep.subr.mxu0 0.0
    %4101 = vmatpush1.msra.mxu0 0.0
    %4102 = vmatprep.subr.mxu0 0.0
    %4103 = vmatpush1.msra.mxu0 0.0
    %4104 = vmatprep.subr.mxu0 0.0
    %4105 = vmatpush1.msra.mxu0 0.0
    %4106 = vmatprep.subr.mxu0 0.0
    %4107 = vmatpush1.msra.mxu0 0.0
    %4108 = vmatprep.mubr.f32.mxu0 0.0
    %4109 = vmatmul.mubr.f32.gmra.mrb[0].mxu0 %v3972
    %v4110 = vpop.f32.mrb[0].mxu0
    %v4111 = vadd.f32 %v2829, %v4110
    %v4112 = vpop.f32.mrb[0].mxu0
    %4113 = vdwg.mxu0
    %4114 = vmatprep.subr.mxu0 0.0
    %4115 = vmatpush1.msra.mxu0 %v2736
    %4116 = vmatprep.subr.mxu0 0.0
    %4117 = vmatpush1.msra.mxu0 %v2737
    %4118 = vmatprep.subr.mxu0 0.0
    %4119 = vmatpush1.msra.mxu0 %v2738
    %4120 = vmatprep.subr.mxu0 0.0
    %4121 = vmatpush1.msra.mxu0 %v2739
    %4122 = vmatprep.subr.mxu0 0.0
    %4123 = vmatpush1.msra.mxu0 %v2740
    %4124 = vmatprep.subr.mxu0 0.0
    %4125 = vmatpush1.msra.mxu0 %v2741
    %4126 = vmatprep.subr.mxu0 0.0
    %4127 = vmatpush1.msra.mxu0 %v2742
    %4128 = vmatprep.subr.mxu0 0.0
    %4129 = vmatpush1.msra.mxu0 %v2743
    %4130 = vmatprep.subr.mxu0 0.0
    %4131 = vmatpush1.msra.mxu0 0.0
    %4132 = vmatprep.subr.mxu0 0.0
    %4133 = vmatpush1.msra.mxu0 0.0
    %4134 = vmatprep.subr.mxu0 0.0
    %4135 = vmatpush1.msra.mxu0 0.0
    %4136 = vmatprep.subr.mxu0 0.0
    %4137 = vmatpush1.msra.mxu0 0.0
    %4138 = vmatprep.subr.mxu0 0.0
    %4139 = vmatpush1.msra.mxu0 0.0
    %4140 = vmatprep.subr.mxu0 0.0
    %4141 = vmatpush1.msra.mxu0 0.0
    %4142 = vmatprep.subr.mxu0 0.0
    %4143 = vmatpush1.msra.mxu0 0.0
    %4144 = vmatprep.subr.mxu0 0.0
    %4145 = vmatpush1.msra.mxu0 0.0
    %4146 = vmatprep.subr.mxu0 0.0
    %4147 = vmatpush1.msra.mxu0 0.0
    %4148 = vmatprep.subr.mxu0 0.0
    %4149 = vmatpush1.msra.mxu0 0.0
    %4150 = vmatprep.subr.mxu0 0.0
    %4151 = vmatpush1.msra.mxu0 0.0
    %4152 = vmatprep.subr.mxu0 0.0
    %4153 = vmatpush1.msra.mxu0 0.0
    %4154 = vmatprep.subr.mxu0 0.0
    %4155 = vmatpush1.msra.mxu0 0.0
    %4156 = vmatprep.subr.mxu0 0.0
    %4157 = vmatpush1.msra.mxu0 0.0
    %4158 = vmatprep.subr.mxu0 0.0
    %4159 = vmatpush1.msra.mxu0 0.0
    %4160 = vmatprep.subr.mxu0 0.0
    %4161 = vmatpush1.msra.mxu0 0.0
    %4162 = vmatprep.subr.mxu0 0.0
    %4163 = vmatpush1.msra.mxu0 0.0
    %4164 = vmatprep.subr.mxu0 0.0
    %4165 = vmatpush1.msra.mxu0 0.0
    %4166 = vmatprep.subr.mxu0 0.0
    %4167 = vmatpush1.msra.mxu0 0.0
    %4168 = vmatprep.subr.mxu0 0.0
    %4169 = vmatpush1.msra.mxu0 0.0
    %4170 = vmatprep.subr.mxu0 0.0
    %4171 = vmatpush1.msra.mxu0 0.0
    %4172 = vmatprep.subr.mxu0 0.0
    %4173 = vmatpush1.msra.mxu0 0.0
    %4174 = vmatprep.subr.mxu0 0.0
    %4175 = vmatpush1.msra.mxu0 0.0
    %4176 = vmatprep.subr.mxu0 0.0
    %4177 = vmatpush1.msra.mxu0 0.0
    %4178 = vmatprep.mubr.f32.mxu0 0.0
    %4179 = vmatmul.mubr.f32.gmra.mrb[0].mxu0 %v3972
    %v4180 = vpop.f32.mrb[0].mxu0
    %v4181 = vadd.f32 %v2905, %v4180
    %v4182 = vpop.f32.mrb[0].mxu0
    %4183 = vdwg.mxu0
    %v4185 = vrot.slane %v4041, 6
    %v4187 = vadd.f32 %v2531, %v4185
    %v4188 = vxor.u32 %v4187, 2147483648
    %v4189 = vmul.f32 %v4188, 1.442695
    %v4190 = vpow.pop %v4189
    %v4191 = vadd.f32 %v4190, 1.0
    %v4192 = vrcp.pop %v4191
    %v4193 = vmul.f32 1.0, %v4192
    %v4195 = vrot.slane %v4111, 6
    %v4197 = vadd.f32 %v2623, %v4195
    %v4198 = vxor.u32 %v4197, 2147483648
    %v4199 = vmul.f32 %v4198, 1.442695
    %v4200 = vpow.pop %v4199
    %v4201 = vadd.f32 %v4200, 1.0
    %v4202 = vrcp.pop %v4201
    %v4203 = vmul.f32 1.0, %v4202
    %v4205 = vrot.slane %v4181, 6
    %v4207 = vmul.f32 %v4193, %v4205
    %v4208 = vadd.f32 %v2715, %v4207
    %v4209 = vtanh.pop %v4208
    %v4210 = vsub.f32 1.0, %v4203
    %v4211 = vmul.f32 %v4210, %v4209
    %v4212 = vrot.slane %v3970, 6
    %v4214 = vmul.f32 %v4203, %v4212
    %v4215 = vadd.f32 %v4211, %v4214
    %v4217 = vrot.slane %v4215, 2
    %v4218 = vsel %vm467, %v4217, 0
    %4220 = vmatprep.subr.mxu0 0.0
    %4221 = vmatpush1.msra.mxu0 %v2718
    %4222 = vmatprep.subr.mxu0 0.0
    %4223 = vmatpush1.msra.mxu0 %v2719
    %4224 = vmatprep.subr.mxu0 0.0
    %4225 = vmatpush1.msra.mxu0 %v2720
    %4226 = vmatprep.subr.mxu0 0.0
    %4227 = vmatpush1.msra.mxu0 %v2721
    %4228 = vmatprep.subr.mxu0 0.0
    %4229 = vmatpush1.msra.mxu0 %v2722
    %4230 = vmatprep.subr.mxu0 0.0
    %4231 = vmatpush1.msra.mxu0 %v2723
    %4232 = vmatprep.subr.mxu0 0.0
    %4233 = vmatpush1.msra.mxu0 %v2724
    %4234 = vmatprep.subr.mxu0 0.0
    %4235 = vmatpush1.msra.mxu0 %v2725
    %4236 = vmatprep.subr.mxu0 0.0
    %4237 = vmatpush1.msra.mxu0 0.0
    %4238 = vmatprep.subr.mxu0 0.0
    %4239 = vmatpush1.msra.mxu0 0.0
    %4240 = vmatprep.subr.mxu0 0.0
    %4241 = vmatpush1.msra.mxu0 0.0
    %4242 = vmatprep.subr.mxu0 0.0
    %4243 = vmatpush1.msra.mxu0 0.0
    %4244 = vmatprep.subr.mxu0 0.0
    %4245 = vmatpush1.msra.mxu0 0.0
    %4246 = vmatprep.subr.mxu0 0.0
    %4247 = vmatpush1.msra.mxu0 0.0
    %4248 = vmatprep.subr.mxu0 0.0
    %4249 = vmatpush1.msra.mxu0 0.0
    %4250 = vmatprep.subr.mxu0 0.0
    %4251 = vmatpush1.msra.mxu0 0.0
    %4252 = vmatprep.subr.mxu0 0.0
    %4253 = vmatpush1.msra.mxu0 0.0
    %4254 = vmatprep.subr.mxu0 0.0
    %4255 = vmatpush1.msra.mxu0 0.0
    %4256 = vmatprep.subr.mxu0 0.0
    %4257 = vmatpush1.msra.mxu0 0.0
    %4258 = vmatprep.subr.mxu0 0.0
    %4259 = vmatpush1.msra.mxu0 0.0
    %4260 = vmatprep.subr.mxu0 0.0
    %4261 = vmatpush1.msra.mxu0 0.0
    %4262 = vmatprep.subr.mxu0 0.0
    %4263 = vmatpush1.msra.mxu0 0.0
    %4264 = vmatprep.subr.mxu0 0.0
    %4265 = vmatpush1.msra.mxu0 0.0
    %4266 = vmatprep.subr.mxu0 0.0
    %4267 = vmatpush1.msra.mxu0 0.0
    %4268 = vmatprep.subr.mxu0 0.0
    %4269 = vmatpush1.msra.mxu0 0.0
    %4270 = vmatprep.subr.mxu0 0.0
    %4271 = vmatpush1.msra.mxu0 0.0
    %4272 = vmatprep.subr.mxu0 0.0
    %4273 = vmatpush1.msra.mxu0 0.0
    %4274 = vmatprep.subr.mxu0 0.0
    %4275 = vmatpush1.msra.mxu0 0.0
    %4276 = vmatprep.subr.mxu0 0.0
    %4277 = vmatpush1.msra.mxu0 0.0
    %4278 = vmatprep.subr.mxu0 0.0
    %4279 = vmatpush1.msra.mxu0 0.0
    %4280 = vmatprep.subr.mxu0 0.0
    %4281 = vmatpush1.msra.mxu0 0.0
    %4282 = vmatprep.subr.mxu0 0.0
    %4283 = vmatpush1.msra.mxu0 0.0
    %4284 = vmatprep.mubr.f32.mxu0 0.0
    %4285 = vmatmul.mubr.f32.gmra.mrb[0].mxu0 %v4218
    %v4286 = vpop.f32.mrb[0].mxu0
    %v4287 = vadd.f32 %v2753, %v4286
    %v4288 = vpop.f32.mrb[0].mxu0
    %4289 = vdwg.mxu0
    %4290 = vmatprep.subr.mxu0 0.0
    %4291 = vmatpush1.msra.mxu0 %v2727
    %4292 = vmatprep.subr.mxu0 0.0
    %4293 = vmatpush1.msra.mxu0 %v2728
    %4294 = vmatprep.subr.mxu0 0.0
    %4295 = vmatpush1.msra.mxu0 %v2729
    %4296 = vmatprep.subr.mxu0 0.0
    %4297 = vmatpush1.msra.mxu0 %v2730
    %4298 = vmatprep.subr.mxu0 0.0
    %4299 = vmatpush1.msra.mxu0 %v2731
    %4300 = vmatprep.subr.mxu0 0.0
    %4301 = vmatpush1.msra.mxu0 %v2732
    %4302 = vmatprep.subr.mxu0 0.0
    %4303 = vmatpush1.msra.mxu0 %v2733
    %4304 = vmatprep.subr.mxu0 0.0
    %4305 = vmatpush1.msra.mxu0 %v2734
    %4306 = vmatprep.subr.mxu0 0.0
    %4307 = vmatpush1.msra.mxu0 0.0
    %4308 = vmatprep.subr.mxu0 0.0
    %4309 = vmatpush1.msra.mxu0 0.0
    %4310 = vmatprep.subr.mxu0 0.0
    %4311 = vmatpush1.msra.mxu0 0.0
    %4312 = vmatprep.subr.mxu0 0.0
    %4313 = vmatpush1.msra.mxu0 0.0
    %4314 = vmatprep.subr.mxu0 0.0
    %4315 = vmatpush1.msra.mxu0 0.0
    %4316 = vmatprep.subr.mxu0 0.0
    %4317 = vmatpush1.msra.mxu0 0.0
    %4318 = vmatprep.subr.mxu0 0.0
    %4319 = vmatpush1.msra.mxu0 0.0
    %4320 = vmatprep.subr.mxu0 0.0
    %4321 = vmatpush1.msra.mxu0 0.0
    %4322 = vmatprep.subr.mxu0 0.0
    %4323 = vmatpush1.msra.mxu0 0.0
    %4324 = vmatprep.subr.mxu0 0.0
    %4325 = vmatpush1.msra.mxu0 0.0
    %4326 = vmatprep.subr.mxu0 0.0
    %4327 = vmatpush1.msra.mxu0 0.0
    %4328 = vmatprep.subr.mxu0 0.0
    %4329 = vmatpush1.msra.mxu0 0.0
    %4330 = vmatprep.subr.mxu0 0.0
    %4331 = vmatpush1.msra.mxu0 0.0
    %4332 = vmatprep.subr.mxu0 0.0
    %4333 = vmatpush1.msra.mxu0 0.0
    %4334 = vmatprep.subr.mxu0 0.0
    %4335 = vmatpush1.msra.mxu0 0.0
    %4336 = vmatprep.subr.mxu0 0.0
    %4337 = vmatpush1.msra.mxu0 0.0
    %4338 = vmatprep.subr.mxu0 0.0
    %4339 = vmatpush1.msra.mxu0 0.0
    %4340 = vmatprep.subr.mxu0 0.0
    %4341 = vmatpush1.msra.mxu0 0.0
    %4342 = vmatprep.subr.mxu0 0.0
    %4343 = vmatpush1.msra.mxu0 0.0
    %4344 = vmatprep.subr.mxu0 0.0
    %4345 = vmatpush1.msra.mxu0 0.0
    %4346 = vmatprep.subr.mxu0 0.0
    %4347 = vmatpush1.msra.mxu0 0.0
    %4348 = vmatprep.subr.mxu0 0.0
    %4349 = vmatpush1.msra.mxu0 0.0
    %4350 = vmatprep.subr.mxu0 0.0
    %4351 = vmatpush1.msra.mxu0 0.0
    %4352 = vmatprep.subr.mxu0 0.0
    %4353 = vmatpush1.msra.mxu0 0.0
    %4354 = vmatprep.mubr.f32.mxu0 0.0
    %4355 = vmatmul.mubr.f32.gmra.mrb[0].mxu0 %v4218
    %v4356 = vpop.f32.mrb[0].mxu0
    %v4357 = vadd.f32 %v2829, %v4356
    %v4358 = vpop.f32.mrb[0].mxu0
    %4359 = vdwg.mxu0
    %4360 = vmatprep.subr.mxu0 0.0
    %4361 = vmatpush1.msra.mxu0 %v2736
    %4362 = vmatprep.subr.mxu0 0.0
    %4363 = vmatpush1.msra.mxu0 %v2737
    %4364 = vmatprep.subr.mxu0 0.0
    %4365 = vmatpush1.msra.mxu0 %v2738
    %4366 = vmatprep.subr.mxu0 0.0
    %4367 = vmatpush1.msra.mxu0 %v2739
    %4368 = vmatprep.subr.mxu0 0.0
    %4369 = vmatpush1.msra.mxu0 %v2740
    %4370 = vmatprep.subr.mxu0 0.0
    %4371 = vmatpush1.msra.mxu0 %v2741
    %4372 = vmatprep.subr.mxu0 0.0
    %4373 = vmatpush1.msra.mxu0 %v2742
    %4374 = vmatprep.subr.mxu0 0.0
    %4375 = vmatpush1.msra.mxu0 %v2743
    %4376 = vmatprep.subr.mxu0 0.0
    %4377 = vmatpush1.msra.mxu0 0.0
    %4378 = vmatprep.subr.mxu0 0.0
    %4379 = vmatpush1.msra.mxu0 0.0
    %4380 = vmatprep.subr.mxu0 0.0
    %4381 = vmatpush1.msra.mxu0 0.0
    %4382 = vmatprep.subr.mxu0 0.0
    %4383 = vmatpush1.msra.mxu0 0.0
    %4384 = vmatprep.subr.mxu0 0.0
    %4385 = vmatpush1.msra.mxu0 0.0
    %4386 = vmatprep.subr.mxu0 0.0
    %4387 = vmatpush1.msra.mxu0 0.0
    %4388 = vmatprep.subr.mxu0 0.0
    %4389 = vmatpush1.msra.mxu0 0.0
    %4390 = vmatprep.subr.mxu0 0.0
    %4391 = vmatpush1.msra.mxu0 0.0
    %4392 = vmatprep.subr.mxu0 0.0
    %4393 = vmatpush1.msra.mxu0 0.0
    %4394 = vmatprep.subr.mxu0 0.0
    %4395 = vmatpush1.msra.mxu0 0.0
    %4396 = vmatprep.subr.mxu0 0.0
    %4397 = vmatpush1.msra.mxu0 0.0
    %4398 = vmatprep.subr.mxu0 0.0
    %4399 = vmatpush1.msra.mxu0 0.0
    %4400 = vmatprep.subr.mxu0 0.0
    %4401 = vmatpush1.msra.mxu0 0.0
    %4402 = vmatprep.subr.mxu0 0.0
    %4403 = vmatpush1.msra.mxu0 0.0
    %4404 = vmatprep.subr.mxu0 0.0
    %4405 = vmatpush1.msra.mxu0 0.0
    %4406 = vmatprep.subr.mxu0 0.0
    %4407 = vmatpush1.msra.mxu0 0.0
    %4408 = vmatprep.subr.mxu0 0.0
    %4409 = vmatpush1.msra.mxu0 0.0
    %4410 = vmatprep.subr.mxu0 0.0
    %4411 = vmatpush1.msra.mxu0 0.0
    %4412 = vmatprep.subr.mxu0 0.0
    %4413 = vmatpush1.msra.mxu0 0.0
    %4414 = vmatprep.subr.mxu0 0.0
    %4415 = vmatpush1.msra.mxu0 0.0
    %4416 = vmatprep.subr.mxu0 0.0
    %4417 = vmatpush1.msra.mxu0 0.0
    %4418 = vmatprep.subr.mxu0 0.0
    %4419 = vmatpush1.msra.mxu0 0.0
    %4420 = vmatprep.subr.mxu0 0.0
    %4421 = vmatpush1.msra.mxu0 0.0
    %4422 = vmatprep.subr.mxu0 0.0
    %4423 = vmatpush1.msra.mxu0 0.0
    %4424 = vmatprep.mubr.f32.mxu0 0.0
    %4425 = vmatmul.mubr.f32.gmra.mrb[0].mxu0 %v4218
    %v4426 = vpop.f32.mrb[0].mxu0
    %v4427 = vadd.f32 %v2905, %v4426
    %v4428 = vpop.f32.mrb[0].mxu0
    %4429 = vdwg.mxu0
    %v4431 = vrot.slane %v4287, 4
    %v4433 = vadd.f32 %v2531, %v4431
    %v4434 = vxor.u32 %v4433, 2147483648
    %v4435 = vmul.f32 %v4434, 1.442695
    %v4436 = vpow.pop %v4435
    %v4437 = vadd.f32 %v4436, 1.0
    %v4438 = vrcp.pop %v4437
    %v4439 = vmul.f32 1.0, %v4438
    %v4441 = vrot.slane %v4357, 4
    %v4443 = vadd.f32 %v2623, %v4441
    %v4444 = vxor.u32 %v4443, 2147483648
    %v4445 = vmul.f32 %v4444, 1.442695
    %v4446 = vpow.pop %v4445
    %v4447 = vadd.f32 %v4446, 1.0
    %v4448 = vrcp.pop %v4447
    %v4449 = vmul.f32 1.0, %v4448
    %v4451 = vrot.slane %v4427, 4
    %v4453 = vmul.f32 %v4439, %v4451
    %v4454 = vadd.f32 %v2715, %v4453
    %v4455 = vtanh.pop %v4454
    %v4456 = vsub.f32 1.0, %v4449
    %v4457 = vmul.f32 %v4456, %v4455
    %v4458 = vrot.slane %v4215, 6
    %v4460 = vmul.f32 %v4449, %v4458
    %v4461 = vadd.f32 %v4457, %v4460
    %v4463 = vrot.slane %v4461, 4
    %v4464 = vsel %vm467, %v4463, 0
    %4466 = vmatprep.subr.mxu0 0.0
    %4467 = vmatpush1.msra.mxu0 %v2718
    %4468 = vmatprep.subr.mxu0 0.0
    %4469 = vmatpush1.msra.mxu0 %v2719
    %4470 = vmatprep.subr.mxu0 0.0
    %4471 = vmatpush1.msra.mxu0 %v2720
    %4472 = vmatprep.subr.mxu0 0.0
    %4473 = vmatpush1.msra.mxu0 %v2721
    %4474 = vmatprep.subr.mxu0 0.0
    %4475 = vmatpush1.msra.mxu0 %v2722
    %4476 = vmatprep.subr.mxu0 0.0
    %4477 = vmatpush1.msra.mxu0 %v2723
    %4478 = vmatprep.subr.mxu0 0.0
    %4479 = vmatpush1.msra.mxu0 %v2724
    %4480 = vmatprep.subr.mxu0 0.0
    %4481 = vmatpush1.msra.mxu0 %v2725
    %4482 = vmatprep.subr.mxu0 0.0
    %4483 = vmatpush1.msra.mxu0 0.0
    %4484 = vmatprep.subr.mxu0 0.0
    %4485 = vmatpush1.msra.mxu0 0.0
    %4486 = vmatprep.subr.mxu0 0.0
    %4487 = vmatpush1.msra.mxu0 0.0
    %4488 = vmatprep.subr.mxu0 0.0
    %4489 = vmatpush1.msra.mxu0 0.0
    %4490 = vmatprep.subr.mxu0 0.0
    %4491 = vmatpush1.msra.mxu0 0.0
    %4492 = vmatprep.subr.mxu0 0.0
    %4493 = vmatpush1.msra.mxu0 0.0
    %4494 = vmatprep.subr.mxu0 0.0
    %4495 = vmatpush1.msra.mxu0 0.0
    %4496 = vmatprep.subr.mxu0 0.0
    %4497 = vmatpush1.msra.mxu0 0.0
    %4498 = vmatprep.subr.mxu0 0.0
    %4499 = vmatpush1.msra.mxu0 0.0
    %4500 = vmatprep.subr.mxu0 0.0
    %4501 = vmatpush1.msra.mxu0 0.0
    %4502 = vmatprep.subr.mxu0 0.0
    %4503 = vmatpush1.msra.mxu0 0.0
    %4504 = vmatprep.subr.mxu0 0.0
    %4505 = vmatpush1.msra.mxu0 0.0
    %4506 = vmatprep.subr.mxu0 0.0
    %4507 = vmatpush1.msra.mxu0 0.0
    %4508 = vmatprep.subr.mxu0 0.0
    %4509 = vmatpush1.msra.mxu0 0.0
    %4510 = vmatprep.subr.mxu0 0.0
    %4511 = vmatpush1.msra.mxu0 0.0
    %4512 = vmatprep.subr.mxu0 0.0
    %4513 = vmatpush1.msra.mxu0 0.0
    %4514 = vmatprep.subr.mxu0 0.0
    %4515 = vmatpush1.msra.mxu0 0.0
    %4516 = vmatprep.subr.mxu0 0.0
    %4517 = vmatpush1.msra.mxu0 0.0
    %4518 = vmatprep.subr.mxu0 0.0
    %4519 = vmatpush1.msra.mxu0 0.0
    %4520 = vmatprep.subr.mxu0 0.0
    %4521 = vmatpush1.msra.mxu0 0.0
    %4522 = vmatprep.subr.mxu0 0.0
    %4523 = vmatpush1.msra.mxu0 0.0
    %4524 = vmatprep.subr.mxu0 0.0
    %4525 = vmatpush1.msra.mxu0 0.0
    %4526 = vmatprep.subr.mxu0 0.0
    %4527 = vmatpush1.msra.mxu0 0.0
    %4528 = vmatprep.subr.mxu0 0.0
    %4529 = vmatpush1.msra.mxu0 0.0
    %4530 = vmatprep.mubr.f32.mxu0 0.0
    %4531 = vmatmul.mubr.f32.gmra.mrb[0].mxu0 %v4464
    %v4532 = vpop.f32.mrb[0].mxu0
    %v4533 = vadd.f32 %v2753, %v4532
    %v4534 = vpop.f32.mrb[0].mxu0
    %4535 = vdwg.mxu0
    %4536 = vmatprep.subr.mxu0 0.0
    %4537 = vmatpush1.msra.mxu0 %v2727
    %4538 = vmatprep.subr.mxu0 0.0
    %4539 = vmatpush1.msra.mxu0 %v2728
    %4540 = vmatprep.subr.mxu0 0.0
    %4541 = vmatpush1.msra.mxu0 %v2729
    %4542 = vmatprep.subr.mxu0 0.0
    %4543 = vmatpush1.msra.mxu0 %v2730
    %4544 = vmatprep.subr.mxu0 0.0
    %4545 = vmatpush1.msra.mxu0 %v2731
    %4546 = vmatprep.subr.mxu0 0.0
    %4547 = vmatpush1.msra.mxu0 %v2732
    %4548 = vmatprep.subr.mxu0 0.0
    %4549 = vmatpush1.msra.mxu0 %v2733
    %4550 = vmatprep.subr.mxu0 0.0
    %4551 = vmatpush1.msra.mxu0 %v2734
    %4552 = vmatprep.subr.mxu0 0.0
    %4553 = vmatpush1.msra.mxu0 0.0
    %4554 = vmatprep.subr.mxu0 0.0
    %4555 = vmatpush1.msra.mxu0 0.0
    %4556 = vmatprep.subr.mxu0 0.0
    %4557 = vmatpush1.msra.mxu0 0.0
    %4558 = vmatprep.subr.mxu0 0.0
    %4559 = vmatpush1.msra.mxu0 0.0
    %4560 = vmatprep.subr.mxu0 0.0
    %4561 = vmatpush1.msra.mxu0 0.0
    %4562 = vmatprep.subr.mxu0 0.0
    %4563 = vmatpush1.msra.mxu0 0.0
    %4564 = vmatprep.subr.mxu0 0.0
    %4565 = vmatpush1.msra.mxu0 0.0
    %4566 = vmatprep.subr.mxu0 0.0
    %4567 = vmatpush1.msra.mxu0 0.0
    %4568 = vmatprep.subr.mxu0 0.0
    %4569 = vmatpush1.msra.mxu0 0.0
    %4570 = vmatprep.subr.mxu0 0.0
    %4571 = vmatpush1.msra.mxu0 0.0
    %4572 = vmatprep.subr.mxu0 0.0
    %4573 = vmatpush1.msra.mxu0 0.0
    %4574 = vmatprep.subr.mxu0 0.0
    %4575 = vmatpush1.msra.mxu0 0.0
    %4576 = vmatprep.subr.mxu0 0.0
    %4577 = vmatpush1.msra.mxu0 0.0
    %4578 = vmatprep.subr.mxu0 0.0
    %4579 = vmatpush1.msra.mxu0 0.0
    %4580 = vmatprep.subr.mxu0 0.0
    %4581 = vmatpush1.msra.mxu0 0.0
    %4582 = vmatprep.subr.mxu0 0.0
    %4583 = vmatpush1.msra.mxu0 0.0
    %4584 = vmatprep.subr.mxu0 0.0
    %4585 = vmatpush1.msra.mxu0 0.0
    %4586 = vmatprep.subr.mxu0 0.0
    %4587 = vmatpush1.msra.mxu0 0.0
    %4588 = vmatprep.subr.mxu0 0.0
    %4589 = vmatpush1.msra.mxu0 0.0
    %4590 = vmatprep.subr.mxu0 0.0
    %4591 = vmatpush1.msra.mxu0 0.0
    %4592 = vmatprep.subr.mxu0 0.0
    %4593 = vmatpush1.msra.mxu0 0.0
    %4594 = vmatprep.subr.mxu0 0.0
    %4595 = vmatpush1.msra.mxu0 0.0
    %4596 = vmatprep.subr.mxu0 0.0
    %4597 = vmatpush1.msra.mxu0 0.0
    %4598 = vmatprep.subr.mxu0 0.0
    %4599 = vmatpush1.msra.mxu0 0.0
    %4600 = vmatprep.mubr.f32.mxu0 0.0
    %4601 = vmatmul.mubr.f32.gmra.mrb[0].mxu0 %v4464
    %v4602 = vpop.f32.mrb[0].mxu0
    %v4603 = vadd.f32 %v2829, %v4602
    %v4604 = vpop.f32.mrb[0].mxu0
    %4605 = vdwg.mxu0
    %4606 = vmatprep.subr.mxu0 0.0
    %4607 = vmatpush1.msra.mxu0 %v2736
    %4608 = vmatprep.subr.mxu0 0.0
    %4609 = vmatpush1.msra.mxu0 %v2737
    %4610 = vmatprep.subr.mxu0 0.0
    %4611 = vmatpush1.msra.mxu0 %v2738
    %4612 = vmatprep.subr.mxu0 0.0
    %4613 = vmatpush1.msra.mxu0 %v2739
    %4614 = vmatprep.subr.mxu0 0.0
    %4615 = vmatpush1.msra.mxu0 %v2740
    %4616 = vmatprep.subr.mxu0 0.0
    %4617 = vmatpush1.msra.mxu0 %v2741
    %4618 = vmatprep.subr.mxu0 0.0
    %4619 = vmatpush1.msra.mxu0 %v2742
    %4620 = vmatprep.subr.mxu0 0.0
    %4621 = vmatpush1.msra.mxu0 %v2743
    %4622 = vmatprep.subr.mxu0 0.0
    %4623 = vmatpush1.msra.mxu0 0.0
    %4624 = vmatprep.subr.mxu0 0.0
    %4625 = vmatpush1.msra.mxu0 0.0
    %4626 = vmatprep.subr.mxu0 0.0
    %4627 = vmatpush1.msra.mxu0 0.0
    %4628 = vmatprep.subr.mxu0 0.0
    %4629 = vmatpush1.msra.mxu0 0.0
    %4630 = vmatprep.subr.mxu0 0.0
    %4631 = vmatpush1.msra.mxu0 0.0
    %4632 = vmatprep.subr.mxu0 0.0
    %4633 = vmatpush1.msra.mxu0 0.0
    %4634 = vmatprep.subr.mxu0 0.0
    %4635 = vmatpush1.msra.mxu0 0.0
    %4636 = vmatprep.subr.mxu0 0.0
    %4637 = vmatpush1.msra.mxu0 0.0
    %4638 = vmatprep.subr.mxu0 0.0
    %4639 = vmatpush1.msra.mxu0 0.0
    %4640 = vmatprep.subr.mxu0 0.0
    %4641 = vmatpush1.msra.mxu0 0.0
    %4642 = vmatprep.subr.mxu0 0.0
    %4643 = vmatpush1.msra.mxu0 0.0
    %4644 = vmatprep.subr.mxu0 0.0
    %4645 = vmatpush1.msra.mxu0 0.0
    %4646 = vmatprep.subr.mxu0 0.0
    %4647 = vmatpush1.msra.mxu0 0.0
    %4648 = vmatprep.subr.mxu0 0.0
    %4649 = vmatpush1.msra.mxu0 0.0
    %4650 = vmatprep.subr.mxu0 0.0
    %4651 = vmatpush1.msra.mxu0 0.0
    %4652 = vmatprep.subr.mxu0 0.0
    %4653 = vmatpush1.msra.mxu0 0.0
    %4654 = vmatprep.subr.mxu0 0.0
    %4655 = vmatpush1.msra.mxu0 0.0
    %4656 = vmatprep.subr.mxu0 0.0
    %4657 = vmatpush1.msra.mxu0 0.0
    %4658 = vmatprep.subr.mxu0 0.0
    %4659 = vmatpush1.msra.mxu0 0.0
    %4660 = vmatprep.subr.mxu0 0.0
    %4661 = vmatpush1.msra.mxu0 0.0
    %4662 = vmatprep.subr.mxu0 0.0
    %4663 = vmatpush1.msra.mxu0 0.0
    %4664 = vmatprep.subr.mxu0 0.0
    %4665 = vmatpush1.msra.mxu0 0.0
    %4666 = vmatprep.subr.mxu0 0.0
    %4667 = vmatpush1.msra.mxu0 0.0
    %4668 = vmatprep.subr.mxu0 0.0
    %4669 = vmatpush1.msra.mxu0 0.0
    %4670 = vmatprep.mubr.f32.mxu0 0.0
    %4671 = vmatmul.mubr.f32.gmra.mrb[0].mxu0 %v4464
    %v4672 = vpop.f32.mrb[0].mxu0
    %v4673 = vadd.f32 %v2905, %v4672
    %v4674 = vpop.f32.mrb[0].mxu0
    %4675 = vdwg.mxu0
    %v4677 = vrot.slane %v4533, 2
    %v4679 = vadd.f32 %v2531, %v4677
    %v4680 = vxor.u32 %v4679, 2147483648
    %v4681 = vmul.f32 %v4680, 1.442695
    %v4682 = vpow.pop %v4681
    %v4683 = vadd.f32 %v4682, 1.0
    %v4684 = vrcp.pop %v4683
    %v4685 = vmul.f32 1.0, %v4684
    %v4687 = vrot.slane %v4603, 2
    %v4689 = vadd.f32 %v2623, %v4687
    %v4690 = vxor.u32 %v4689, 2147483648
    %v4691 = vmul.f32 %v4690, 1.442695
    %v4692 = vpow.pop %v4691
    %v4693 = vadd.f32 %v4692, 1.0
    %v4694 = vrcp.pop %v4693
    %v4695 = vmul.f32 1.0, %v4694
    %v4697 = vrot.slane %v4673, 2
    %v4699 = vmul.f32 %v4685, %v4697
    %v4700 = vadd.f32 %v2715, %v4699
    %v4701 = vtanh.pop %v4700
    %v4702 = vsub.f32 1.0, %v4695
    %v4703 = vmul.f32 %v4702, %v4701
    %v4704 = vrot.slane %v4461, 6
    %v4706 = vmul.f32 %v4695, %v4704
    %v4707 = vadd.f32 %v4703, %v4706
    %v4708 = vld [vmem:[#allocation11] sm:$0xff]
    %v4709 = vld [vmem:[#allocation11 + $0x8] sm:$0xff]
    %v4710 = vld [vmem:[#allocation11 + $0x10] sm:$0xff]
    %v4711 = vld [vmem:[#allocation11 + $0x18] sm:$0xff]
    %v4712 = vld [vmem:[#allocation11 + $0x20] sm:$0xff]
    %v4713 = vld [vmem:[#allocation11 + $0x28] sm:$0xff]
    %v4714 = vld [vmem:[#allocation11 + $0x30] sm:$0xff]
    %v4715 = vld [vmem:[#allocation11 + $0x38] sm:$0xff]
    %v4716 = vld [vmem:[#allocation12] sm:$0x1]
    %v4718 = vlaneseq
    %v4719 = vshrl.u32 %v4718, 7
    %v4720 = vsub.s32 0, %v4719
    %v4721 = vrot.slane %v4716, %v4720
    %v4724 = vrot.slane %v4707, 6
    %v4725 = vsel %vm467, %v4724, 0
    %4727 = vmatprep.subr.mxu0 0.0
    %4728 = vmatpush1.msra.mxu0 %v4708
    %4729 = vmatprep.subr.mxu0 0.0
    %4730 = vmatpush1.msra.mxu0 %v4709
    %4731 = vmatprep.subr.mxu0 0.0
    %4732 = vmatpush1.msra.mxu0 %v4710
    %4733 = vmatprep.subr.mxu0 0.0
    %4734 = vmatpush1.msra.mxu0 %v4711
    %4735 = vmatprep.subr.mxu0 0.0
    %4736 = vmatpush1.msra.mxu0 %v4712
    %4737 = vmatprep.subr.mxu0 0.0
    %4738 = vmatpush1.msra.mxu0 %v4713
    %4739 = vmatprep.subr.mxu0 0.0
    %4740 = vmatpush1.msra.mxu0 %v4714
    %4741 = vmatprep.subr.mxu0 0.0
    %4742 = vmatpush1.msra.mxu0 %v4715
    %4743 = vmatprep.subr.mxu0 0.0
    %4744 = vmatpush1.msra.mxu0 0.0
    %4745 = vmatprep.subr.mxu0 0.0
    %4746 = vmatpush1.msra.mxu0 0.0
    %4747 = vmatprep.subr.mxu0 0.0
    %4748 = vmatpush1.msra.mxu0 0.0
    %4749 = vmatprep.subr.mxu0 0.0
    %4750 = vmatpush1.msra.mxu0 0.0
    %4751 = vmatprep.subr.mxu0 0.0
    %4752 = vmatpush1.msra.mxu0 0.0
    %4753 = vmatprep.subr.mxu0 0.0
    %4754 = vmatpush1.msra.mxu0 0.0
    %4755 = vmatprep.subr.mxu0 0.0
    %4756 = vmatpush1.msra.mxu0 0.0
    %4757 = vmatprep.subr.mxu0 0.0
    %4758 = vmatpush1.msra.mxu0 0.0
    %4759 = vmatprep.subr.mxu0 0.0
    %4760 = vmatpush1.msra.mxu0 0.0
    %4761 = vmatprep.subr.mxu0 0.0
    %4762 = vmatpush1.msra.mxu0 0.0
    %4763 = vmatprep.subr.mxu0 0.0
    %4764 = vmatpush1.msra.mxu0 0.0
    %4765 = vmatprep.subr.mxu0 0.0
    %4766 = vmatpush1.msra.mxu0 0.0
    %4767 = vmatprep.subr.mxu0 0.0
    %4768 = vmatpush1.msra.mxu0 0.0
    %4769 = vmatprep.subr.mxu0 0.0
    %4770 = vmatpush1.msra.mxu0 0.0
    %4771 = vmatprep.subr.mxu0 0.0
    %4772 = vmatpush1.msra.mxu0 0.0
    %4773 = vmatprep.subr.mxu0 0.0
    %4774 = vmatpush1.msra.mxu0 0.0
    %4775 = vmatprep.subr.mxu0 0.0
    %4776 = vmatpush1.msra.mxu0 0.0
    %4777 = vmatprep.subr.mxu0 0.0
    %4778 = vmatpush1.msra.mxu0 0.0
    %4779 = vmatprep.subr.mxu0 0.0
    %4780 = vmatpush1.msra.mxu0 0.0
    %4781 = vmatprep.subr.mxu0 0.0
    %4782 = vmatpush1.msra.mxu0 0.0
    %4783 = vmatprep.subr.mxu0 0.0
    %4784 = vmatpush1.msra.mxu0 0.0
    %4785 = vmatprep.subr.mxu0 0.0
    %4786 = vmatpush1.msra.mxu0 0.0
    %4787 = vmatprep.subr.mxu0 0.0
    %4788 = vmatpush1.msra.mxu0 0.0
    %4789 = vmatprep.subr.mxu0 0.0
    %4790 = vmatpush1.msra.mxu0 0.0
    %4791 = vmatprep.mubr.f32.mxu0 0.0
    %4792 = vmatmul.mubr.f32.gmra.mrb[0].mxu0 %v4725
    %v4793 = vpop.f32.mrb[0].mxu0
    %v4794 = vadd.f32 %v4721, %v4793
    %v4795 = vpop.f32.mrb[0].mxu0
    %4796 = vdwg.mxu0
    %v4797 = vmax.f32 %v4794, 0.0
    %v4798 = vld [vmem:[#allocation14] sm:$0xff]
    %v4799 = vld [vmem:[#allocation14 + $0x8] sm:$0xff]
    %v4800 = vld [vmem:[#allocation14 + $0x10] sm:$0xff]
    %v4801 = vld [vmem:[#allocation14 + $0x18] sm:$0xff]
    %v4802 = vld [vmem:[#allocation14 + $0x20] sm:$0xff]
    %v4803 = vld [vmem:[#allocation14 + $0x28] sm:$0xff]
    %v4804 = vld [vmem:[#allocation14 + $0x30] sm:$0xff]
    %v4805 = vld [vmem:[#allocation14 + $0x38] sm:$0xff]
    %v4806 = vld [vmem:[#allocation14 + $0x40] sm:$0xff]
    %v4807 = vld [vmem:[#allocation14 + $0x48] sm:$0xff]
    %v4808 = vld [vmem:[#allocation14 + $0x50] sm:$0xff]
    %v4809 = vld [vmem:[#allocation14 + $0x58] sm:$0xff]
    %v4810 = vld [vmem:[#allocation14 + $0x60] sm:$0xff]
    %v4811 = vld [vmem:[#allocation14 + $0x68] sm:$0xff]
    %v4812 = vld [vmem:[#allocation14 + $0x70] sm:$0xff]
    %v4813 = vld [vmem:[#allocation14 + $0x78] sm:$0xff]
    %v4814 = vld [vmem:[#allocation15] sm:$0x1]
    %v4816 = vlaneseq
    %v4817 = vshrl.u32 %v4816, 7
    %v4818 = vsub.s32 0, %v4817
    %v4819 = vrot.slane %v4814, %v4818
    %4821 = vmatprep.subr.mxu0 0.0
    %4822 = vmatpush1.msra.mxu0 %v4798
    %4823 = vmatprep.subr.mxu0 0.0
    %4824 = vmatpush1.msra.mxu0 %v4799
    %4825 = vmatprep.subr.mxu0 0.0
    %4826 = vmatpush1.msra.mxu0 %v4800
    %4827 = vmatprep.subr.mxu0 0.0
    %4828 = vmatpush1.msra.mxu0 %v4801
    %4829 = vmatprep.subr.mxu0 0.0
    %4830 = vmatpush1.msra.mxu0 %v4802
    %4831 = vmatprep.subr.mxu0 0.0
    %4832 = vmatpush1.msra.mxu0 %v4803
    %4833 = vmatprep.subr.mxu0 0.0
    %4834 = vmatpush1.msra.mxu0 %v4804
    %4835 = vmatprep.subr.mxu0 0.0
    %4836 = vmatpush1.msra.mxu0 %v4805
    %4837 = vmatprep.subr.mxu0 0.0
    %4838 = vmatpush1.msra.mxu0 %v4806
    %4839 = vmatprep.subr.mxu0 0.0
    %4840 = vmatpush1.msra.mxu0 %v4807
    %4841 = vmatprep.subr.mxu0 0.0
    %4842 = vmatpush1.msra.mxu0 %v4808
    %4843 = vmatprep.subr.mxu0 0.0
    %4844 = vmatpush1.msra.mxu0 %v4809
    %4845 = vmatprep.subr.mxu0 0.0
    %4846 = vmatpush1.msra.mxu0 %v4810
    %4847 = vmatprep.subr.mxu0 0.0
    %4848 = vmatpush1.msra.mxu0 %v4811
    %4849 = vmatprep.subr.mxu0 0.0
    %4850 = vmatpush1.msra.mxu0 %v4812
    %4851 = vmatprep.subr.mxu0 0.0
    %4852 = vmatpush1.msra.mxu0 %v4813
    %4853 = vmatprep.subr.mxu0 0.0
    %4854 = vmatpush1.msra.mxu0 0.0
    %4855 = vmatprep.subr.mxu0 0.0
    %4856 = vmatpush1.msra.mxu0 0.0
    %4857 = vmatprep.subr.mxu0 0.0
    %4858 = vmatpush1.msra.mxu0 0.0
    %4859 = vmatprep.subr.mxu0 0.0
    %4860 = vmatpush1.msra.mxu0 0.0
    %4861 = vmatprep.subr.mxu0 0.0
    %4862 = vmatpush1.msra.mxu0 0.0
    %4863 = vmatprep.subr.mxu0 0.0
    %4864 = vmatpush1.msra.mxu0 0.0
    %4865 = vmatprep.subr.mxu0 0.0
    %4866 = vmatpush1.msra.mxu0 0.0
    %4867 = vmatprep.subr.mxu0 0.0
    %4868 = vmatpush1.msra.mxu0 0.0
    %4869 = vmatprep.subr.mxu0 0.0
    %4870 = vmatpush1.msra.mxu0 0.0
    %4871 = vmatprep.subr.mxu0 0.0
    %4872 = vmatpush1.msra.mxu0 0.0
    %4873 = vmatprep.subr.mxu0 0.0
    %4874 = vmatpush1.msra.mxu0 0.0
    %4875 = vmatprep.subr.mxu0 0.0
    %4876 = vmatpush1.msra.mxu0 0.0
    %4877 = vmatprep.subr.mxu0 0.0
    %4878 = vmatpush1.msra.mxu0 0.0
    %4879 = vmatprep.subr.mxu0 0.0
    %4880 = vmatpush1.msra.mxu0 0.0
    %4881 = vmatprep.subr.mxu0 0.0
    %4882 = vmatpush1.msra.mxu0 0.0
    %4883 = vmatprep.subr.mxu0 0.0
    %4884 = vmatpush1.msra.mxu0 0.0
    %4885 = vmatprep.mubr.f32.mxu0 0.0
    %4886 = vmatmul.mubr.f32.gmra.mrb[0].mxu0 %v4797
    %v4887 = vpop.f32.mrb[0].mxu0
    %v4888 = vadd.f32 %v4819, %v4887
    %v4889 = vpop.f32.mrb[0].mxu0
    %4890 = vdwg.mxu0
    %v4891 = vmax.f32 %v4888, 0.0
    %v4892 = vld [vmem:[%s13] sm:$0xff]
    %v4893 = vld [vmem:[%s13 + $0x8] sm:$0xff]
    %v4894 = vld [vmem:[%s13 + $0x10] sm:$0xff]
    %v4895 = vld [vmem:[%s13 + $0x18] sm:$0xff]
    %v4896 = vld [vmem:[%s13 + $0x20] sm:$0xff]
    %v4897 = vld [vmem:[%s13 + $0x28] sm:$0xff]
    %v4898 = vld [vmem:[%s13 + $0x30] sm:$0xff]
    %v4899 = vld [vmem:[%s13 + $0x38] sm:$0xff]
    %v4900 = vld [vmem:[%s13 + $0x40] sm:$0xff]
    %v4901 = vld [vmem:[%s13 + $0x48] sm:$0xff]
    %v4902 = vld [vmem:[%s13 + $0x50] sm:$0xff]
    %v4903 = vld [vmem:[%s13 + $0x58] sm:$0xff]
    %v4904 = vld [vmem:[%s13 + $0x60] sm:$0xff]
    %v4905 = vld [vmem:[%s13 + $0x68] sm:$0xff]
    %v4906 = vld [vmem:[%s13 + $0x70] sm:$0xff]
    %v4907 = vld [vmem:[%s13 + $0x78] sm:$0xff]
    %v4908 = vld [vmem:[%s14] sm:$0x1]
    %v4910 = vlaneseq
    %v4911 = vshrl.u32 %v4910, 7
    %v4912 = vsub.s32 0, %v4911
    %v4913 = vrot.slane %v4908, %v4912
    %4915 = vmatprep.subr.mxu0 0.0
    %4916 = vmatpush1.msra.mxu0 %v4892
    %4917 = vmatprep.subr.mxu0 0.0
    %4918 = vmatpush1.msra.mxu0 %v4893
    %4919 = vmatprep.subr.mxu0 0.0
    %4920 = vmatpush1.msra.mxu0 %v4894
    %4921 = vmatprep.subr.mxu0 0.0
    %4922 = vmatpush1.msra.mxu0 %v4895
    %4923 = vmatprep.subr.mxu0 0.0
    %4924 = vmatpush1.msra.mxu0 %v4896
    %4925 = vmatprep.subr.mxu0 0.0
    %4926 = vmatpush1.msra.mxu0 %v4897
    %4927 = vmatprep.subr.mxu0 0.0
    %4928 = vmatpush1.msra.mxu0 %v4898
    %4929 = vmatprep.subr.mxu0 0.0
    %4930 = vmatpush1.msra.mxu0 %v4899
    %4931 = vmatprep.subr.mxu0 0.0
    %4932 = vmatpush1.msra.mxu0 %v4900
    %4933 = vmatprep.subr.mxu0 0.0
    %4934 = vmatpush1.msra.mxu0 %v4901
    %4935 = vmatprep.subr.mxu0 0.0
    %4936 = vmatpush1.msra.mxu0 %v4902
    %4937 = vmatprep.subr.mxu0 0.0
    %4938 = vmatpush1.msra.mxu0 %v4903
    %4939 = vmatprep.subr.mxu0 0.0
    %4940 = vmatpush1.msra.mxu0 %v4904
    %4941 = vmatprep.subr.mxu0 0.0
    %4942 = vmatpush1.msra.mxu0 %v4905
    %4943 = vmatprep.subr.mxu0 0.0
    %4944 = vmatpush1.msra.mxu0 %v4906
    %4945 = vmatprep.subr.mxu0 0.0
    %4946 = vmatpush1.msra.mxu0 %v4907
    %4947 = vmatprep.subr.mxu0 0.0
    %4948 = vmatpush1.msra.mxu0 0.0
    %4949 = vmatprep.subr.mxu0 0.0
    %4950 = vmatpush1.msra.mxu0 0.0
    %4951 = vmatprep.subr.mxu0 0.0
    %4952 = vmatpush1.msra.mxu0 0.0
    %4953 = vmatprep.subr.mxu0 0.0
    %4954 = vmatpush1.msra.mxu0 0.0
    %4955 = vmatprep.subr.mxu0 0.0
    %4956 = vmatpush1.msra.mxu0 0.0
    %4957 = vmatprep.subr.mxu0 0.0
    %4958 = vmatpush1.msra.mxu0 0.0
    %4959 = vmatprep.subr.mxu0 0.0
    %4960 = vmatpush1.msra.mxu0 0.0
    %4961 = vmatprep.subr.mxu0 0.0
    %4962 = vmatpush1.msra.mxu0 0.0
    %4963 = vmatprep.subr.mxu0 0.0
    %4964 = vmatpush1.msra.mxu0 0.0
    %4965 = vmatprep.subr.mxu0 0.0
    %4966 = vmatpush1.msra.mxu0 0.0
    %4967 = vmatprep.subr.mxu0 0.0
    %4968 = vmatpush1.msra.mxu0 0.0
    %4969 = vmatprep.subr.mxu0 0.0
    %4970 = vmatpush1.msra.mxu0 0.0
    %4971 = vmatprep.subr.mxu0 0.0
    %4972 = vmatpush1.msra.mxu0 0.0
    %4973 = vmatprep.subr.mxu0 0.0
    %4974 = vmatpush1.msra.mxu0 0.0
    %4975 = vmatprep.subr.mxu0 0.0
    %4976 = vmatpush1.msra.mxu0 0.0
    %4977 = vmatprep.subr.mxu0 0.0
    %4978 = vmatpush1.msra.mxu0 0.0
    %4979 = vmatprep.mubr.f32.mxu0 0.0
    %4980 = vmatmul.mubr.f32.gmra.mrb[0].mxu0 %v4891
    %v4981 = vpop.f32.mrb[0].mxu0
    %v4982 = vadd.f32 %v4913, %v4981
    %v4983 = vpop.f32.mrb[0].mxu0
    %4984 = vdwg.mxu0
    %vm4985 = vcmask 17408
    %v4986 = vsel %vm4985, %v4982, -inf
    %4987 = vmax.xlane.f32.xlu0 %v4986
    %v4988 = vpop.xlane.xlu0 %4987
    %v4989 = vsub.f32 %v4982, %v4988
    %v4990 = vmul.f32 %v4989, 1.442695
    %v4991 = vpow.pop %v4990
    %v4992 = vsel %vm4985, %v4991, 0.0
    %4993 = vadd.xlane.f32.xlu0 %v4992
    %v4994 = vpop.xlane.xlu0 %4993
    %v4995 = vrcp.pop %v4994
    %v4996 = vmul.f32 %v4991, %v4995
    %4997 = vst.msk [vmem:[#allocation17] sm:$0x3] %vm4985, %v4996
    // Predicated region
    $region94: #{my_rnn_forward.1} parent=1 // pred_check
      _
    $region95: #{my_rnn_forward.1} parent=1 // pred_check_branch
      %4999 = sbr.rel (0) target = $region97
    $region96: #{my_rnn_forward.1} parent=1 // pred_region
      %s5001 = ssub.s32 32, 32
      %5002 = vsyncadd [#allocation5], %s5001
      %s5004 = sshll.u32 [#allocation17], 4
      %s5005 = int_to_ptr.vmem [resolvable:$true] %s5004
      %5007 = dma.vmem_to_hbm [thread:$0]  %s5005, 32, %s15, [#allocation5]
    $region97: #{my_rnn_forward.1} parent=1 // pred_fallthru
      _
    // Predicated region
    $region98: #{my_rnn_forward.1} parent=1 // pred_check
      _
    $region99: #{my_rnn_forward.1} parent=1 // pred_check_branch
      %5009 = sbr.rel (0) target = $region101
    $region100: #{my_rnn_forward.1} parent=1 // pred_region
      %5010 = dma.done [#allocation5], 32
    $region101: #{my_rnn_forward.1} parent=1 // pred_fallthru
      _
    %5011 = vsyncpa [#allocation4], 1
    %5012 = vsyncpa [#allocation7], 1
    %5013 = vsyncpa [#allocation10], 1
    %5014 = vsyncpa [#allocation13], 1
    %5015 = vsyncpa [#allocation16], 1
    %5016 = vsyncpa [#allocation5], 1

</llo_original>
